<compile_context>
chip_gen: v6e
topology: v6e:2x2x1
jax: 0.10.0
libtpu: 0.0.40
codegen_flags: <defaults>
</compile_context>

<pallas_src>
import functools

import jax
import jax.numpy as jnp
from jax.experimental import pallas as pl
from jax.experimental.pallas import tpu as pltpu

# Review (v6e/v7x): set to jnp.bfloat16 to use the native bf16 MXU path and
# halve weight VMEM traffic (gate elementwise math stays f32 for v5e).  Kept
# f32 here so the result matches the f32 reference bit-tightly for validation.
MATMUL_DTYPE = jnp.float32


# ----------------------------------------------------------------------------
# Fused GRU-stack kernel: single invocation, all layers + all timesteps.
#   gi0_ref : (T*B, 3*HP)  precomputed layer-0 input projection (time-major rows)
#   h0_ref  : (L, B, HP)   initial hidden state (zero-padded lanes)
#   whh_ref : (L, HP, 3*HP)   W_hh^T per layer, gate-blocked & padded
#   bhh_ref : (L, 1, 3*HP)
#   wih_ref : (max(L-1,1), HP, 3*HP)   W_ih^T for layers >= 1
#   bih_ref : (max(L-1,1), 1, 3*HP)
#   y_ref   : (B, T*HP)    batch-first output, lane-dense 128-wide stores
#   hn_ref  : (L, B, HP)   final hidden per layer
#   y_scr   : (T*B, HP)    VMEM: outputs of the current (non-last) layer
#   gi_scr  : (T*B, 3*HP)  VMEM: input projection of the current layer (l>0)
# ----------------------------------------------------------------------------
def _gru_stack_kernel(gi0_ref, h0_ref, whh_ref, bhh_ref, wih_ref, bih_ref,
                      y_ref, hn_ref, y_scr, gi_scr):
    num_layers, B, HP = h0_ref.shape
    T = gi0_ref.shape[0] // B

    for l in range(num_layers):                      # static unroll over layers
        if l == 0:
            gi_ref = gi0_ref                         # hoisted in the wrapper
        else:
            # Hoisted input projection for layer l: ONE big matmul over the
            # previous layer's VMEM-resident outputs (not inside the time loop).
            w_ih = wih_ref[l - 1]                    # (HP, 3*HP)
            gi_scr[...] = (
                jnp.dot(y_scr[...].astype(w_ih.dtype), w_ih,
                        preferred_element_type=jnp.float32)
                + bih_ref[l - 1])
            gi_ref = gi_scr

        h = h0_ref[l]                                # (B, HP) f32
        last = (l == num_layers - 1)

        # Fully-unrolled serial recurrence (T is small & static): only the
        # (B,HP)@(HP,3HP) hidden matmul + gate math remain on the critical path.
        for t in range(T):
            gi_t = gi_ref[t * B:(t + 1) * B, :]      # (B, 3*HP), static slice
            w_hh = whh_ref[l]                        # (HP, 3*HP)
            gh = jnp.dot(h.astype(w_hh.dtype), w_hh,
                         preferred_element_type=jnp.float32) + bhh_ref[l]
            # Gate slices are 128-lane aligned (HP = 128*k): no lane shuffles.
            r = jax.nn.sigmoid(gi_t[:, :HP] + gh[:, :HP])
            z = jax.nn.sigmoid(gi_t[:, HP:2 * HP] + gh[:, HP:2 * HP])
            n = jnp.tanh(gi_t[:, 2 * HP:] + r * gh[:, 2 * HP:])
            h = (1.0 - z) * n + z * h
            if last:
                # batch-first, 128-lane aligned output store
                y_ref[:, t * HP:(t + 1) * HP] = h
            else:
                y_scr[t * B:(t + 1) * B, :] = h      # feeds next layer's matmul
        hn_ref[l] = h


# ----------------------------------------------------------------------------
# Weight preparation: transpose to (in, 3*HP) with each gate block starting at
# a 128-lane boundary; zero-pad so padded hidden lanes stay exactly zero.
# (In production these would be prepared once, outside the step function.)
# ----------------------------------------------------------------------------
def _pad_gates_T(w, in_pad, H, HP):
    """torch-layout (3H, D_in) -> (in_pad, 3*HP) transposed, gate-blocked."""
    D = w.shape[1]
    w3 = jnp.asarray(w, jnp.float32).reshape(3, H, D)
    w3 = jnp.pad(w3, ((0, 0), (0, HP - H), (0, in_pad - D)))
    return jnp.transpose(w3, (2, 0, 1)).reshape(in_pad, 3 * HP)


def _pad_gates_bias(b, H, HP):
    b3 = jnp.asarray(b, jnp.float32).reshape(3, H)
    return jnp.pad(b3, ((0, 0), (0, HP - H))).reshape(1, 3 * HP)


def gru_stack_pallas(emb, hidden, layer_params):
    """emb: (B, T, E) batch-first embedded input; hidden: (L, B, H).
    layer_params: [(w_ih, w_hh, b_ih, b_hh), ...] in torch layout.
    Returns (output (B, T, H) batch-first, h_n (L, B, H))."""
    B, T, E = emb.shape
    L, _, H = hidden.shape
    HP = ((H + 127) // 128) * 128          # gate blocks on 128-lane boundaries

    # Hoisted layer-0 input projection: ONE (B*T, E)@(E, 3HP) matmul; the
    # batch-first -> time-major reorder is folded into the einsum output.
    w_ih0 = layer_params[0][0]
    gi0 = (jnp.einsum("bte,eg->tbg", emb.astype(jnp.float32),
                      _pad_gates_T(w_ih0, E, H, HP))
           + _pad_gates_bias(layer_params[0][2], H, HP))          # (T, B, 3HP)
    gi0 = gi0.reshape(T * B, 3 * HP)

    whh_all = jnp.stack([_pad_gates_T(p[1], HP, H, HP) for p in layer_params])
    bhh_all = jnp.stack([_pad_gates_bias(p[3], H, HP) for p in layer_params])
    if L > 1:
        wih_rest = jnp.stack([_pad_gates_T(p[0], HP, H, HP)
                              for p in layer_params[1:]])
        bih_rest = jnp.stack([_pad_gates_bias(p[2], H, HP)
                              for p in layer_params[1:]])
    else:
        wih_rest = jnp.zeros((1, HP, 3 * HP), jnp.float32)   # unused dummy
        bih_rest = jnp.zeros((1, 1, 3 * HP), jnp.float32)
    whh_all = whh_all.astype(MATMUL_DTYPE)
    wih_rest = wih_rest.astype(MATMUL_DTYPE)
    Lw = wih_rest.shape[0]

    h0_pad = jnp.pad(jnp.asarray(hidden, jnp.float32),
                     ((0, 0), (0, 0), (0, HP - H)))

    # TODO(synk): for large H on v7x (64 MiB VMEM), add
    # pipeline_mode=pl.Buffered(1) on the constant-index weight specs to avoid
    # double-buffering resident weights.  Irrelevant at these toy sizes.
    y_flat, hn_pad = pl.pallas_call(
        _gru_stack_kernel,
        out_shape=(jax.ShapeDtypeStruct((B, T * HP), jnp.float32),
                   jax.ShapeDtypeStruct((L, B, HP), jnp.float32)),
        grid_spec=pltpu.PrefetchScalarGridSpec(
            num_scalar_prefetch=0,
            grid=(1,),                      # single step: recurrence is in-kernel
            in_specs=[
                pl.BlockSpec((T * B, 3 * HP), lambda i: (0, 0)),
                pl.BlockSpec((L, B, HP), lambda i: (0, 0, 0)),
                pl.BlockSpec((L, HP, 3 * HP), lambda i: (0, 0, 0)),
                pl.BlockSpec((L, 1, 3 * HP), lambda i: (0, 0, 0)),
                pl.BlockSpec((Lw, HP, 3 * HP), lambda i: (0, 0, 0)),
                pl.BlockSpec((Lw, 1, 3 * HP), lambda i: (0, 0, 0)),
            ],
            out_specs=(
                pl.BlockSpec((B, T * HP), lambda i: (0, 0)),
                pl.BlockSpec((L, B, HP), lambda i: (0, 0, 0)),
            ),
            scratch_shapes=[
                pltpu.VMEM((T * B, HP), jnp.float32),      # y_scr
                pltpu.VMEM((T * B, 3 * HP), jnp.float32),  # gi_scr
            ],
        ),
        compiler_params=pltpu.CompilerParams(
            dimension_semantics=("arbitrary",)),
    )(gi0, h0_pad, whh_all, bhh_all, wih_rest, bih_rest)

    output = y_flat.reshape(B, T, HP)[:, :, :H]   # free reshape + strip padding
    h_n = hn_pad[:, :, :H]
    return output, h_n


# ----------------------------------------------------------------------------
# ToyNN forward: embedding lookup (frozen table; gather is glue, kept in XLA)
# + fused Pallas GRU stack.  Matches torch: out, h_n = gru(embedding(inp), h0)
# ----------------------------------------------------------------------------
def toynn_forward(params, inp, hidden, *, num_layers):
    emb = jnp.take(params["embedding"], inp, axis=0)           # (B, T, E)
    layer_params = [
        (params[f"w_ih_{l}"], params[f"w_hh_{l}"],
         params[f"b_ih_{l}"], params[f"b_hh_{l}"]) for l in range(num_layers)]
    return gru_stack_pallas(emb, hidden, layer_params)


# ----------------------------------------------------------------------------
# Pure-JAX reference (lax.scan) to validate kernel semantics.
# ----------------------------------------------------------------------------
def _gru_layer_ref(x_tm, h0, w_ih, w_hh, b_ih, b_hh):
    H = h0.shape[-1]

    def step(h, x_t):
        gi = x_t @ w_ih.T + b_ih
        gh = h @ w_hh.T + b_hh
        r = jax.nn.sigmoid(gi[:, :H] + gh[:, :H])
        z = jax.nn.sigmoid(gi[:, H:2 * H] + gh[:, H:2 * H])
        n = jnp.tanh(gi[:, 2 * H:] + r * gh[:, 2 * H:])
        h_new = (1.0 - z) * n + z * h
        return h_new, h_new

    h_last, ys = jax.lax.scan(step, h0, x_tm)
    return ys, h_last


def toynn_forward_ref(params, inp, hidden, *, num_layers):
    emb = jnp.take(params["embedding"], inp, axis=0)
    x = jnp.transpose(emb, (1, 0, 2))
    h_finals = []
    for l in range(num_layers):
        x, hn = _gru_layer_ref(
            x, hidden[l],
            params[f"w_ih_{l}"], params[f"w_hh_{l}"],
            params[f"b_ih_{l}"], params[f"b_hh_{l}"])
        h_finals.append(hn)
    return jnp.transpose(x, (1, 0, 2)), jnp.stack(h_finals, axis=0)


# ----------------------------------------------------------------------------
# Deterministic parameter construction (shapes from nn.Embedding + nn.GRU).
# ----------------------------------------------------------------------------
def make_params(key, vocab, embedding_dim, hidden_size, num_layers):
    params = {}
    k_emb, key = jax.random.split(key)
    params["embedding"] = jax.random.normal(k_emb, (vocab, embedding_dim),
                                            jnp.float32)
    bound = 1.0 / jnp.sqrt(hidden_size)
    for l in range(num_layers):
        in_dim = embedding_dim if l == 0 else hidden_size
        keys = jax.random.split(key, 5)
        key = keys[0]
        params[f"w_ih_{l}"] = jax.random.uniform(
            keys[1], (3 * hidden_size, in_dim), jnp.float32, -bound, bound)
        params[f"w_hh_{l}"] = jax.random.uniform(
            keys[2], (3 * hidden_size, hidden_size), jnp.float32, -bound, bound)
        params[f"b_ih_{l}"] = jax.random.uniform(
            keys[3], (3 * hidden_size,), jnp.float32, -bound, bound)
        params[f"b_hh_{l}"] = jax.random.uniform(
            keys[4], (3 * hidden_size,), jnp.float32, -bound, bound)
    return params


if __name__ == "__main__":
    # Small shapes consistent with the module: GloVe dim 50, hidden 32, 2 layers.
    # NOTE(review): B=2 leaves the MXU almost empty on every generation; batch
    # more sequences at the workload level for real throughput.
    VOCAB, EMB_DIM, HIDDEN, LAYERS = 20, 50, 32, 2
    BATCH, SEQ = 2, 8

    key = jax.random.PRNGKey(0)
    k_params, k_inp = jax.random.split(key)
    params = make_params(k_params, VOCAB, EMB_DIM, HIDDEN, LAYERS)

    inp = jax.random.randint(k_inp, (BATCH, SEQ), 0, VOCAB, dtype=jnp.int32)
    hidden0 = jnp.zeros((LAYERS, BATCH, HIDDEN), jnp.float32)   # init_hidden()

    fwd = jax.jit(functools.partial(toynn_forward, num_layers=LAYERS))
    out, h_n = jax.block_until_ready(fwd(params, inp, hidden0))

    # Validate against pure-JAX reference
    out_ref, h_n_ref = toynn_forward_ref(params, inp, hidden0, num_layers=LAYERS)
    assert out.shape == (BATCH, SEQ, HIDDEN) and h_n.shape == (LAYERS, BATCH, HIDDEN)
    assert jnp.allclose(out, out_ref, atol=2e-3), "output mismatch vs reference"
    assert jnp.allclose(h_n, h_n_ref, atol=2e-3), "h_n mismatch vs reference"

    print("KERNEL_OK")
</pallas_src>

<mosaic_0001>
module attributes {stable_mosaic.version = 11 : i64} {
  func.func @_gru_stack_kernel(%arg0: i32, %arg1: memref<16x384xf32, #tpu.memory_space<vmem>>, %arg2: memref<2x2x128xf32, #tpu.memory_space<vmem>>, %arg3: memref<2x128x384xf32, #tpu.memory_space<vmem>>, %arg4: memref<2x1x384xf32, #tpu.memory_space<vmem>>, %arg5: memref<1x128x384xf32, #tpu.memory_space<vmem>>, %arg6: memref<1x1x384xf32, #tpu.memory_space<vmem>>, %arg7: memref<2x1024xf32, #tpu.memory_space<vmem>>, %arg8: memref<2x2x128xf32, #tpu.memory_space<vmem>>, %arg9: memref<16x128xf32, #tpu.memory_space<vmem>>, %arg10: memref<16x384xf32, #tpu.memory_space<vmem>>) attributes {dimension_semantics = [#tpu.dimension_semantics<arbitrary>], iteration_bounds = array<i64: 1>, scalar_prefetch = 0 : i64, scratch_operands = 2 : i64, tpu.core_type = #tpu.core_type<tc>, window_params = [{pipeline_mode = #tpu.pipeline_mode<synchronous>, transform_indices = @transform_0, window_bounds = array<i64: 16, 384>}, {pipeline_mode = #tpu.pipeline_mode<synchronous>, transform_indices = @transform_1, window_bounds = array<i64: 2, 2, 128>}, {pipeline_mode = #tpu.pipeline_mode<synchronous>, transform_indices = @transform_2, window_bounds = array<i64: 2, 128, 384>}, {pipeline_mode = #tpu.pipeline_mode<synchronous>, transform_indices = @transform_3, window_bounds = array<i64: 2, 1, 384>}, {pipeline_mode = #tpu.pipeline_mode<synchronous>, transform_indices = @transform_4, window_bounds = array<i64: 1, 128, 384>}, {pipeline_mode = #tpu.pipeline_mode<synchronous>, transform_indices = @transform_5, window_bounds = array<i64: 1, 1, 384>}, {pipeline_mode = #tpu.pipeline_mode<synchronous>, transform_indices = @transform_6, window_bounds = array<i64: 2, 1024>}, {pipeline_mode = #tpu.pipeline_mode<synchronous>, transform_indices = @transform_7, window_bounds = array<i64: 2, 2, 128>}]} {
    %c0 = arith.constant 0 : index
    %c0_0 = arith.constant 0 : index
    %c0_1 = arith.constant 0 : index
    %0 = vector.load %arg2[%c0, %c0_0, %c0_1] : memref<2x2x128xf32, #tpu.memory_space<vmem>>, vector<1x2x128xf32>
    %1 = vector.shape_cast %0 : vector<1x2x128xf32> to vector<2x128xf32>
    %c0_2 = arith.constant 0 : index
    %c0_3 = arith.constant 0 : index
    %2 = vector.load %arg1[%c0_2, %c0_3] : memref<16x384xf32, #tpu.memory_space<vmem>>, vector<2x384xf32>
    %c0_4 = arith.constant 0 : index
    %c0_5 = arith.constant 0 : index
    %c0_6 = arith.constant 0 : index
    %3 = vector.load %arg3[%c0_4, %c0_5, %c0_6] : memref<2x128x384xf32, #tpu.memory_space<vmem>>, vector<1x128x384xf32>
    %4 = vector.shape_cast %3 : vector<1x128x384xf32> to vector<128x384xf32>
    %cst = arith.constant dense<0.000000e+00> : vector<2x384xf32>
    %5 = tpu.matmul %1, %4, %cst {dimension_numbers = #tpu.dot_dimension_numbers<[1], [0], [0], [1], [0, 0, 1, 1], [], []>} : vector<2x128xf32>, vector<128x384xf32>, vector<2x384xf32> -> vector<2x384xf32>
    %c0_7 = arith.constant 0 : index
    %c0_8 = arith.constant 0 : index
    %c0_9 = arith.constant 0 : index
    %6 = vector.load %arg4[%c0_7, %c0_8, %c0_9] : memref<2x1x384xf32, #tpu.memory_space<vmem>>, vector<1x1x384xf32>
    %7 = vector.shape_cast %6 : vector<1x1x384xf32> to vector<1x384xf32>
    %8 = vector.broadcast %7 : vector<1x384xf32> to vector<2x384xf32>
    %9 = arith.addf %5, %8 : vector<2x384xf32>
    %10 = vector.extract_strided_slice %2 {offsets = [0, 0], sizes = [2, 128], strides = [1, 1]} : vector<2x384xf32> to vector<2x128xf32>
    %11 = vector.extract_strided_slice %9 {offsets = [0, 0], sizes = [2, 128], strides = [1, 1]} : vector<2x384xf32> to vector<2x128xf32>
    %12 = arith.addf %10, %11 : vector<2x128xf32>
    %13 = arith.negf %12 : vector<2x128xf32>
    %14 = math.exp %13 : vector<2x128xf32>
    %cst_10 = arith.constant 1.000000e+00 : f32
    %15 = vector.broadcast %cst_10 : f32 to vector<2x128xf32>
    %16 = arith.addf %15, %14 : vector<2x128xf32>
    %17 = arith.divf %15, %16 : vector<2x128xf32>
    %18 = vector.extract_strided_slice %2 {offsets = [0, 128], sizes = [2, 128], strides = [1, 1]} : vector<2x384xf32> to vector<2x128xf32>
    %19 = vector.extract_strided_slice %9 {offsets = [0, 128], sizes = [2, 128], strides = [1, 1]} : vector<2x384xf32> to vector<2x128xf32>
    %20 = arith.addf %18, %19 : vector<2x128xf32>
    %21 = arith.negf %20 : vector<2x128xf32>
    %22 = math.exp %21 : vector<2x128xf32>
    %cst_11 = arith.constant 1.000000e+00 : f32
    %23 = vector.broadcast %cst_11 : f32 to vector<2x128xf32>
    %24 = arith.addf %23, %22 : vector<2x128xf32>
    %25 = arith.divf %23, %24 : vector<2x128xf32>
    %26 = vector.extract_strided_slice %2 {offsets = [0, 256], sizes = [2, 128], strides = [1, 1]} : vector<2x384xf32> to vector<2x128xf32>
    %27 = vector.extract_strided_slice %9 {offsets = [0, 256], sizes = [2, 128], strides = [1, 1]} : vector<2x384xf32> to vector<2x128xf32>
    %28 = arith.mulf %17, %27 : vector<2x128xf32>
    %29 = arith.addf %26, %28 : vector<2x128xf32>
    %30 = math.tanh %29 : vector<2x128xf32>
    %cst_12 = arith.constant 1.000000e+00 : f32
    %31 = vector.broadcast %cst_12 : f32 to vector<2x128xf32>
    %32 = arith.subf %31, %25 : vector<2x128xf32>
    %33 = arith.mulf %32, %30 : vector<2x128xf32>
    %34 = arith.mulf %25, %1 : vector<2x128xf32>
    %35 = arith.addf %33, %34 : vector<2x128xf32>
    %c0_13 = arith.constant 0 : index
    %c0_14 = arith.constant 0 : index
    %36 = vector.load %arg9[%c0_13, %c0_14] : memref<16x128xf32, #tpu.memory_space<vmem>>, vector<2x128xf32>
    tpu.vector_store %arg9[%c0_13, %c0_14], %35 {strides = array<i32>} : memref<16x128xf32, #tpu.memory_space<vmem>>, vector<2x128xf32>,
    %c2 = arith.constant 2 : index
    %c0_15 = arith.constant 0 : index
    %37 = vector.load %arg1[%c2, %c0_15] : memref<16x384xf32, #tpu.memory_space<vmem>>, vector<2x384xf32>
    %c0_16 = arith.constant 0 : index
    %c0_17 = arith.constant 0 : index
    %c0_18 = arith.constant 0 : index
    %38 = vector.load %arg3[%c0_16, %c0_17, %c0_18] : memref<2x128x384xf32, #tpu.memory_space<vmem>>, vector<1x128x384xf32>
    %39 = vector.shape_cast %38 : vector<1x128x384xf32> to vector<128x384xf32>
    %cst_19 = arith.constant dense<0.000000e+00> : vector<2x384xf32>
    %40 = tpu.matmul %35, %39, %cst_19 {dimension_numbers = #tpu.dot_dimension_numbers<[1], [0], [0], [1], [0, 0, 1, 1], [], []>} : vector<2x128xf32>, vector<128x384xf32>, vector<2x384xf32> -> vector<2x384xf32>
    %c0_20 = arith.constant 0 : index
    %c0_21 = arith.constant 0 : index
    %c0_22 = arith.constant 0 : index
    %41 = vector.load %arg4[%c0_20, %c0_21, %c0_22] : memref<2x1x384xf32, #tpu.memory_space<vmem>>, vector<1x1x384xf32>
    %42 = vector.shape_cast %41 : vector<1x1x384xf32> to vector<1x384xf32>
    %43 = vector.broadcast %42 : vector<1x384xf32> to vector<2x384xf32>
    %44 = arith.addf %40, %43 : vector<2x384xf32>
    %45 = vector.extract_strided_slice %37 {offsets = [0, 0], sizes = [2, 128], strides = [1, 1]} : vector<2x384xf32> to vector<2x128xf32>
    %46 = vector.extract_strided_slice %44 {offsets = [0, 0], sizes = [2, 128], strides = [1, 1]} : vector<2x384xf32> to vector<2x128xf32>
    %47 = arith.addf %45, %46 : vector<2x128xf32>
    %48 = arith.negf %47 : vector<2x128xf32>
    %49 = math.exp %48 : vector<2x128xf32>
    %cst_23 = arith.constant 1.000000e+00 : f32
    %50 = vector.broadcast %cst_23 : f32 to vector<2x128xf32>
    %51 = arith.addf %50, %49 : vector<2x128xf32>
    %52 = arith.divf %50, %51 : vector<2x128xf32>
    %53 = vector.extract_strided_slice %37 {offsets = [0, 128], sizes = [2, 128], strides = [1, 1]} : vector<2x384xf32> to vector<2x128xf32>
    %54 = vector.extract_strided_slice %44 {offsets = [0, 128], sizes = [2, 128], strides = [1, 1]} : vector<2x384xf32> to vector<2x128xf32>
    %55 = arith.addf %53, %54 : vector<2x128xf32>
    %56 = arith.negf %55 : vector<2x128xf32>
    %57 = math.exp %56 : vector<2x128xf32>
    %cst_24 = arith.constant 1.000000e+00 : f32
    %58 = vector.broadcast %cst_24 : f32 to vector<2x128xf32>
    %59 = arith.addf %58, %57 : vector<2x128xf32>
    %60 = arith.divf %58, %59 : vector<2x128xf32>
    %61 = vector.extract_strided_slice %37 {offsets = [0, 256], sizes = [2, 128], strides = [1, 1]} : vector<2x384xf32> to vector<2x128xf32>
    %62 = vector.extract_strided_slice %44 {offsets = [0, 256], sizes = [2, 128], strides = [1, 1]} : vector<2x384xf32> to vector<2x128xf32>
    %63 = arith.mulf %52, %62 : vector<2x128xf32>
    %64 = arith.addf %61, %63 : vector<2x128xf32>
    %65 = math.tanh %64 : vector<2x128xf32>
    %cst_25 = arith.constant 1.000000e+00 : f32
    %66 = vector.broadcast %cst_25 : f32 to vector<2x128xf32>
    %67 = arith.subf %66, %60 : vector<2x128xf32>
    %68 = arith.mulf %67, %65 : vector<2x128xf32>
    %69 = arith.mulf %60, %35 : vector<2x128xf32>
    %70 = arith.addf %68, %69 : vector<2x128xf32>
    %c2_26 = arith.constant 2 : index
    %c0_27 = arith.constant 0 : index
    %71 = vector.load %arg9[%c2_26, %c0_27] : memref<16x128xf32, #tpu.memory_space<vmem>>, vector<2x128xf32>
    tpu.vector_store %arg9[%c2_26, %c0_27], %70 {strides = array<i32>} : memref<16x128xf32, #tpu.memory_space<vmem>>, vector<2x128xf32>,
    %c4 = arith.constant 4 : index
    %c0_28 = arith.constant 0 : index
    %72 = vector.load %arg1[%c4, %c0_28] : memref<16x384xf32, #tpu.memory_space<vmem>>, vector<2x384xf32>
    %c0_29 = arith.constant 0 : index
    %c0_30 = arith.constant 0 : index
    %c0_31 = arith.constant 0 : index
    %73 = vector.load %arg3[%c0_29, %c0_30, %c0_31] : memref<2x128x384xf32, #tpu.memory_space<vmem>>, vector<1x128x384xf32>
    %74 = vector.shape_cast %73 : vector<1x128x384xf32> to vector<128x384xf32>
    %cst_32 = arith.constant dense<0.000000e+00> : vector<2x384xf32>
    %75 = tpu.matmul %70, %74, %cst_32 {dimension_numbers = #tpu.dot_dimension_numbers<[1], [0], [0], [1], [0, 0, 1, 1], [], []>} : vector<2x128xf32>, vector<128x384xf32>, vector<2x384xf32> -> vector<2x384xf32>
    %c0_33 = arith.constant 0 : index
    %c0_34 = arith.constant 0 : index
    %c0_35 = arith.constant 0 : index
    %76 = vector.load %arg4[%c0_33, %c0_34, %c0_35] : memref<2x1x384xf32, #tpu.memory_space<vmem>>, vector<1x1x384xf32>
    %77 = vector.shape_cast %76 : vector<1x1x384xf32> to vector<1x384xf32>
    %78 = vector.broadcast %77 : vector<1x384xf32> to vector<2x384xf32>
    %79 = arith.addf %75, %78 : vector<2x384xf32>
    %80 = vector.extract_strided_slice %72 {offsets = [0, 0], sizes = [2, 128], strides = [1, 1]} : vector<2x384xf32> to vector<2x128xf32>
    %81 = vector.extract_strided_slice %79 {offsets = [0, 0], sizes = [2, 128], strides = [1, 1]} : vector<2x384xf32> to vector<2x128xf32>
    %82 = arith.addf %80, %81 : vector<2x128xf32>
    %83 = arith.negf %82 : vector<2x128xf32>
    %84 = math.exp %83 : vector<2x128xf32>
    %cst_36 = arith.constant 1.000000e+00 : f32
    %85 = vector.broadcast %cst_36 : f32 to vector<2x128xf32>
    %86 = arith.addf %85, %84 : vector<2x128xf32>
    %87 = arith.divf %85, %86 : vector<2x128xf32>
    %88 = vector.extract_strided_slice %72 {offsets = [0, 128], sizes = [2, 128], strides = [1, 1]} : vector<2x384xf32> to vector<2x128xf32>
    %89 = vector.extract_strided_slice %79 {offsets = [0, 128], sizes = [2, 128], strides = [1, 1]} : vector<2x384xf32> to vector<2x128xf32>
    %90 = arith.addf %88, %89 : vector<2x128xf32>
    %91 = arith.negf %90 : vector<2x128xf32>
    %92 = math.exp %91 : vector<2x128xf32>
    %cst_37 = arith.constant 1.000000e+00 : f32
    %93 = vector.broadcast %cst_37 : f32 to vector<2x128xf32>
    %94 = arith.addf %93, %92 : vector<2x128xf32>
    %95 = arith.divf %93, %94 : vector<2x128xf32>
    %96 = vector.extract_strided_slice %72 {offsets = [0, 256], sizes = [2, 128], strides = [1, 1]} : vector<2x384xf32> to vector<2x128xf32>
    %97 = vector.extract_strided_slice %79 {offsets = [0, 256], sizes = [2, 128], strides = [1, 1]} : vector<2x384xf32> to vector<2x128xf32>
    %98 = arith.mulf %87, %97 : vector<2x128xf32>
    %99 = arith.addf %96, %98 : vector<2x128xf32>
    %100 = math.tanh %99 : vector<2x128xf32>
    %cst_38 = arith.constant 1.000000e+00 : f32
    %101 = vector.broadcast %cst_38 : f32 to vector<2x128xf32>
    %102 = arith.subf %101, %95 : vector<2x128xf32>
    %103 = arith.mulf %102, %100 : vector<2x128xf32>
    %104 = arith.mulf %95, %70 : vector<2x128xf32>
    %105 = arith.addf %103, %104 : vector<2x128xf32>
    %c4_39 = arith.constant 4 : index
    %c0_40 = arith.constant 0 : index
    %106 = vector.load %arg9[%c4_39, %c0_40] : memref<16x128xf32, #tpu.memory_space<vmem>>, vector<2x128xf32>
    tpu.vector_store %arg9[%c4_39, %c0_40], %105 {strides = array<i32>} : memref<16x128xf32, #tpu.memory_space<vmem>>, vector<2x128xf32>,
    %c6 = arith.constant 6 : index
    %c0_41 = arith.constant 0 : index
    %107 = vector.load %arg1[%c6, %c0_41] : memref<16x384xf32, #tpu.memory_space<vmem>>, vector<2x384xf32>
    %c0_42 = arith.constant 0 : index
    %c0_43 = arith.constant 0 : index
    %c0_44 = arith.constant 0 : index
    %108 = vector.load %arg3[%c0_42, %c0_43, %c0_44] : memref<2x128x384xf32, #tpu.memory_space<vmem>>, vector<1x128x384xf32>
    %109 = vector.shape_cast %108 : vector<1x128x384xf32> to vector<128x384xf32>
    %cst_45 = arith.constant dense<0.000000e+00> : vector<2x384xf32>
    %110 = tpu.matmul %105, %109, %cst_45 {dimension_numbers = #tpu.dot_dimension_numbers<[1], [0], [0], [1], [0, 0, 1, 1], [], []>} : vector<2x128xf32>, vector<128x384xf32>, vector<2x384xf32> -> vector<2x384xf32>
    %c0_46 = arith.constant 0 : index
    %c0_47 = arith.constant 0 : index
    %c0_48 = arith.constant 0 : index
    %111 = vector.load %arg4[%c0_46, %c0_47, %c0_48] : memref<2x1x384xf32, #tpu.memory_space<vmem>>, vector<1x1x384xf32>
    %112 = vector.shape_cast %111 : vector<1x1x384xf32> to vector<1x384xf32>
    %113 = vector.broadcast %112 : vector<1x384xf32> to vector<2x384xf32>
    %114 = arith.addf %110, %113 : vector<2x384xf32>
    %115 = vector.extract_strided_slice %107 {offsets = [0, 0], sizes = [2, 128], strides = [1, 1]} : vector<2x384xf32> to vector<2x128xf32>
    %116 = vector.extract_strided_slice %114 {offsets = [0, 0], sizes = [2, 128], strides = [1, 1]} : vector<2x384xf32> to vector<2x128xf32>
    %117 = arith.addf %115, %116 : vector<2x128xf32>
    %118 = arith.negf %117 : vector<2x128xf32>
    %119 = math.exp %118 : vector<2x128xf32>
    %cst_49 = arith.constant 1.000000e+00 : f32
    %120 = vector.broadcast %cst_49 : f32 to vector<2x128xf32>
    %121 = arith.addf %120, %119 : vector<2x128xf32>
    %122 = arith.divf %120, %121 : vector<2x128xf32>
    %123 = vector.extract_strided_slice %107 {offsets = [0, 128], sizes = [2, 128], strides = [1, 1]} : vector<2x384xf32> to vector<2x128xf32>
    %124 = vector.extract_strided_slice %114 {offsets = [0, 128], sizes = [2, 128], strides = [1, 1]} : vector<2x384xf32> to vector<2x128xf32>
    %125 = arith.addf %123, %124 : vector<2x128xf32>
    %126 = arith.negf %125 : vector<2x128xf32>
    %127 = math.exp %126 : vector<2x128xf32>
    %cst_50 = arith.constant 1.000000e+00 : f32
    %128 = vector.broadcast %cst_50 : f32 to vector<2x128xf32>
    %129 = arith.addf %128, %127 : vector<2x128xf32>
    %130 = arith.divf %128, %129 : vector<2x128xf32>
    %131 = vector.extract_strided_slice %107 {offsets = [0, 256], sizes = [2, 128], strides = [1, 1]} : vector<2x384xf32> to vector<2x128xf32>
    %132 = vector.extract_strided_slice %114 {offsets = [0, 256], sizes = [2, 128], strides = [1, 1]} : vector<2x384xf32> to vector<2x128xf32>
    %133 = arith.mulf %122, %132 : vector<2x128xf32>
    %134 = arith.addf %131, %133 : vector<2x128xf32>
    %135 = math.tanh %134 : vector<2x128xf32>
    %cst_51 = arith.constant 1.000000e+00 : f32
    %136 = vector.broadcast %cst_51 : f32 to vector<2x128xf32>
    %137 = arith.subf %136, %130 : vector<2x128xf32>
    %138 = arith.mulf %137, %135 : vector<2x128xf32>
    %139 = arith.mulf %130, %105 : vector<2x128xf32>
    %140 = arith.addf %138, %139 : vector<2x128xf32>
    %c6_52 = arith.constant 6 : index
    %c0_53 = arith.constant 0 : index
    %141 = vector.load %arg9[%c6_52, %c0_53] : memref<16x128xf32, #tpu.memory_space<vmem>>, vector<2x128xf32>
    tpu.vector_store %arg9[%c6_52, %c0_53], %140 {strides = array<i32>} : memref<16x128xf32, #tpu.memory_space<vmem>>, vector<2x128xf32>,
    %c8 = arith.constant 8 : index
    %c0_54 = arith.constant 0 : index
    %142 = vector.load %arg1[%c8, %c0_54] : memref<16x384xf32, #tpu.memory_space<vmem>>, vector<2x384xf32>
    %c0_55 = arith.constant 0 : index
    %c0_56 = arith.constant 0 : index
    %c0_57 = arith.constant 0 : index
    %143 = vector.load %arg3[%c0_55, %c0_56, %c0_57] : memref<2x128x384xf32, #tpu.memory_space<vmem>>, vector<1x128x384xf32>
    %144 = vector.shape_cast %143 : vector<1x128x384xf32> to vector<128x384xf32>
    %cst_58 = arith.constant dense<0.000000e+00> : vector<2x384xf32>
    %145 = tpu.matmul %140, %144, %cst_58 {dimension_numbers = #tpu.dot_dimension_numbers<[1], [0], [0], [1], [0, 0, 1, 1], [], []>} : vector<2x128xf32>, vector<128x384xf32>, vector<2x384xf32> -> vector<2x384xf32>
    %c0_59 = arith.constant 0 : index
    %c0_60 = arith.constant 0 : index
    %c0_61 = arith.constant 0 : index
    %146 = vector.load %arg4[%c0_59, %c0_60, %c0_61] : memref<2x1x384xf32, #tpu.memory_space<vmem>>, vector<1x1x384xf32>
    %147 = vector.shape_cast %146 : vector<1x1x384xf32> to vector<1x384xf32>
    %148 = vector.broadcast %147 : vector<1x384xf32> to vector<2x384xf32>
    %149 = arith.addf %145, %148 : vector<2x384xf32>
    %150 = vector.extract_strided_slice %142 {offsets = [0, 0], sizes = [2, 128], strides = [1, 1]} : vector<2x384xf32> to vector<2x128xf32>
    %151 = vector.extract_strided_slice %149 {offsets = [0, 0], sizes = [2, 128], strides = [1, 1]} : vector<2x384xf32> to vector<2x128xf32>
    %152 = arith.addf %150, %151 : vector<2x128xf32>
    %153 = arith.negf %152 : vector<2x128xf32>
    %154 = math.exp %153 : vector<2x128xf32>
    %cst_62 = arith.constant 1.000000e+00 : f32
    %155 = vector.broadcast %cst_62 : f32 to vector<2x128xf32>
    %156 = arith.addf %155, %154 : vector<2x128xf32>
    %157 = arith.divf %155, %156 : vector<2x128xf32>
    %158 = vector.extract_strided_slice %142 {offsets = [0, 128], sizes = [2, 128], strides = [1, 1]} : vector<2x384xf32> to vector<2x128xf32>
    %159 = vector.extract_strided_slice %149 {offsets = [0, 128], sizes = [2, 128], strides = [1, 1]} : vector<2x384xf32> to vector<2x128xf32>
    %160 = arith.addf %158, %159 : vector<2x128xf32>
    %161 = arith.negf %160 : vector<2x128xf32>
    %162 = math.exp %161 : vector<2x128xf32>
    %cst_63 = arith.constant 1.000000e+00 : f32
    %163 = vector.broadcast %cst_63 : f32 to vector<2x128xf32>
    %164 = arith.addf %163, %162 : vector<2x128xf32>
    %165 = arith.divf %163, %164 : vector<2x128xf32>
    %166 = vector.extract_strided_slice %142 {offsets = [0, 256], sizes = [2, 128], strides = [1, 1]} : vector<2x384xf32> to vector<2x128xf32>
    %167 = vector.extract_strided_slice %149 {offsets = [0, 256], sizes = [2, 128], strides = [1, 1]} : vector<2x384xf32> to vector<2x128xf32>
    %168 = arith.mulf %157, %167 : vector<2x128xf32>
    %169 = arith.addf %166, %168 : vector<2x128xf32>
    %170 = math.tanh %169 : vector<2x128xf32>
    %cst_64 = arith.constant 1.000000e+00 : f32
    %171 = vector.broadcast %cst_64 : f32 to vector<2x128xf32>
    %172 = arith.subf %171, %165 : vector<2x128xf32>
    %173 = arith.mulf %172, %170 : vector<2x128xf32>
    %174 = arith.mulf %165, %140 : vector<2x128xf32>
    %175 = arith.addf %173, %174 : vector<2x128xf32>
    %c8_65 = arith.constant 8 : index
    %c0_66 = arith.constant 0 : index
    %176 = vector.load %arg9[%c8_65, %c0_66] : memref<16x128xf32, #tpu.memory_space<vmem>>, vector<2x128xf32>
    tpu.vector_store %arg9[%c8_65, %c0_66], %175 {strides = array<i32>} : memref<16x128xf32, #tpu.memory_space<vmem>>, vector<2x128xf32>,
    %c10 = arith.constant 10 : index
    %c0_67 = arith.constant 0 : index
    %177 = vector.load %arg1[%c10, %c0_67] : memref<16x384xf32, #tpu.memory_space<vmem>>, vector<2x384xf32>
    %c0_68 = arith.constant 0 : index
    %c0_69 = arith.constant 0 : index
    %c0_70 = arith.constant 0 : index
    %178 = vector.load %arg3[%c0_68, %c0_69, %c0_70] : memref<2x128x384xf32, #tpu.memory_space<vmem>>, vector<1x128x384xf32>
    %179 = vector.shape_cast %178 : vector<1x128x384xf32> to vector<128x384xf32>
    %cst_71 = arith.constant dense<0.000000e+00> : vector<2x384xf32>
    %180 = tpu.matmul %175, %179, %cst_71 {dimension_numbers = #tpu.dot_dimension_numbers<[1], [0], [0], [1], [0, 0, 1, 1], [], []>} : vector<2x128xf32>, vector<128x384xf32>, vector<2x384xf32> -> vector<2x384xf32>
    %c0_72 = arith.constant 0 : index
    %c0_73 = arith.constant 0 : index
    %c0_74 = arith.constant 0 : index
    %181 = vector.load %arg4[%c0_72, %c0_73, %c0_74] : memref<2x1x384xf32, #tpu.memory_space<vmem>>, vector<1x1x384xf32>
    %182 = vector.shape_cast %181 : vector<1x1x384xf32> to vector<1x384xf32>
    %183 = vector.broadcast %182 : vector<1x384xf32> to vector<2x384xf32>
    %184 = arith.addf %180, %183 : vector<2x384xf32>
    %185 = vector.extract_strided_slice %177 {offsets = [0, 0], sizes = [2, 128], strides = [1, 1]} : vector<2x384xf32> to vector<2x128xf32>
    %186 = vector.extract_strided_slice %184 {offsets = [0, 0], sizes = [2, 128], strides = [1, 1]} : vector<2x384xf32> to vector<2x128xf32>
    %187 = arith.addf %185, %186 : vector<2x128xf32>
    %188 = arith.negf %187 : vector<2x128xf32>
    %189 = math.exp %188 : vector<2x128xf32>
    %cst_75 = arith.constant 1.000000e+00 : f32
    %190 = vector.broadcast %cst_75 : f32 to vector<2x128xf32>
    %191 = arith.addf %190, %189 : vector<2x128xf32>
    %192 = arith.divf %190, %191 : vector<2x128xf32>
    %193 = vector.extract_strided_slice %177 {offsets = [0, 128], sizes = [2, 128], strides = [1, 1]} : vector<2x384xf32> to vector<2x128xf32>
    %194 = vector.extract_strided_slice %184 {offsets = [0, 128], sizes = [2, 128], strides = [1, 1]} : vector<2x384xf32> to vector<2x128xf32>
    %195 = arith.addf %193, %194 : vector<2x128xf32>
    %196 = arith.negf %195 : vector<2x128xf32>
    %197 = math.exp %196 : vector<2x128xf32>
    %cst_76 = arith.constant 1.000000e+00 : f32
    %198 = vector.broadcast %cst_76 : f32 to vector<2x128xf32>
    %199 = arith.addf %198, %197 : vector<2x128xf32>
    %200 = arith.divf %198, %199 : vector<2x128xf32>
    %201 = vector.extract_strided_slice %177 {offsets = [0, 256], sizes = [2, 128], strides = [1, 1]} : vector<2x384xf32> to vector<2x128xf32>
    %202 = vector.extract_strided_slice %184 {offsets = [0, 256], sizes = [2, 128], strides = [1, 1]} : vector<2x384xf32> to vector<2x128xf32>
    %203 = arith.mulf %192, %202 : vector<2x128xf32>
    %204 = arith.addf %201, %203 : vector<2x128xf32>
    %205 = math.tanh %204 : vector<2x128xf32>
    %cst_77 = arith.constant 1.000000e+00 : f32
    %206 = vector.broadcast %cst_77 : f32 to vector<2x128xf32>
    %207 = arith.subf %206, %200 : vector<2x128xf32>
    %208 = arith.mulf %207, %205 : vector<2x128xf32>
    %209 = arith.mulf %200, %175 : vector<2x128xf32>
    %210 = arith.addf %208, %209 : vector<2x128xf32>
    %c10_78 = arith.constant 10 : index
    %c0_79 = arith.constant 0 : index
    %211 = vector.load %arg9[%c10_78, %c0_79] : memref<16x128xf32, #tpu.memory_space<vmem>>, vector<2x128xf32>
    tpu.vector_store %arg9[%c10_78, %c0_79], %210 {strides = array<i32>} : memref<16x128xf32, #tpu.memory_space<vmem>>, vector<2x128xf32>,
    %c12 = arith.constant 12 : index
    %c0_80 = arith.constant 0 : index
    %212 = vector.load %arg1[%c12, %c0_80] : memref<16x384xf32, #tpu.memory_space<vmem>>, vector<2x384xf32>
    %c0_81 = arith.constant 0 : index
    %c0_82 = arith.constant 0 : index
    %c0_83 = arith.constant 0 : index
    %213 = vector.load %arg3[%c0_81, %c0_82, %c0_83] : memref<2x128x384xf32, #tpu.memory_space<vmem>>, vector<1x128x384xf32>
    %214 = vector.shape_cast %213 : vector<1x128x384xf32> to vector<128x384xf32>
    %cst_84 = arith.constant dense<0.000000e+00> : vector<2x384xf32>
    %215 = tpu.matmul %210, %214, %cst_84 {dimension_numbers = #tpu.dot_dimension_numbers<[1], [0], [0], [1], [0, 0, 1, 1], [], []>} : vector<2x128xf32>, vector<128x384xf32>, vector<2x384xf32> -> vector<2x384xf32>
    %c0_85 = arith.constant 0 : index
    %c0_86 = arith.constant 0 : index
    %c0_87 = arith.constant 0 : index
    %216 = vector.load %arg4[%c0_85, %c0_86, %c0_87] : memref<2x1x384xf32, #tpu.memory_space<vmem>>, vector<1x1x384xf32>
    %217 = vector.shape_cast %216 : vector<1x1x384xf32> to vector<1x384xf32>
    %218 = vector.broadcast %217 : vector<1x384xf32> to vector<2x384xf32>
    %219 = arith.addf %215, %218 : vector<2x384xf32>
    %220 = vector.extract_strided_slice %212 {offsets = [0, 0], sizes = [2, 128], strides = [1, 1]} : vector<2x384xf32> to vector<2x128xf32>
    %221 = vector.extract_strided_slice %219 {offsets = [0, 0], sizes = [2, 128], strides = [1, 1]} : vector<2x384xf32> to vector<2x128xf32>
    %222 = arith.addf %220, %221 : vector<2x128xf32>
    %223 = arith.negf %222 : vector<2x128xf32>
    %224 = math.exp %223 : vector<2x128xf32>
    %cst_88 = arith.constant 1.000000e+00 : f32
    %225 = vector.broadcast %cst_88 : f32 to vector<2x128xf32>
    %226 = arith.addf %225, %224 : vector<2x128xf32>
    %227 = arith.divf %225, %226 : vector<2x128xf32>
    %228 = vector.extract_strided_slice %212 {offsets = [0, 128], sizes = [2, 128], strides = [1, 1]} : vector<2x384xf32> to vector<2x128xf32>
    %229 = vector.extract_strided_slice %219 {offsets = [0, 128], sizes = [2, 128], strides = [1, 1]} : vector<2x384xf32> to vector<2x128xf32>
    %230 = arith.addf %228, %229 : vector<2x128xf32>
    %231 = arith.negf %230 : vector<2x128xf32>
    %232 = math.exp %231 : vector<2x128xf32>
    %cst_89 = arith.constant 1.000000e+00 : f32
    %233 = vector.broadcast %cst_89 : f32 to vector<2x128xf32>
    %234 = arith.addf %233, %232 : vector<2x128xf32>
    %235 = arith.divf %233, %234 : vector<2x128xf32>
    %236 = vector.extract_strided_slice %212 {offsets = [0, 256], sizes = [2, 128], strides = [1, 1]} : vector<2x384xf32> to vector<2x128xf32>
    %237 = vector.extract_strided_slice %219 {offsets = [0, 256], sizes = [2, 128], strides = [1, 1]} : vector<2x384xf32> to vector<2x128xf32>
    %238 = arith.mulf %227, %237 : vector<2x128xf32>
    %239 = arith.addf %236, %238 : vector<2x128xf32>
    %240 = math.tanh %239 : vector<2x128xf32>
    %cst_90 = arith.constant 1.000000e+00 : f32
    %241 = vector.broadcast %cst_90 : f32 to vector<2x128xf32>
    %242 = arith.subf %241, %235 : vector<2x128xf32>
    %243 = arith.mulf %242, %240 : vector<2x128xf32>
    %244 = arith.mulf %235, %210 : vector<2x128xf32>
    %245 = arith.addf %243, %244 : vector<2x128xf32>
    %c12_91 = arith.constant 12 : index
    %c0_92 = arith.constant 0 : index
    %246 = vector.load %arg9[%c12_91, %c0_92] : memref<16x128xf32, #tpu.memory_space<vmem>>, vector<2x128xf32>
    tpu.vector_store %arg9[%c12_91, %c0_92], %245 {strides = array<i32>} : memref<16x128xf32, #tpu.memory_space<vmem>>, vector<2x128xf32>,
    %c14 = arith.constant 14 : index
    %c0_93 = arith.constant 0 : index
    %247 = vector.load %arg1[%c14, %c0_93] : memref<16x384xf32, #tpu.memory_space<vmem>>, vector<2x384xf32>
    %c0_94 = arith.constant 0 : index
    %c0_95 = arith.constant 0 : index
    %c0_96 = arith.constant 0 : index
    %248 = vector.load %arg3[%c0_94, %c0_95, %c0_96] : memref<2x128x384xf32, #tpu.memory_space<vmem>>, vector<1x128x384xf32>
    %249 = vector.shape_cast %248 : vector<1x128x384xf32> to vector<128x384xf32>
    %cst_97 = arith.constant dense<0.000000e+00> : vector<2x384xf32>
    %250 = tpu.matmul %245, %249, %cst_97 {dimension_numbers = #tpu.dot_dimension_numbers<[1], [0], [0], [1], [0, 0, 1, 1], [], []>} : vector<2x128xf32>, vector<128x384xf32>, vector<2x384xf32> -> vector<2x384xf32>
    %c0_98 = arith.constant 0 : index
    %c0_99 = arith.constant 0 : index
    %c0_100 = arith.constant 0 : index
    %251 = vector.load %arg4[%c0_98, %c0_99, %c0_100] : memref<2x1x384xf32, #tpu.memory_space<vmem>>, vector<1x1x384xf32>
    %252 = vector.shape_cast %251 : vector<1x1x384xf32> to vector<1x384xf32>
    %253 = vector.broadcast %252 : vector<1x384xf32> to vector<2x384xf32>
    %254 = arith.addf %250, %253 : vector<2x384xf32>
    %255 = vector.extract_strided_slice %247 {offsets = [0, 0], sizes = [2, 128], strides = [1, 1]} : vector<2x384xf32> to vector<2x128xf32>
    %256 = vector.extract_strided_slice %254 {offsets = [0, 0], sizes = [2, 128], strides = [1, 1]} : vector<2x384xf32> to vector<2x128xf32>
    %257 = arith.addf %255, %256 : vector<2x128xf32>
    %258 = arith.negf %257 : vector<2x128xf32>
    %259 = math.exp %258 : vector<2x128xf32>
    %cst_101 = arith.constant 1.000000e+00 : f32
    %260 = vector.broadcast %cst_101 : f32 to vector<2x128xf32>
    %261 = arith.addf %260, %259 : vector<2x128xf32>
    %262 = arith.divf %260, %261 : vector<2x128xf32>
    %263 = vector.extract_strided_slice %247 {offsets = [0, 128], sizes = [2, 128], strides = [1, 1]} : vector<2x384xf32> to vector<2x128xf32>
    %264 = vector.extract_strided_slice %254 {offsets = [0, 128], sizes = [2, 128], strides = [1, 1]} : vector<2x384xf32> to vector<2x128xf32>
    %265 = arith.addf %263, %264 : vector<2x128xf32>
    %266 = arith.negf %265 : vector<2x128xf32>
    %267 = math.exp %266 : vector<2x128xf32>
    %cst_102 = arith.constant 1.000000e+00 : f32
    %268 = vector.broadcast %cst_102 : f32 to vector<2x128xf32>
    %269 = arith.addf %268, %267 : vector<2x128xf32>
    %270 = arith.divf %268, %269 : vector<2x128xf32>
    %271 = vector.extract_strided_slice %247 {offsets = [0, 256], sizes = [2, 128], strides = [1, 1]} : vector<2x384xf32> to vector<2x128xf32>
    %272 = vector.extract_strided_slice %254 {offsets = [0, 256], sizes = [2, 128], strides = [1, 1]} : vector<2x384xf32> to vector<2x128xf32>
    %273 = arith.mulf %262, %272 : vector<2x128xf32>
    %274 = arith.addf %271, %273 : vector<2x128xf32>
    %275 = math.tanh %274 : vector<2x128xf32>
    %cst_103 = arith.constant 1.000000e+00 : f32
    %276 = vector.broadcast %cst_103 : f32 to vector<2x128xf32>
    %277 = arith.subf %276, %270 : vector<2x128xf32>
    %278 = arith.mulf %277, %275 : vector<2x128xf32>
    %279 = arith.mulf %270, %245 : vector<2x128xf32>
    %280 = arith.addf %278, %279 : vector<2x128xf32>
    %c14_104 = arith.constant 14 : index
    %c0_105 = arith.constant 0 : index
    %281 = vector.load %arg9[%c14_104, %c0_105] : memref<16x128xf32, #tpu.memory_space<vmem>>, vector<2x128xf32>
    tpu.vector_store %arg9[%c14_104, %c0_105], %280 {strides = array<i32>} : memref<16x128xf32, #tpu.memory_space<vmem>>, vector<2x128xf32>,
    %c0_106 = arith.constant 0 : index
    %c0_107 = arith.constant 0 : index
    %c0_108 = arith.constant 0 : index
    %282 = vector.load %arg8[%c0_106, %c0_107, %c0_108] : memref<2x2x128xf32, #tpu.memory_space<vmem>>, vector<1x2x128xf32>
    %283 = vector.shape_cast %282 : vector<1x2x128xf32> to vector<2x128xf32>
    %284 = vector.shape_cast %280 : vector<2x128xf32> to vector<1x2x128xf32>
    tpu.vector_store %arg8[%c0_106, %c0_107, %c0_108], %284 {strides = array<i32>} : memref<2x2x128xf32, #tpu.memory_space<vmem>>, vector<1x2x128xf32>,
    %c0_109 = arith.constant 0 : index
    %c0_110 = arith.constant 0 : index
    %c0_111 = arith.constant 0 : index
    %285 = vector.load %arg5[%c0_109, %c0_110, %c0_111] : memref<1x128x384xf32, #tpu.memory_space<vmem>>, vector<1x128x384xf32>
    %286 = vector.shape_cast %285 : vector<1x128x384xf32> to vector<128x384xf32>
    %c0_112 = arith.constant 0 : index
    %c0_113 = arith.constant 0 : index
    %287 = vector.load %arg9[%c0_112, %c0_113] : memref<16x128xf32, #tpu.memory_space<vmem>>, vector<16x128xf32>
    %cst_114 = arith.constant dense<0.000000e+00> : vector<16x384xf32>
    %288 = tpu.matmul %287, %286, %cst_114 {dimension_numbers = #tpu.dot_dimension_numbers<[1], [0], [0], [1], [0, 0, 1, 1], [], []>} : vector<16x128xf32>, vector<128x384xf32>, vector<16x384xf32> -> vector<16x384xf32>
    %c0_115 = arith.constant 0 : index
    %c0_116 = arith.constant 0 : index
    %c0_117 = arith.constant 0 : index
    %289 = vector.load %arg6[%c0_115, %c0_116, %c0_117] : memref<1x1x384xf32, #tpu.memory_space<vmem>>, vector<1x1x384xf32>
    %290 = vector.shape_cast %289 : vector<1x1x384xf32> to vector<1x384xf32>
    %291 = vector.broadcast %290 : vector<1x384xf32> to vector<16x384xf32>
    %292 = arith.addf %288, %291 : vector<16x384xf32>
    %c0_118 = arith.constant 0 : index
    %c0_119 = arith.constant 0 : index
    %293 = vector.load %arg10[%c0_118, %c0_119] : memref<16x384xf32, #tpu.memory_space<vmem>>, vector<16x384xf32>
    tpu.vector_store %arg10[%c0_118, %c0_119], %292 {strides = array<i32>} : memref<16x384xf32, #tpu.memory_space<vmem>>, vector<16x384xf32>,
    %c1 = arith.constant 1 : index
    %c0_120 = arith.constant 0 : index
    %c0_121 = arith.constant 0 : index
    %294 = vector.load %arg2[%c1, %c0_120, %c0_121] : memref<2x2x128xf32, #tpu.memory_space<vmem>>, vector<1x2x128xf32>
    %295 = vector.shape_cast %294 : vector<1x2x128xf32> to vector<2x128xf32>
    %c0_122 = arith.constant 0 : index
    %c0_123 = arith.constant 0 : index
    %296 = vector.load %arg10[%c0_122, %c0_123] : memref<16x384xf32, #tpu.memory_space<vmem>>, vector<2x384xf32>
    %c1_124 = arith.constant 1 : index
    %c0_125 = arith.constant 0 : index
    %c0_126 = arith.constant 0 : index
    %297 = vector.load %arg3[%c1_124, %c0_125, %c0_126] : memref<2x128x384xf32, #tpu.memory_space<vmem>>, vector<1x128x384xf32>
    %298 = vector.shape_cast %297 : vector<1x128x384xf32> to vector<128x384xf32>
    %cst_127 = arith.constant dense<0.000000e+00> : vector<2x384xf32>
    %299 = tpu.matmul %295, %298, %cst_127 {dimension_numbers = #tpu.dot_dimension_numbers<[1], [0], [0], [1], [0, 0, 1, 1], [], []>} : vector<2x128xf32>, vector<128x384xf32>, vector<2x384xf32> -> vector<2x384xf32>
    %c1_128 = arith.constant 1 : index
    %c0_129 = arith.constant 0 : index
    %c0_130 = arith.constant 0 : index
    %300 = vector.load %arg4[%c1_128, %c0_129, %c0_130] : memref<2x1x384xf32, #tpu.memory_space<vmem>>, vector<1x1x384xf32>
    %301 = vector.shape_cast %300 : vector<1x1x384xf32> to vector<1x384xf32>
    %302 = vector.broadcast %301 : vector<1x384xf32> to vector<2x384xf32>
    %303 = arith.addf %299, %302 : vector<2x384xf32>
    %304 = vector.extract_strided_slice %296 {offsets = [0, 0], sizes = [2, 128], strides = [1, 1]} : vector<2x384xf32> to vector<2x128xf32>
    %305 = vector.extract_strided_slice %303 {offsets = [0, 0], sizes = [2, 128], strides = [1, 1]} : vector<2x384xf32> to vector<2x128xf32>
    %306 = arith.addf %304, %305 : vector<2x128xf32>
    %307 = arith.negf %306 : vector<2x128xf32>
    %308 = math.exp %307 : vector<2x128xf32>
    %cst_131 = arith.constant 1.000000e+00 : f32
    %309 = vector.broadcast %cst_131 : f32 to vector<2x128xf32>
    %310 = arith.addf %309, %308 : vector<2x128xf32>
    %311 = arith.divf %309, %310 : vector<2x128xf32>
    %312 = vector.extract_strided_slice %296 {offsets = [0, 128], sizes = [2, 128], strides = [1, 1]} : vector<2x384xf32> to vector<2x128xf32>
    %313 = vector.extract_strided_slice %303 {offsets = [0, 128], sizes = [2, 128], strides = [1, 1]} : vector<2x384xf32> to vector<2x128xf32>
    %314 = arith.addf %312, %313 : vector<2x128xf32>
    %315 = arith.negf %314 : vector<2x128xf32>
    %316 = math.exp %315 : vector<2x128xf32>
    %cst_132 = arith.constant 1.000000e+00 : f32
    %317 = vector.broadcast %cst_132 : f32 to vector<2x128xf32>
    %318 = arith.addf %317, %316 : vector<2x128xf32>
    %319 = arith.divf %317, %318 : vector<2x128xf32>
    %320 = vector.extract_strided_slice %296 {offsets = [0, 256], sizes = [2, 128], strides = [1, 1]} : vector<2x384xf32> to vector<2x128xf32>
    %321 = vector.extract_strided_slice %303 {offsets = [0, 256], sizes = [2, 128], strides = [1, 1]} : vector<2x384xf32> to vector<2x128xf32>
    %322 = arith.mulf %311, %321 : vector<2x128xf32>
    %323 = arith.addf %320, %322 : vector<2x128xf32>
    %324 = math.tanh %323 : vector<2x128xf32>
    %cst_133 = arith.constant 1.000000e+00 : f32
    %325 = vector.broadcast %cst_133 : f32 to vector<2x128xf32>
    %326 = arith.subf %325, %319 : vector<2x128xf32>
    %327 = arith.mulf %326, %324 : vector<2x128xf32>
    %328 = arith.mulf %319, %295 : vector<2x128xf32>
    %329 = arith.addf %327, %328 : vector<2x128xf32>
    %c0_134 = arith.constant 0 : index
    %c0_135 = arith.constant 0 : index
    %330 = vector.load %arg7[%c0_134, %c0_135] : memref<2x1024xf32, #tpu.memory_space<vmem>>, vector<2x128xf32>
    tpu.vector_store %arg7[%c0_134, %c0_135], %329 {strides = array<i32>} : memref<2x1024xf32, #tpu.memory_space<vmem>>, vector<2x128xf32>,
    %c2_136 = arith.constant 2 : index
    %c0_137 = arith.constant 0 : index
    %331 = vector.load %arg10[%c2_136, %c0_137] : memref<16x384xf32, #tpu.memory_space<vmem>>, vector<2x384xf32>
    %c1_138 = arith.constant 1 : index
    %c0_139 = arith.constant 0 : index
    %c0_140 = arith.constant 0 : index
    %332 = vector.load %arg3[%c1_138, %c0_139, %c0_140] : memref<2x128x384xf32, #tpu.memory_space<vmem>>, vector<1x128x384xf32>
    %333 = vector.shape_cast %332 : vector<1x128x384xf32> to vector<128x384xf32>
    %cst_141 = arith.constant dense<0.000000e+00> : vector<2x384xf32>
    %334 = tpu.matmul %329, %333, %cst_141 {dimension_numbers = #tpu.dot_dimension_numbers<[1], [0], [0], [1], [0, 0, 1, 1], [], []>} : vector<2x128xf32>, vector<128x384xf32>, vector<2x384xf32> -> vector<2x384xf32>
    %c1_142 = arith.constant 1 : index
    %c0_143 = arith.constant 0 : index
    %c0_144 = arith.constant 0 : index
    %335 = vector.load %arg4[%c1_142, %c0_143, %c0_144] : memref<2x1x384xf32, #tpu.memory_space<vmem>>, vector<1x1x384xf32>
    %336 = vector.shape_cast %335 : vector<1x1x384xf32> to vector<1x384xf32>
    %337 = vector.broadcast %336 : vector<1x384xf32> to vector<2x384xf32>
    %338 = arith.addf %334, %337 : vector<2x384xf32>
    %339 = vector.extract_strided_slice %331 {offsets = [0, 0], sizes = [2, 128], strides = [1, 1]} : vector<2x384xf32> to vector<2x128xf32>
    %340 = vector.extract_strided_slice %338 {offsets = [0, 0], sizes = [2, 128], strides = [1, 1]} : vector<2x384xf32> to vector<2x128xf32>
    %341 = arith.addf %339, %340 : vector<2x128xf32>
    %342 = arith.negf %341 : vector<2x128xf32>
    %343 = math.exp %342 : vector<2x128xf32>
    %cst_145 = arith.constant 1.000000e+00 : f32
    %344 = vector.broadcast %cst_145 : f32 to vector<2x128xf32>
    %345 = arith.addf %344, %343 : vector<2x128xf32>
    %346 = arith.divf %344, %345 : vector<2x128xf32>
    %347 = vector.extract_strided_slice %331 {offsets = [0, 128], sizes = [2, 128], strides = [1, 1]} : vector<2x384xf32> to vector<2x128xf32>
    %348 = vector.extract_strided_slice %338 {offsets = [0, 128], sizes = [2, 128], strides = [1, 1]} : vector<2x384xf32> to vector<2x128xf32>
    %349 = arith.addf %347, %348 : vector<2x128xf32>
    %350 = arith.negf %349 : vector<2x128xf32>
    %351 = math.exp %350 : vector<2x128xf32>
    %cst_146 = arith.constant 1.000000e+00 : f32
    %352 = vector.broadcast %cst_146 : f32 to vector<2x128xf32>
    %353 = arith.addf %352, %351 : vector<2x128xf32>
    %354 = arith.divf %352, %353 : vector<2x128xf32>
    %355 = vector.extract_strided_slice %331 {offsets = [0, 256], sizes = [2, 128], strides = [1, 1]} : vector<2x384xf32> to vector<2x128xf32>
    %356 = vector.extract_strided_slice %338 {offsets = [0, 256], sizes = [2, 128], strides = [1, 1]} : vector<2x384xf32> to vector<2x128xf32>
    %357 = arith.mulf %346, %356 : vector<2x128xf32>
    %358 = arith.addf %355, %357 : vector<2x128xf32>
    %359 = math.tanh %358 : vector<2x128xf32>
    %cst_147 = arith.constant 1.000000e+00 : f32
    %360 = vector.broadcast %cst_147 : f32 to vector<2x128xf32>
    %361 = arith.subf %360, %354 : vector<2x128xf32>
    %362 = arith.mulf %361, %359 : vector<2x128xf32>
    %363 = arith.mulf %354, %329 : vector<2x128xf32>
    %364 = arith.addf %362, %363 : vector<2x128xf32>
    %c0_148 = arith.constant 0 : index
    %c128 = arith.constant 128 : index
    %365 = vector.load %arg7[%c0_148, %c128] : memref<2x1024xf32, #tpu.memory_space<vmem>>, vector<2x128xf32>
    tpu.vector_store %arg7[%c0_148, %c128], %364 {strides = array<i32>} : memref<2x1024xf32, #tpu.memory_space<vmem>>, vector<2x128xf32>,
    %c4_149 = arith.constant 4 : index
    %c0_150 = arith.constant 0 : index
    %366 = vector.load %arg10[%c4_149, %c0_150] : memref<16x384xf32, #tpu.memory_space<vmem>>, vector<2x384xf32>
    %c1_151 = arith.constant 1 : index
    %c0_152 = arith.constant 0 : index
    %c0_153 = arith.constant 0 : index
    %367 = vector.load %arg3[%c1_151, %c0_152, %c0_153] : memref<2x128x384xf32, #tpu.memory_space<vmem>>, vector<1x128x384xf32>
    %368 = vector.shape_cast %367 : vector<1x128x384xf32> to vector<128x384xf32>
    %cst_154 = arith.constant dense<0.000000e+00> : vector<2x384xf32>
    %369 = tpu.matmul %364, %368, %cst_154 {dimension_numbers = #tpu.dot_dimension_numbers<[1], [0], [0], [1], [0, 0, 1, 1], [], []>} : vector<2x128xf32>, vector<128x384xf32>, vector<2x384xf32> -> vector<2x384xf32>
    %c1_155 = arith.constant 1 : index
    %c0_156 = arith.constant 0 : index
    %c0_157 = arith.constant 0 : index
    %370 = vector.load %arg4[%c1_155, %c0_156, %c0_157] : memref<2x1x384xf32, #tpu.memory_space<vmem>>, vector<1x1x384xf32>
    %371 = vector.shape_cast %370 : vector<1x1x384xf32> to vector<1x384xf32>
    %372 = vector.broadcast %371 : vector<1x384xf32> to vector<2x384xf32>
    %373 = arith.addf %369, %372 : vector<2x384xf32>
    %374 = vector.extract_strided_slice %366 {offsets = [0, 0], sizes = [2, 128], strides = [1, 1]} : vector<2x384xf32> to vector<2x128xf32>
    %375 = vector.extract_strided_slice %373 {offsets = [0, 0], sizes = [2, 128], strides = [1, 1]} : vector<2x384xf32> to vector<2x128xf32>
    %376 = arith.addf %374, %375 : vector<2x128xf32>
    %377 = arith.negf %376 : vector<2x128xf32>
    %378 = math.exp %377 : vector<2x128xf32>
    %cst_158 = arith.constant 1.000000e+00 : f32
    %379 = vector.broadcast %cst_158 : f32 to vector<2x128xf32>
    %380 = arith.addf %379, %378 : vector<2x128xf32>
    %381 = arith.divf %379, %380 : vector<2x128xf32>
    %382 = vector.extract_strided_slice %366 {offsets = [0, 128], sizes = [2, 128], strides = [1, 1]} : vector<2x384xf32> to vector<2x128xf32>
    %383 = vector.extract_strided_slice %373 {offsets = [0, 128], sizes = [2, 128], strides = [1, 1]} : vector<2x384xf32> to vector<2x128xf32>
    %384 = arith.addf %382, %383 : vector<2x128xf32>
    %385 = arith.negf %384 : vector<2x128xf32>
    %386 = math.exp %385 : vector<2x128xf32>
    %cst_159 = arith.constant 1.000000e+00 : f32
    %387 = vector.broadcast %cst_159 : f32 to vector<2x128xf32>
    %388 = arith.addf %387, %386 : vector<2x128xf32>
    %389 = arith.divf %387, %388 : vector<2x128xf32>
    %390 = vector.extract_strided_slice %366 {offsets = [0, 256], sizes = [2, 128], strides = [1, 1]} : vector<2x384xf32> to vector<2x128xf32>
    %391 = vector.extract_strided_slice %373 {offsets = [0, 256], sizes = [2, 128], strides = [1, 1]} : vector<2x384xf32> to vector<2x128xf32>
    %392 = arith.mulf %381, %391 : vector<2x128xf32>
    %393 = arith.addf %390, %392 : vector<2x128xf32>
    %394 = math.tanh %393 : vector<2x128xf32>
    %cst_160 = arith.constant 1.000000e+00 : f32
    %395 = vector.broadcast %cst_160 : f32 to vector<2x128xf32>
    %396 = arith.subf %395, %389 : vector<2x128xf32>
    %397 = arith.mulf %396, %394 : vector<2x128xf32>
    %398 = arith.mulf %389, %364 : vector<2x128xf32>
    %399 = arith.addf %397, %398 : vector<2x128xf32>
    %c0_161 = arith.constant 0 : index
    %c256 = arith.constant 256 : index
    %400 = vector.load %arg7[%c0_161, %c256] : memref<2x1024xf32, #tpu.memory_space<vmem>>, vector<2x128xf32>
    tpu.vector_store %arg7[%c0_161, %c256], %399 {strides = array<i32>} : memref<2x1024xf32, #tpu.memory_space<vmem>>, vector<2x128xf32>,
    %c6_162 = arith.constant 6 : index
    %c0_163 = arith.constant 0 : index
    %401 = vector.load %arg10[%c6_162, %c0_163] : memref<16x384xf32, #tpu.memory_space<vmem>>, vector<2x384xf32>
    %c1_164 = arith.constant 1 : index
    %c0_165 = arith.constant 0 : index
    %c0_166 = arith.constant 0 : index
    %402 = vector.load %arg3[%c1_164, %c0_165, %c0_166] : memref<2x128x384xf32, #tpu.memory_space<vmem>>, vector<1x128x384xf32>
    %403 = vector.shape_cast %402 : vector<1x128x384xf32> to vector<128x384xf32>
    %cst_167 = arith.constant dense<0.000000e+00> : vector<2x384xf32>
    %404 = tpu.matmul %399, %403, %cst_167 {dimension_numbers = #tpu.dot_dimension_numbers<[1], [0], [0], [1], [0, 0, 1, 1], [], []>} : vector<2x128xf32>, vector<128x384xf32>, vector<2x384xf32> -> vector<2x384xf32>
    %c1_168 = arith.constant 1 : index
    %c0_169 = arith.constant 0 : index
    %c0_170 = arith.constant 0 : index
    %405 = vector.load %arg4[%c1_168, %c0_169, %c0_170] : memref<2x1x384xf32, #tpu.memory_space<vmem>>, vector<1x1x384xf32>
    %406 = vector.shape_cast %405 : vector<1x1x384xf32> to vector<1x384xf32>
    %407 = vector.broadcast %406 : vector<1x384xf32> to vector<2x384xf32>
    %408 = arith.addf %404, %407 : vector<2x384xf32>
    %409 = vector.extract_strided_slice %401 {offsets = [0, 0], sizes = [2, 128], strides = [1, 1]} : vector<2x384xf32> to vector<2x128xf32>
    %410 = vector.extract_strided_slice %408 {offsets = [0, 0], sizes = [2, 128], strides = [1, 1]} : vector<2x384xf32> to vector<2x128xf32>
    %411 = arith.addf %409, %410 : vector<2x128xf32>
    %412 = arith.negf %411 : vector<2x128xf32>
    %413 = math.exp %412 : vector<2x128xf32>
    %cst_171 = arith.constant 1.000000e+00 : f32
    %414 = vector.broadcast %cst_171 : f32 to vector<2x128xf32>
    %415 = arith.addf %414, %413 : vector<2x128xf32>
    %416 = arith.divf %414, %415 : vector<2x128xf32>
    %417 = vector.extract_strided_slice %401 {offsets = [0, 128], sizes = [2, 128], strides = [1, 1]} : vector<2x384xf32> to vector<2x128xf32>
    %418 = vector.extract_strided_slice %408 {offsets = [0, 128], sizes = [2, 128], strides = [1, 1]} : vector<2x384xf32> to vector<2x128xf32>
    %419 = arith.addf %417, %418 : vector<2x128xf32>
    %420 = arith.negf %419 : vector<2x128xf32>
    %421 = math.exp %420 : vector<2x128xf32>
    %cst_172 = arith.constant 1.000000e+00 : f32
    %422 = vector.broadcast %cst_172 : f32 to vector<2x128xf32>
    %423 = arith.addf %422, %421 : vector<2x128xf32>
    %424 = arith.divf %422, %423 : vector<2x128xf32>
    %425 = vector.extract_strided_slice %401 {offsets = [0, 256], sizes = [2, 128], strides = [1, 1]} : vector<2x384xf32> to vector<2x128xf32>
    %426 = vector.extract_strided_slice %408 {offsets = [0, 256], sizes = [2, 128], strides = [1, 1]} : vector<2x384xf32> to vector<2x128xf32>
    %427 = arith.mulf %416, %426 : vector<2x128xf32>
    %428 = arith.addf %425, %427 : vector<2x128xf32>
    %429 = math.tanh %428 : vector<2x128xf32>
    %cst_173 = arith.constant 1.000000e+00 : f32
    %430 = vector.broadcast %cst_173 : f32 to vector<2x128xf32>
    %431 = arith.subf %430, %424 : vector<2x128xf32>
    %432 = arith.mulf %431, %429 : vector<2x128xf32>
    %433 = arith.mulf %424, %399 : vector<2x128xf32>
    %434 = arith.addf %432, %433 : vector<2x128xf32>
    %c0_174 = arith.constant 0 : index
    %c384 = arith.constant 384 : index
    %435 = vector.load %arg7[%c0_174, %c384] : memref<2x1024xf32, #tpu.memory_space<vmem>>, vector<2x128xf32>
    tpu.vector_store %arg7[%c0_174, %c384], %434 {strides = array<i32>} : memref<2x1024xf32, #tpu.memory_space<vmem>>, vector<2x128xf32>,
    %c8_175 = arith.constant 8 : index
    %c0_176 = arith.constant 0 : index
    %436 = vector.load %arg10[%c8_175, %c0_176] : memref<16x384xf32, #tpu.memory_space<vmem>>, vector<2x384xf32>
    %c1_177 = arith.constant 1 : index
    %c0_178 = arith.constant 0 : index
    %c0_179 = arith.constant 0 : index
    %437 = vector.load %arg3[%c1_177, %c0_178, %c0_179] : memref<2x128x384xf32, #tpu.memory_space<vmem>>, vector<1x128x384xf32>
    %438 = vector.shape_cast %437 : vector<1x128x384xf32> to vector<128x384xf32>
    %cst_180 = arith.constant dense<0.000000e+00> : vector<2x384xf32>
    %439 = tpu.matmul %434, %438, %cst_180 {dimension_numbers = #tpu.dot_dimension_numbers<[1], [0], [0], [1], [0, 0, 1, 1], [], []>} : vector<2x128xf32>, vector<128x384xf32>, vector<2x384xf32> -> vector<2x384xf32>
    %c1_181 = arith.constant 1 : index
    %c0_182 = arith.constant 0 : index
    %c0_183 = arith.constant 0 : index
    %440 = vector.load %arg4[%c1_181, %c0_182, %c0_183] : memref<2x1x384xf32, #tpu.memory_space<vmem>>, vector<1x1x384xf32>
    %441 = vector.shape_cast %440 : vector<1x1x384xf32> to vector<1x384xf32>
    %442 = vector.broadcast %441 : vector<1x384xf32> to vector<2x384xf32>
    %443 = arith.addf %439, %442 : vector<2x384xf32>
    %444 = vector.extract_strided_slice %436 {offsets = [0, 0], sizes = [2, 128], strides = [1, 1]} : vector<2x384xf32> to vector<2x128xf32>
    %445 = vector.extract_strided_slice %443 {offsets = [0, 0], sizes = [2, 128], strides = [1, 1]} : vector<2x384xf32> to vector<2x128xf32>
    %446 = arith.addf %444, %445 : vector<2x128xf32>
    %447 = arith.negf %446 : vector<2x128xf32>
    %448 = math.exp %447 : vector<2x128xf32>
    %cst_184 = arith.constant 1.000000e+00 : f32
    %449 = vector.broadcast %cst_184 : f32 to vector<2x128xf32>
    %450 = arith.addf %449, %448 : vector<2x128xf32>
    %451 = arith.divf %449, %450 : vector<2x128xf32>
    %452 = vector.extract_strided_slice %436 {offsets = [0, 128], sizes = [2, 128], strides = [1, 1]} : vector<2x384xf32> to vector<2x128xf32>
    %453 = vector.extract_strided_slice %443 {offsets = [0, 128], sizes = [2, 128], strides = [1, 1]} : vector<2x384xf32> to vector<2x128xf32>
    %454 = arith.addf %452, %453 : vector<2x128xf32>
    %455 = arith.negf %454 : vector<2x128xf32>
    %456 = math.exp %455 : vector<2x128xf32>
    %cst_185 = arith.constant 1.000000e+00 : f32
    %457 = vector.broadcast %cst_185 : f32 to vector<2x128xf32>
    %458 = arith.addf %457, %456 : vector<2x128xf32>
    %459 = arith.divf %457, %458 : vector<2x128xf32>
    %460 = vector.extract_strided_slice %436 {offsets = [0, 256], sizes = [2, 128], strides = [1, 1]} : vector<2x384xf32> to vector<2x128xf32>
    %461 = vector.extract_strided_slice %443 {offsets = [0, 256], sizes = [2, 128], strides = [1, 1]} : vector<2x384xf32> to vector<2x128xf32>
    %462 = arith.mulf %451, %461 : vector<2x128xf32>
    %463 = arith.addf %460, %462 : vector<2x128xf32>
    %464 = math.tanh %463 : vector<2x128xf32>
    %cst_186 = arith.constant 1.000000e+00 : f32
    %465 = vector.broadcast %cst_186 : f32 to vector<2x128xf32>
    %466 = arith.subf %465, %459 : vector<2x128xf32>
    %467 = arith.mulf %466, %464 : vector<2x128xf32>
    %468 = arith.mulf %459, %434 : vector<2x128xf32>
    %469 = arith.addf %467, %468 : vector<2x128xf32>
    %c0_187 = arith.constant 0 : index
    %c512 = arith.constant 512 : index
    %470 = vector.load %arg7[%c0_187, %c512] : memref<2x1024xf32, #tpu.memory_space<vmem>>, vector<2x128xf32>
    tpu.vector_store %arg7[%c0_187, %c512], %469 {strides = array<i32>} : memref<2x1024xf32, #tpu.memory_space<vmem>>, vector<2x128xf32>,
    %c10_188 = arith.constant 10 : index
    %c0_189 = arith.constant 0 : index
    %471 = vector.load %arg10[%c10_188, %c0_189] : memref<16x384xf32, #tpu.memory_space<vmem>>, vector<2x384xf32>
    %c1_190 = arith.constant 1 : index
    %c0_191 = arith.constant 0 : index
    %c0_192 = arith.constant 0 : index
    %472 = vector.load %arg3[%c1_190, %c0_191, %c0_192] : memref<2x128x384xf32, #tpu.memory_space<vmem>>, vector<1x128x384xf32>
    %473 = vector.shape_cast %472 : vector<1x128x384xf32> to vector<128x384xf32>
    %cst_193 = arith.constant dense<0.000000e+00> : vector<2x384xf32>
    %474 = tpu.matmul %469, %473, %cst_193 {dimension_numbers = #tpu.dot_dimension_numbers<[1], [0], [0], [1], [0, 0, 1, 1], [], []>} : vector<2x128xf32>, vector<128x384xf32>, vector<2x384xf32> -> vector<2x384xf32>
    %c1_194 = arith.constant 1 : index
    %c0_195 = arith.constant 0 : index
    %c0_196 = arith.constant 0 : index
    %475 = vector.load %arg4[%c1_194, %c0_195, %c0_196] : memref<2x1x384xf32, #tpu.memory_space<vmem>>, vector<1x1x384xf32>
    %476 = vector.shape_cast %475 : vector<1x1x384xf32> to vector<1x384xf32>
    %477 = vector.broadcast %476 : vector<1x384xf32> to vector<2x384xf32>
    %478 = arith.addf %474, %477 : vector<2x384xf32>
    %479 = vector.extract_strided_slice %471 {offsets = [0, 0], sizes = [2, 128], strides = [1, 1]} : vector<2x384xf32> to vector<2x128xf32>
    %480 = vector.extract_strided_slice %478 {offsets = [0, 0], sizes = [2, 128], strides = [1, 1]} : vector<2x384xf32> to vector<2x128xf32>
    %481 = arith.addf %479, %480 : vector<2x128xf32>
    %482 = arith.negf %481 : vector<2x128xf32>
    %483 = math.exp %482 : vector<2x128xf32>
    %cst_197 = arith.constant 1.000000e+00 : f32
    %484 = vector.broadcast %cst_197 : f32 to vector<2x128xf32>
    %485 = arith.addf %484, %483 : vector<2x128xf32>
    %486 = arith.divf %484, %485 : vector<2x128xf32>
    %487 = vector.extract_strided_slice %471 {offsets = [0, 128], sizes = [2, 128], strides = [1, 1]} : vector<2x384xf32> to vector<2x128xf32>
    %488 = vector.extract_strided_slice %478 {offsets = [0, 128], sizes = [2, 128], strides = [1, 1]} : vector<2x384xf32> to vector<2x128xf32>
    %489 = arith.addf %487, %488 : vector<2x128xf32>
    %490 = arith.negf %489 : vector<2x128xf32>
    %491 = math.exp %490 : vector<2x128xf32>
    %cst_198 = arith.constant 1.000000e+00 : f32
    %492 = vector.broadcast %cst_198 : f32 to vector<2x128xf32>
    %493 = arith.addf %492, %491 : vector<2x128xf32>
    %494 = arith.divf %492, %493 : vector<2x128xf32>
    %495 = vector.extract_strided_slice %471 {offsets = [0, 256], sizes = [2, 128], strides = [1, 1]} : vector<2x384xf32> to vector<2x128xf32>
    %496 = vector.extract_strided_slice %478 {offsets = [0, 256], sizes = [2, 128], strides = [1, 1]} : vector<2x384xf32> to vector<2x128xf32>
    %497 = arith.mulf %486, %496 : vector<2x128xf32>
    %498 = arith.addf %495, %497 : vector<2x128xf32>
    %499 = math.tanh %498 : vector<2x128xf32>
    %cst_199 = arith.constant 1.000000e+00 : f32
    %500 = vector.broadcast %cst_199 : f32 to vector<2x128xf32>
    %501 = arith.subf %500, %494 : vector<2x128xf32>
    %502 = arith.mulf %501, %499 : vector<2x128xf32>
    %503 = arith.mulf %494, %469 : vector<2x128xf32>
    %504 = arith.addf %502, %503 : vector<2x128xf32>
    %c0_200 = arith.constant 0 : index
    %c640 = arith.constant 640 : index
    %505 = vector.load %arg7[%c0_200, %c640] : memref<2x1024xf32, #tpu.memory_space<vmem>>, vector<2x128xf32>
    tpu.vector_store %arg7[%c0_200, %c640], %504 {strides = array<i32>} : memref<2x1024xf32, #tpu.memory_space<vmem>>, vector<2x128xf32>,
    %c12_201 = arith.constant 12 : index
    %c0_202 = arith.constant 0 : index
    %506 = vector.load %arg10[%c12_201, %c0_202] : memref<16x384xf32, #tpu.memory_space<vmem>>, vector<2x384xf32>
    %c1_203 = arith.constant 1 : index
    %c0_204 = arith.constant 0 : index
    %c0_205 = arith.constant 0 : index
    %507 = vector.load %arg3[%c1_203, %c0_204, %c0_205] : memref<2x128x384xf32, #tpu.memory_space<vmem>>, vector<1x128x384xf32>
    %508 = vector.shape_cast %507 : vector<1x128x384xf32> to vector<128x384xf32>
    %cst_206 = arith.constant dense<0.000000e+00> : vector<2x384xf32>
    %509 = tpu.matmul %504, %508, %cst_206 {dimension_numbers = #tpu.dot_dimension_numbers<[1], [0], [0], [1], [0, 0, 1, 1], [], []>} : vector<2x128xf32>, vector<128x384xf32>, vector<2x384xf32> -> vector<2x384xf32>
    %c1_207 = arith.constant 1 : index
    %c0_208 = arith.constant 0 : index
    %c0_209 = arith.constant 0 : index
    %510 = vector.load %arg4[%c1_207, %c0_208, %c0_209] : memref<2x1x384xf32, #tpu.memory_space<vmem>>, vector<1x1x384xf32>
    %511 = vector.shape_cast %510 : vector<1x1x384xf32> to vector<1x384xf32>
    %512 = vector.broadcast %511 : vector<1x384xf32> to vector<2x384xf32>
    %513 = arith.addf %509, %512 : vector<2x384xf32>
    %514 = vector.extract_strided_slice %506 {offsets = [0, 0], sizes = [2, 128], strides = [1, 1]} : vector<2x384xf32> to vector<2x128xf32>
    %515 = vector.extract_strided_slice %513 {offsets = [0, 0], sizes = [2, 128], strides = [1, 1]} : vector<2x384xf32> to vector<2x128xf32>
    %516 = arith.addf %514, %515 : vector<2x128xf32>
    %517 = arith.negf %516 : vector<2x128xf32>
    %518 = math.exp %517 : vector<2x128xf32>
    %cst_210 = arith.constant 1.000000e+00 : f32
    %519 = vector.broadcast %cst_210 : f32 to vector<2x128xf32>
    %520 = arith.addf %519, %518 : vector<2x128xf32>
    %521 = arith.divf %519, %520 : vector<2x128xf32>
    %522 = vector.extract_strided_slice %506 {offsets = [0, 128], sizes = [2, 128], strides = [1, 1]} : vector<2x384xf32> to vector<2x128xf32>
    %523 = vector.extract_strided_slice %513 {offsets = [0, 128], sizes = [2, 128], strides = [1, 1]} : vector<2x384xf32> to vector<2x128xf32>
    %524 = arith.addf %522, %523 : vector<2x128xf32>
    %525 = arith.negf %524 : vector<2x128xf32>
    %526 = math.exp %525 : vector<2x128xf32>
    %cst_211 = arith.constant 1.000000e+00 : f32
    %527 = vector.broadcast %cst_211 : f32 to vector<2x128xf32>
    %528 = arith.addf %527, %526 : vector<2x128xf32>
    %529 = arith.divf %527, %528 : vector<2x128xf32>
    %530 = vector.extract_strided_slice %506 {offsets = [0, 256], sizes = [2, 128], strides = [1, 1]} : vector<2x384xf32> to vector<2x128xf32>
    %531 = vector.extract_strided_slice %513 {offsets = [0, 256], sizes = [2, 128], strides = [1, 1]} : vector<2x384xf32> to vector<2x128xf32>
    %532 = arith.mulf %521, %531 : vector<2x128xf32>
    %533 = arith.addf %530, %532 : vector<2x128xf32>
    %534 = math.tanh %533 : vector<2x128xf32>
    %cst_212 = arith.constant 1.000000e+00 : f32
    %535 = vector.broadcast %cst_212 : f32 to vector<2x128xf32>
    %536 = arith.subf %535, %529 : vector<2x128xf32>
    %537 = arith.mulf %536, %534 : vector<2x128xf32>
    %538 = arith.mulf %529, %504 : vector<2x128xf32>
    %539 = arith.addf %537, %538 : vector<2x128xf32>
    %c0_213 = arith.constant 0 : index
    %c768 = arith.constant 768 : index
    %540 = vector.load %arg7[%c0_213, %c768] : memref<2x1024xf32, #tpu.memory_space<vmem>>, vector<2x128xf32>
    tpu.vector_store %arg7[%c0_213, %c768], %539 {strides = array<i32>} : memref<2x1024xf32, #tpu.memory_space<vmem>>, vector<2x128xf32>,
    %c14_214 = arith.constant 14 : index
    %c0_215 = arith.constant 0 : index
    %541 = vector.load %arg10[%c14_214, %c0_215] : memref<16x384xf32, #tpu.memory_space<vmem>>, vector<2x384xf32>
    %c1_216 = arith.constant 1 : index
    %c0_217 = arith.constant 0 : index
    %c0_218 = arith.constant 0 : index
    %542 = vector.load %arg3[%c1_216, %c0_217, %c0_218] : memref<2x128x384xf32, #tpu.memory_space<vmem>>, vector<1x128x384xf32>
    %543 = vector.shape_cast %542 : vector<1x128x384xf32> to vector<128x384xf32>
    %cst_219 = arith.constant dense<0.000000e+00> : vector<2x384xf32>
    %544 = tpu.matmul %539, %543, %cst_219 {dimension_numbers = #tpu.dot_dimension_numbers<[1], [0], [0], [1], [0, 0, 1, 1], [], []>} : vector<2x128xf32>, vector<128x384xf32>, vector<2x384xf32> -> vector<2x384xf32>
    %c1_220 = arith.constant 1 : index
    %c0_221 = arith.constant 0 : index
    %c0_222 = arith.constant 0 : index
    %545 = vector.load %arg4[%c1_220, %c0_221, %c0_222] : memref<2x1x384xf32, #tpu.memory_space<vmem>>, vector<1x1x384xf32>
    %546 = vector.shape_cast %545 : vector<1x1x384xf32> to vector<1x384xf32>
    %547 = vector.broadcast %546 : vector<1x384xf32> to vector<2x384xf32>
    %548 = arith.addf %544, %547 : vector<2x384xf32>
    %549 = vector.extract_strided_slice %541 {offsets = [0, 0], sizes = [2, 128], strides = [1, 1]} : vector<2x384xf32> to vector<2x128xf32>
    %550 = vector.extract_strided_slice %548 {offsets = [0, 0], sizes = [2, 128], strides = [1, 1]} : vector<2x384xf32> to vector<2x128xf32>
    %551 = arith.addf %549, %550 : vector<2x128xf32>
    %552 = arith.negf %551 : vector<2x128xf32>
    %553 = math.exp %552 : vector<2x128xf32>
    %cst_223 = arith.constant 1.000000e+00 : f32
    %554 = vector.broadcast %cst_223 : f32 to vector<2x128xf32>
    %555 = arith.addf %554, %553 : vector<2x128xf32>
    %556 = arith.divf %554, %555 : vector<2x128xf32>
    %557 = vector.extract_strided_slice %541 {offsets = [0, 128], sizes = [2, 128], strides = [1, 1]} : vector<2x384xf32> to vector<2x128xf32>
    %558 = vector.extract_strided_slice %548 {offsets = [0, 128], sizes = [2, 128], strides = [1, 1]} : vector<2x384xf32> to vector<2x128xf32>
    %559 = arith.addf %557, %558 : vector<2x128xf32>
    %560 = arith.negf %559 : vector<2x128xf32>
    %561 = math.exp %560 : vector<2x128xf32>
    %cst_224 = arith.constant 1.000000e+00 : f32
    %562 = vector.broadcast %cst_224 : f32 to vector<2x128xf32>
    %563 = arith.addf %562, %561 : vector<2x128xf32>
    %564 = arith.divf %562, %563 : vector<2x128xf32>
    %565 = vector.extract_strided_slice %541 {offsets = [0, 256], sizes = [2, 128], strides = [1, 1]} : vector<2x384xf32> to vector<2x128xf32>
    %566 = vector.extract_strided_slice %548 {offsets = [0, 256], sizes = [2, 128], strides = [1, 1]} : vector<2x384xf32> to vector<2x128xf32>
    %567 = arith.mulf %556, %566 : vector<2x128xf32>
    %568 = arith.addf %565, %567 : vector<2x128xf32>
    %569 = math.tanh %568 : vector<2x128xf32>
    %cst_225 = arith.constant 1.000000e+00 : f32
    %570 = vector.broadcast %cst_225 : f32 to vector<2x128xf32>
    %571 = arith.subf %570, %564 : vector<2x128xf32>
    %572 = arith.mulf %571, %569 : vector<2x128xf32>
    %573 = arith.mulf %564, %539 : vector<2x128xf32>
    %574 = arith.addf %572, %573 : vector<2x128xf32>
    %c0_226 = arith.constant 0 : index
    %c896 = arith.constant 896 : index
    %575 = vector.load %arg7[%c0_226, %c896] : memref<2x1024xf32, #tpu.memory_space<vmem>>, vector<2x128xf32>
    tpu.vector_store %arg7[%c0_226, %c896], %574 {strides = array<i32>} : memref<2x1024xf32, #tpu.memory_space<vmem>>, vector<2x128xf32>,
    %c1_227 = arith.constant 1 : index
    %c0_228 = arith.constant 0 : index
    %c0_229 = arith.constant 0 : index
    %576 = vector.load %arg8[%c1_227, %c0_228, %c0_229] : memref<2x2x128xf32, #tpu.memory_space<vmem>>, vector<1x2x128xf32>
    %577 = vector.shape_cast %576 : vector<1x2x128xf32> to vector<2x128xf32>
    %578 = vector.shape_cast %574 : vector<2x128xf32> to vector<1x2x128xf32>
    tpu.vector_store %arg8[%c1_227, %c0_228, %c0_229], %578 {strides = array<i32>} : memref<2x2x128xf32, #tpu.memory_space<vmem>>, vector<1x2x128xf32>,
    return
  }
  func.func @transform_0(%arg0: i32) -> (i32, i32) {
    %c0_i32 = arith.constant 0 : i32
    %c0_i32_0 = arith.constant 0 : i32
    %c0_i32_1 = arith.constant 0 : i32
    return %c0_i32, %c0_i32_0 : i32, i32
  }
  func.func @transform_1(%arg0: i32) -> (i32, i32, i32) {
    %c0_i32 = arith.constant 0 : i32
    %c0_i32_0 = arith.constant 0 : i32
    %c0_i32_1 = arith.constant 0 : i32
    %c0_i32_2 = arith.constant 0 : i32
    return %c0_i32, %c0_i32_0, %c0_i32_1 : i32, i32, i32
  }
  func.func @transform_2(%arg0: i32) -> (i32, i32, i32) {
    %c0_i32 = arith.constant 0 : i32
    %c0_i32_0 = arith.constant 0 : i32
    %c0_i32_1 = arith.constant 0 : i32
    %c0_i32_2 = arith.constant 0 : i32
    return %c0_i32, %c0_i32_0, %c0_i32_1 : i32, i32, i32
  }
  func.func @transform_3(%arg0: i32) -> (i32, i32, i32) {
    %c0_i32 = arith.constant 0 : i32
    %c0_i32_0 = arith.constant 0 : i32
    %c0_i32_1 = arith.constant 0 : i32
    %c0_i32_2 = arith.constant 0 : i32
    return %c0_i32, %c0_i32_0, %c0_i32_1 : i32, i32, i32
  }
  func.func @transform_4(%arg0: i32) -> (i32, i32, i32) {
    %c0_i32 = arith.constant 0 : i32
    %c0_i32_0 = arith.constant 0 : i32
    %c0_i32_1 = arith.constant 0 : i32
    %c0_i32_2 = arith.constant 0 : i32
    return %c0_i32, %c0_i32_0, %c0_i32_1 : i32, i32, i32
  }
  func.func @transform_5(%arg0: i32) -> (i32, i32, i32) {
    %c0_i32 = arith.constant 0 : i32
    %c0_i32_0 = arith.constant 0 : i32
    %c0_i32_1 = arith.constant 0 : i32
    %c0_i32_2 = arith.constant 0 : i32
    return %c0_i32, %c0_i32_0, %c0_i32_1 : i32, i32, i32
  }
  func.func @transform_6(%arg0: i32) -> (i32, i32) {
    %c0_i32 = arith.constant 0 : i32
    %c0_i32_0 = arith.constant 0 : i32
    %c0_i32_1 = arith.constant 0 : i32
    return %c0_i32, %c0_i32_0 : i32, i32
  }
  func.func @transform_7(%arg0: i32) -> (i32, i32, i32) {
    %c0_i32 = arith.constant 0 : i32
    %c0_i32_0 = arith.constant 0 : i32
    %c0_i32_1 = arith.constant 0 : i32
    %c0_i32_2 = arith.constant 0 : i32
    return %c0_i32, %c0_i32_0, %c0_i32_1 : i32, i32, i32
  }
}

</mosaic_0001>

<llo_original>
// kernel: toynn_forward.1
$region0: #{toynn_forward.1}
  #allocation0 [shape = 'u32[]', space=smem, size = 0x4, offset = 0x4, fixed_abs, tag = 'smem constant byte address 0x4 - core index']
  #allocation1 [shape = 'u32[144,128]{1,0:T(1,128)}', space=vmem, size = 0x12000, scoped, tag = 'internal scratch']
  #allocation2 [shape = 'f32[16,128]{1,0:T(8,128)}', space=vmem, size = 0x2000, scoped, tag = 'scratch operand']
  #allocation3 [shape = 'f32[16,384]{1,0:T(8,128)}', space=vmem, size = 0x6000, scoped, tag = 'scratch operand']
  %s0 = inlined_call_operand.vmem [shape: f32[16,384], index: 0, kind: input, shape index: {}]
  %s1 = inlined_call_operand.vmem [shape: f32[2,2,128], index: 1, kind: input, shape index: {}]
  %s2 = inlined_call_operand.vmem [shape: f32[2,128,384], index: 2, kind: input, shape index: {}]
  %s3 = inlined_call_operand.vmem [shape: f32[2,1,384], index: 3, kind: input, shape index: {}]
  %s4 = inlined_call_operand.vmem [shape: f32[1,128,384], index: 4, kind: input, shape index: {}]
  %s5 = inlined_call_operand.vmem [shape: f32[1,1,384], index: 5, kind: input, shape index: {}]
  %s6 = inlined_call_operand.vmem [shape: f32[2,1024], index: 6, kind: output, shape index: {0}]
  %s7 = inlined_call_operand.hbm [shape: f32[2,2,128], index: 7, kind: output, shape index: {1}]
  %8 = xla_tuple %s6, %s7
  %s9 = sld [smem:[#allocation0]]
  $region42: #{toynn_forward.1} parent=0
    _
  %s11 = ssub.s32 1, %s9
  %s12 = scalar_select 0, %s11, %s9
  $region1: #{toynn_forward.1} parent=0
    #allocation4 [shape = 'u8[2048]{0}', space=vmem, size = 0x800, scoped, tag = 'output window, operand 1, single buffered']
    #allocation5 [shape = 's32[1]{0}', space=sflag, size = 0x4, scoped, tag = 'scoped memory for toynn_forward.1']
    %13 = vsyncpa [#allocation5], 0
    // Predicated region
    $region2: #{toynn_forward.1} parent=1 // pred_check
      _
    $region3: #{toynn_forward.1} parent=1 // pred_check_branch
      %15 = sbr.rel (0) target = $region5
    $region4: #{toynn_forward.1} parent=1 // pred_region
      _
    $region5: #{toynn_forward.1} parent=1 // pred_fallthru
      _
    // Predicated region
    $region6: #{toynn_forward.1} parent=1 // pred_check
      _
    $region7: #{toynn_forward.1} parent=1 // pred_check_branch
      %17 = sbr.rel (0) target = $region9
    $region8: #{toynn_forward.1} parent=1 // pred_region
      _
    $region9: #{toynn_forward.1} parent=1 // pred_fallthru
      _
    // Predicated region
    $region10: #{toynn_forward.1} parent=1 // pred_check
      _
    $region11: #{toynn_forward.1} parent=1 // pred_check_branch
      %19 = sbr.rel (0) target = $region13
    $region12: #{toynn_forward.1} parent=1 // pred_region
      _
    $region13: #{toynn_forward.1} parent=1 // pred_fallthru
      _
    // Predicated region
    $region14: #{toynn_forward.1} parent=1 // pred_check
      _
    $region15: #{toynn_forward.1} parent=1 // pred_check_branch
      %21 = sbr.rel (0) target = $region17
    $region16: #{toynn_forward.1} parent=1 // pred_region
      _
    $region17: #{toynn_forward.1} parent=1 // pred_fallthru
      _
    // Predicated region
    $region18: #{toynn_forward.1} parent=1 // pred_check
      _
    $region19: #{toynn_forward.1} parent=1 // pred_check_branch
      %23 = sbr.rel (0) target = $region21
    $region20: #{toynn_forward.1} parent=1 // pred_region
      _
    $region21: #{toynn_forward.1} parent=1 // pred_fallthru
      _
    // Predicated region
    $region22: #{toynn_forward.1} parent=1 // pred_check
      _
    $region23: #{toynn_forward.1} parent=1 // pred_check_branch
      %25 = sbr.rel (0) target = $region25
    $region24: #{toynn_forward.1} parent=1 // pred_region
      _
    $region25: #{toynn_forward.1} parent=1 // pred_fallthru
      _
    %v26 = vld [vmem:[%s1] sm:$0x3]
    %v27 = vld [vmem:[%s0] sm:$0x3]
    %v28 = vld [vmem:[%s0 + $0x8] sm:$0x3]
    %v29 = vld [vmem:[%s0 + $0x10] sm:$0x3]
    %v30 = vld [vmem:[%s2] sm:$0xff]
    %v31 = vld [vmem:[%s2 + $0x8] sm:$0xff]
    %v32 = vld [vmem:[%s2 + $0x10] sm:$0xff]
    %v33 = vld [vmem:[%s2 + $0x18] sm:$0xff]
    %v34 = vld [vmem:[%s2 + $0x20] sm:$0xff]
    %v35 = vld [vmem:[%s2 + $0x28] sm:$0xff]
    %v36 = vld [vmem:[%s2 + $0x30] sm:$0xff]
    %v37 = vld [vmem:[%s2 + $0x38] sm:$0xff]
    %v38 = vld [vmem:[%s2 + $0x40] sm:$0xff]
    %v39 = vld [vmem:[%s2 + $0x48] sm:$0xff]
    %v40 = vld [vmem:[%s2 + $0x50] sm:$0xff]
    %v41 = vld [vmem:[%s2 + $0x58] sm:$0xff]
    %v42 = vld [vmem:[%s2 + $0x60] sm:$0xff]
    %v43 = vld [vmem:[%s2 + $0x68] sm:$0xff]
    %v44 = vld [vmem:[%s2 + $0x70] sm:$0xff]
    %v45 = vld [vmem:[%s2 + $0x78] sm:$0xff]
    %v46 = vld [vmem:[%s2 + $0x80] sm:$0xff]
    %v47 = vld [vmem:[%s2 + $0x88] sm:$0xff]
    %v48 = vld [vmem:[%s2 + $0x90] sm:$0xff]
    %v49 = vld [vmem:[%s2 + $0x98] sm:$0xff]
    %v50 = vld [vmem:[%s2 + $0xa0] sm:$0xff]
    %v51 = vld [vmem:[%s2 + $0xa8] sm:$0xff]
    %v52 = vld [vmem:[%s2 + $0xb0] sm:$0xff]
    %v53 = vld [vmem:[%s2 + $0xb8] sm:$0xff]
    %v54 = vld [vmem:[%s2 + $0xc0] sm:$0xff]
    %v55 = vld [vmem:[%s2 + $0xc8] sm:$0xff]
    %v56 = vld [vmem:[%s2 + $0xd0] sm:$0xff]
    %v57 = vld [vmem:[%s2 + $0xd8] sm:$0xff]
    %v58 = vld [vmem:[%s2 + $0xe0] sm:$0xff]
    %v59 = vld [vmem:[%s2 + $0xe8] sm:$0xff]
    %v60 = vld [vmem:[%s2 + $0xf0] sm:$0xff]
    %v61 = vld [vmem:[%s2 + $0xf8] sm:$0xff]
    %v62 = vld [vmem:[%s2 + $0x100] sm:$0xff]
    %v63 = vld [vmem:[%s2 + $0x108] sm:$0xff]
    %v64 = vld [vmem:[%s2 + $0x110] sm:$0xff]
    %v65 = vld [vmem:[%s2 + $0x118] sm:$0xff]
    %v66 = vld [vmem:[%s2 + $0x120] sm:$0xff]
    %v67 = vld [vmem:[%s2 + $0x128] sm:$0xff]
    %v68 = vld [vmem:[%s2 + $0x130] sm:$0xff]
    %v69 = vld [vmem:[%s2 + $0x138] sm:$0xff]
    %v70 = vld [vmem:[%s2 + $0x140] sm:$0xff]
    %v71 = vld [vmem:[%s2 + $0x148] sm:$0xff]
    %v72 = vld [vmem:[%s2 + $0x150] sm:$0xff]
    %v73 = vld [vmem:[%s2 + $0x158] sm:$0xff]
    %v74 = vld [vmem:[%s2 + $0x160] sm:$0xff]
    %v75 = vld [vmem:[%s2 + $0x168] sm:$0xff]
    %v76 = vld [vmem:[%s2 + $0x170] sm:$0xff]
    %v77 = vld [vmem:[%s2 + $0x178] sm:$0xff]
    %v78 = vld [vmem:[%s3] sm:$0x7]
    %v80 = vlaneseq
    %v81 = vshrl.u32 %v80, 7
    %v82 = vsub.s32 0, %v81
    %v83 = vrot.slane %v78, %v82
    %v84 = vlaneseq
    %v85 = vshrl.u32 %v84, 7
    %v86 = vsub.s32 1, %v85
    %v87 = vrot.slane %v78, %v86
    %v88 = vlaneseq
    %v89 = vshrl.u32 %v88, 7
    %v90 = vsub.s32 2, %v89
    %v91 = vrot.slane %v78, %v90
    %95 = vmatprep.subr.mxu0 %v76
    %96 = vmatpush1.msra.mxu0 %v75
    %97 = vmatprep.subr.mxu0 %v73
    %98 = vmatpush1.msra.mxu0 %v72
    %99 = vmatprep.subr.mxu0 %v70
    %100 = vmatpush1.msra.mxu0 %v69
    %101 = vmatprep.subr.mxu0 %v67
    %102 = vmatpush1.msra.mxu0 %v66
    %103 = vmatprep.subr.mxu0 %v64
    %104 = vmatpush1.msra.mxu0 %v63
    %105 = vmatprep.subr.mxu0 %v61
    %106 = vmatpush1.msra.mxu0 %v60
    %107 = vmatprep.subr.mxu0 %v58
    %108 = vmatpush1.msra.mxu0 %v57
    %109 = vmatprep.subr.mxu0 %v55
    %110 = vmatpush1.msra.mxu0 %v54
    %111 = vmatprep.subr.mxu0 %v52
    %112 = vmatpush1.msra.mxu0 %v51
    %113 = vmatprep.subr.mxu0 %v49
    %114 = vmatpush1.msra.mxu0 %v48
    %115 = vmatprep.subr.mxu0 %v46
    %116 = vmatpush1.msra.mxu0 %v45
    %117 = vmatprep.subr.mxu0 %v43
    %118 = vmatpush1.msra.mxu0 %v42
    %119 = vmatprep.subr.mxu0 %v40
    %120 = vmatpush1.msra.mxu0 %v39
    %121 = vmatprep.subr.mxu0 %v37
    %122 = vmatpush1.msra.mxu0 %v36
    %123 = vmatprep.subr.mxu0 %v34
    %124 = vmatpush1.msra.mxu0 %v33
    %125 = vmatprep.subr.mxu0 %v31
    %126 = vmatpush1.msra.mxu0 %v30
    %127 = vmatprep.subr.mxu0 0.0
    %128 = vmatpush2.msra.mxu0 0.0
    %129 = vmatprep.subr.mxu0 0.0
    %130 = vmatpush2.msra.mxu0 0.0
    %131 = vmatprep.subr.mxu0 0.0
    %132 = vmatpush2.msra.mxu0 0.0
    %133 = vmatprep.subr.mxu0 0.0
    %134 = vmatpush2.msra.mxu0 0.0
    %135 = vmatprep.subr.mxu0 0.0
    %136 = vmatpush2.msra.mxu0 0.0
    %137 = vmatprep.subr.mxu0 0.0
    %138 = vmatpush2.msra.mxu0 0.0
    %139 = vmatprep.subr.mxu0 0.0
    %140 = vmatpush2.msra.mxu0 0.0
    %141 = vmatprep.subr.mxu0 0.0
    %142 = vmatpush2.msra.mxu0 0.0
    %143 = vmatprep.subr.mxu0 0.0
    %144 = vmatpush2.msra.mxu0 0.0
    %145 = vmatprep.subr.mxu0 0.0
    %146 = vmatpush2.msra.mxu0 0.0
    %147 = vmatprep.subr.mxu0 0.0
    %148 = vmatpush2.msra.mxu0 0.0
    %149 = vmatprep.subr.mxu0 0.0
    %150 = vmatpush2.msra.mxu0 0.0
    %151 = vmatprep.subr.mxu0 0.0
    %152 = vmatpush2.msra.mxu0 0.0
    %153 = vmatprep.subr.mxu0 0.0
    %154 = vmatpush2.msra.mxu0 0.0
    %155 = vmatprep.subr.mxu0 0.0
    %156 = vmatpush2.msra.mxu0 0.0
    %157 = vmatprep.subr.mxu0 0.0
    %158 = vmatpush2.msra.mxu0 0.0
    %159 = vmatprep.mubr.f32.mxu0 0.0
    %160 = vmatmul.mubr.f32.gmra.mxu0 %v26
    %v161 = vpop.f32.mrf.mxu0
    %v162 = vadd.f32 %v83, %v161
    %v163 = vpop.f32.mrf.mxu0
    %v164 = vadd.f32 %v87, %v163
    %165 = vdwg.mxu0
    %166 = vmatprep.subr.mxu0 0.0
    %167 = vmatpush1.msra.mxu0 %v77
    %168 = vmatprep.subr.mxu0 0.0
    %169 = vmatpush1.msra.mxu0 %v74
    %170 = vmatprep.subr.mxu0 0.0
    %171 = vmatpush1.msra.mxu0 %v71
    %172 = vmatprep.subr.mxu0 0.0
    %173 = vmatpush1.msra.mxu0 %v68
    %174 = vmatprep.subr.mxu0 0.0
    %175 = vmatpush1.msra.mxu0 %v65
    %176 = vmatprep.subr.mxu0 0.0
    %177 = vmatpush1.msra.mxu0 %v62
    %178 = vmatprep.subr.mxu0 0.0
    %179 = vmatpush1.msra.mxu0 %v59
    %180 = vmatprep.subr.mxu0 0.0
    %181 = vmatpush1.msra.mxu0 %v56
    %182 = vmatprep.subr.mxu0 0.0
    %183 = vmatpush1.msra.mxu0 %v53
    %184 = vmatprep.subr.mxu0 0.0
    %185 = vmatpush1.msra.mxu0 %v50
    %186 = vmatprep.subr.mxu0 0.0
    %187 = vmatpush1.msra.mxu0 %v47
    %188 = vmatprep.subr.mxu0 0.0
    %189 = vmatpush1.msra.mxu0 %v44
    %190 = vmatprep.subr.mxu0 0.0
    %191 = vmatpush1.msra.mxu0 %v41
    %192 = vmatprep.subr.mxu0 0.0
    %193 = vmatpush1.msra.mxu0 %v38
    %194 = vmatprep.subr.mxu0 0.0
    %195 = vmatpush1.msra.mxu0 %v35
    %196 = vmatprep.subr.mxu0 0.0
    %197 = vmatpush1.msra.mxu0 %v32
    %198 = vmatprep.subr.mxu0 0.0
    %199 = vmatpush2.msra.mxu0 0.0
    %200 = vmatprep.subr.mxu0 0.0
    %201 = vmatpush2.msra.mxu0 0.0
    %202 = vmatprep.subr.mxu0 0.0
    %203 = vmatpush2.msra.mxu0 0.0
    %204 = vmatprep.subr.mxu0 0.0
    %205 = vmatpush2.msra.mxu0 0.0
    %206 = vmatprep.subr.mxu0 0.0
    %207 = vmatpush2.msra.mxu0 0.0
    %208 = vmatprep.subr.mxu0 0.0
    %209 = vmatpush2.msra.mxu0 0.0
    %210 = vmatprep.subr.mxu0 0.0
    %211 = vmatpush2.msra.mxu0 0.0
    %212 = vmatprep.subr.mxu0 0.0
    %213 = vmatpush2.msra.mxu0 0.0
    %214 = vmatprep.subr.mxu0 0.0
    %215 = vmatpush2.msra.mxu0 0.0
    %216 = vmatprep.subr.mxu0 0.0
    %217 = vmatpush2.msra.mxu0 0.0
    %218 = vmatprep.subr.mxu0 0.0
    %219 = vmatpush2.msra.mxu0 0.0
    %220 = vmatprep.subr.mxu0 0.0
    %221 = vmatpush2.msra.mxu0 0.0
    %222 = vmatprep.subr.mxu0 0.0
    %223 = vmatpush2.msra.mxu0 0.0
    %224 = vmatprep.subr.mxu0 0.0
    %225 = vmatpush2.msra.mxu0 0.0
    %226 = vmatprep.subr.mxu0 0.0
    %227 = vmatpush2.msra.mxu0 0.0
    %228 = vmatprep.subr.mxu0 0.0
    %229 = vmatpush2.msra.mxu0 0.0
    %230 = vmatprep.mubr.f32.mxu0 0.0
    %231 = vmatmul.mubr.f32.gmra.mxu0 %v26
    %v232 = vpop.f32.mrf.mxu0
    %v233 = vadd.f32 %v91, %v232
    %v234 = vpop.f32.mrf.mxu0
    %235 = vdwg.mxu0
    %v236 = vadd.f32 %v27, %v162
    %v237 = vxor.u32 %v236, 2147483648
    %v238 = vmul.f32 %v237, 1.442695
    %v239 = vpow.pop %v238
    %v240 = vadd.f32 %v239, 1.0
    %v241 = vrcp.pop %v240
    %v242 = vmul.f32 1.0, %v241
    %v243 = vadd.f32 %v28, %v164
    %v244 = vxor.u32 %v243, 2147483648
    %v245 = vmul.f32 %v244, 1.442695
    %v246 = vpow.pop %v245
    %v247 = vadd.f32 %v246, 1.0
    %v248 = vrcp.pop %v247
    %v249 = vmul.f32 1.0, %v248
    %v250 = vmul.f32 %v242, %v233
    %v251 = vadd.f32 %v29, %v250
    %v252 = vtanh.pop %v251
    %v253 = vsub.f32 1.0, %v249
    %v254 = vmul.f32 %v253, %v252
    %v255 = vmul.f32 %v249, %v26
    %v256 = vadd.f32 %v254, %v255
    %257 = vst [vmem:[#allocation2] sm:$0x3] %v256
    %v258 = vld [vmem:[%s0] sm:$0xc]
    %v259 = vld [vmem:[%s0 + $0x8] sm:$0xc]
    %v260 = vld [vmem:[%s0 + $0x10] sm:$0xc]
    %v261 = vld [vmem:[%s2] sm:$0xff]
    %v262 = vld [vmem:[%s2 + $0x8] sm:$0xff]
    %v263 = vld [vmem:[%s2 + $0x10] sm:$0xff]
    %v264 = vld [vmem:[%s2 + $0x18] sm:$0xff]
    %v265 = vld [vmem:[%s2 + $0x20] sm:$0xff]
    %v266 = vld [vmem:[%s2 + $0x28] sm:$0xff]
    %v267 = vld [vmem:[%s2 + $0x30] sm:$0xff]
    %v268 = vld [vmem:[%s2 + $0x38] sm:$0xff]
    %v269 = vld [vmem:[%s2 + $0x40] sm:$0xff]
    %v270 = vld [vmem:[%s2 + $0x48] sm:$0xff]
    %v271 = vld [vmem:[%s2 + $0x50] sm:$0xff]
    %v272 = vld [vmem:[%s2 + $0x58] sm:$0xff]
    %v273 = vld [vmem:[%s2 + $0x60] sm:$0xff]
    %v274 = vld [vmem:[%s2 + $0x68] sm:$0xff]
    %v275 = vld [vmem:[%s2 + $0x70] sm:$0xff]
    %v276 = vld [vmem:[%s2 + $0x78] sm:$0xff]
    %v277 = vld [vmem:[%s2 + $0x80] sm:$0xff]
    %v278 = vld [vmem:[%s2 + $0x88] sm:$0xff]
    %v279 = vld [vmem:[%s2 + $0x90] sm:$0xff]
    %v280 = vld [vmem:[%s2 + $0x98] sm:$0xff]
    %v281 = vld [vmem:[%s2 + $0xa0] sm:$0xff]
    %v282 = vld [vmem:[%s2 + $0xa8] sm:$0xff]
    %v283 = vld [vmem:[%s2 + $0xb0] sm:$0xff]
    %v284 = vld [vmem:[%s2 + $0xb8] sm:$0xff]
    %v285 = vld [vmem:[%s2 + $0xc0] sm:$0xff]
    %v286 = vld [vmem:[%s2 + $0xc8] sm:$0xff]
    %v287 = vld [vmem:[%s2 + $0xd0] sm:$0xff]
    %v288 = vld [vmem:[%s2 + $0xd8] sm:$0xff]
    %v289 = vld [vmem:[%s2 + $0xe0] sm:$0xff]
    %v290 = vld [vmem:[%s2 + $0xe8] sm:$0xff]
    %v291 = vld [vmem:[%s2 + $0xf0] sm:$0xff]
    %v292 = vld [vmem:[%s2 + $0xf8] sm:$0xff]
    %v293 = vld [vmem:[%s2 + $0x100] sm:$0xff]
    %v294 = vld [vmem:[%s2 + $0x108] sm:$0xff]
    %v295 = vld [vmem:[%s2 + $0x110] sm:$0xff]
    %v296 = vld [vmem:[%s2 + $0x118] sm:$0xff]
    %v297 = vld [vmem:[%s2 + $0x120] sm:$0xff]
    %v298 = vld [vmem:[%s2 + $0x128] sm:$0xff]
    %v299 = vld [vmem:[%s2 + $0x130] sm:$0xff]
    %v300 = vld [vmem:[%s2 + $0x138] sm:$0xff]
    %v301 = vld [vmem:[%s2 + $0x140] sm:$0xff]
    %v302 = vld [vmem:[%s2 + $0x148] sm:$0xff]
    %v303 = vld [vmem:[%s2 + $0x150] sm:$0xff]
    %v304 = vld [vmem:[%s2 + $0x158] sm:$0xff]
    %v305 = vld [vmem:[%s2 + $0x160] sm:$0xff]
    %v306 = vld [vmem:[%s2 + $0x168] sm:$0xff]
    %v307 = vld [vmem:[%s2 + $0x170] sm:$0xff]
    %v308 = vld [vmem:[%s2 + $0x178] sm:$0xff]
    %v309 = vld [vmem:[%s3] sm:$0x7]
    %v311 = vlaneseq
    %v312 = vshrl.u32 %v311, 7
    %v313 = vsub.s32 0, %v312
    %v314 = vrot.slane %v309, %v313
    %v315 = vlaneseq
    %v316 = vshrl.u32 %v315, 7
    %v317 = vsub.s32 1, %v316
    %v318 = vrot.slane %v309, %v317
    %v319 = vlaneseq
    %v320 = vshrl.u32 %v319, 7
    %v321 = vsub.s32 2, %v320
    %v322 = vrot.slane %v309, %v321
    %326 = vmatprep.subr.mxu0 %v307
    %327 = vmatpush1.msra.mxu0 %v306
    %328 = vmatprep.subr.mxu0 %v304
    %329 = vmatpush1.msra.mxu0 %v303
    %330 = vmatprep.subr.mxu0 %v301
    %331 = vmatpush1.msra.mxu0 %v300
    %332 = vmatprep.subr.mxu0 %v298
    %333 = vmatpush1.msra.mxu0 %v297
    %334 = vmatprep.subr.mxu0 %v295
    %335 = vmatpush1.msra.mxu0 %v294
    %336 = vmatprep.subr.mxu0 %v292
    %337 = vmatpush1.msra.mxu0 %v291
    %338 = vmatprep.subr.mxu0 %v289
    %339 = vmatpush1.msra.mxu0 %v288
    %340 = vmatprep.subr.mxu0 %v286
    %341 = vmatpush1.msra.mxu0 %v285
    %342 = vmatprep.subr.mxu0 %v283
    %343 = vmatpush1.msra.mxu0 %v282
    %344 = vmatprep.subr.mxu0 %v280
    %345 = vmatpush1.msra.mxu0 %v279
    %346 = vmatprep.subr.mxu0 %v277
    %347 = vmatpush1.msra.mxu0 %v276
    %348 = vmatprep.subr.mxu0 %v274
    %349 = vmatpush1.msra.mxu0 %v273
    %350 = vmatprep.subr.mxu0 %v271
    %351 = vmatpush1.msra.mxu0 %v270
    %352 = vmatprep.subr.mxu0 %v268
    %353 = vmatpush1.msra.mxu0 %v267
    %354 = vmatprep.subr.mxu0 %v265
    %355 = vmatpush1.msra.mxu0 %v264
    %356 = vmatprep.subr.mxu0 %v262
    %357 = vmatpush1.msra.mxu0 %v261
    %358 = vmatprep.subr.mxu0 0.0
    %359 = vmatpush2.msra.mxu0 0.0
    %360 = vmatprep.subr.mxu0 0.0
    %361 = vmatpush2.msra.mxu0 0.0
    %362 = vmatprep.subr.mxu0 0.0
    %363 = vmatpush2.msra.mxu0 0.0
    %364 = vmatprep.subr.mxu0 0.0
    %365 = vmatpush2.msra.mxu0 0.0
    %366 = vmatprep.subr.mxu0 0.0
    %367 = vmatpush2.msra.mxu0 0.0
    %368 = vmatprep.subr.mxu0 0.0
    %369 = vmatpush2.msra.mxu0 0.0
    %370 = vmatprep.subr.mxu0 0.0
    %371 = vmatpush2.msra.mxu0 0.0
    %372 = vmatprep.subr.mxu0 0.0
    %373 = vmatpush2.msra.mxu0 0.0
    %374 = vmatprep.subr.mxu0 0.0
    %375 = vmatpush2.msra.mxu0 0.0
    %376 = vmatprep.subr.mxu0 0.0
    %377 = vmatpush2.msra.mxu0 0.0
    %378 = vmatprep.subr.mxu0 0.0
    %379 = vmatpush2.msra.mxu0 0.0
    %380 = vmatprep.subr.mxu0 0.0
    %381 = vmatpush2.msra.mxu0 0.0
    %382 = vmatprep.subr.mxu0 0.0
    %383 = vmatpush2.msra.mxu0 0.0
    %384 = vmatprep.subr.mxu0 0.0
    %385 = vmatpush2.msra.mxu0 0.0
    %386 = vmatprep.subr.mxu0 0.0
    %387 = vmatpush2.msra.mxu0 0.0
    %388 = vmatprep.subr.mxu0 0.0
    %389 = vmatpush2.msra.mxu0 0.0
    %390 = vmatprep.mubr.f32.mxu0 0.0
    %391 = vmatmul.mubr.f32.gmra.mxu0 %v256
    %v392 = vpop.f32.mrf.mxu0
    %v393 = vadd.f32 %v314, %v392
    %v394 = vpop.f32.mrf.mxu0
    %v395 = vadd.f32 %v318, %v394
    %396 = vdwg.mxu0
    %397 = vmatprep.subr.mxu0 0.0
    %398 = vmatpush1.msra.mxu0 %v308
    %399 = vmatprep.subr.mxu0 0.0
    %400 = vmatpush1.msra.mxu0 %v305
    %401 = vmatprep.subr.mxu0 0.0
    %402 = vmatpush1.msra.mxu0 %v302
    %403 = vmatprep.subr.mxu0 0.0
    %404 = vmatpush1.msra.mxu0 %v299
    %405 = vmatprep.subr.mxu0 0.0
    %406 = vmatpush1.msra.mxu0 %v296
    %407 = vmatprep.subr.mxu0 0.0
    %408 = vmatpush1.msra.mxu0 %v293
    %409 = vmatprep.subr.mxu0 0.0
    %410 = vmatpush1.msra.mxu0 %v290
    %411 = vmatprep.subr.mxu0 0.0
    %412 = vmatpush1.msra.mxu0 %v287
    %413 = vmatprep.subr.mxu0 0.0
    %414 = vmatpush1.msra.mxu0 %v284
    %415 = vmatprep.subr.mxu0 0.0
    %416 = vmatpush1.msra.mxu0 %v281
    %417 = vmatprep.subr.mxu0 0.0
    %418 = vmatpush1.msra.mxu0 %v278
    %419 = vmatprep.subr.mxu0 0.0
    %420 = vmatpush1.msra.mxu0 %v275
    %421 = vmatprep.subr.mxu0 0.0
    %422 = vmatpush1.msra.mxu0 %v272
    %423 = vmatprep.subr.mxu0 0.0
    %424 = vmatpush1.msra.mxu0 %v269
    %425 = vmatprep.subr.mxu0 0.0
    %426 = vmatpush1.msra.mxu0 %v266
    %427 = vmatprep.subr.mxu0 0.0
    %428 = vmatpush1.msra.mxu0 %v263
    %429 = vmatprep.subr.mxu0 0.0
    %430 = vmatpush2.msra.mxu0 0.0
    %431 = vmatprep.subr.mxu0 0.0
    %432 = vmatpush2.msra.mxu0 0.0
    %433 = vmatprep.subr.mxu0 0.0
    %434 = vmatpush2.msra.mxu0 0.0
    %435 = vmatprep.subr.mxu0 0.0
    %436 = vmatpush2.msra.mxu0 0.0
    %437 = vmatprep.subr.mxu0 0.0
    %438 = vmatpush2.msra.mxu0 0.0
    %439 = vmatprep.subr.mxu0 0.0
    %440 = vmatpush2.msra.mxu0 0.0
    %441 = vmatprep.subr.mxu0 0.0
    %442 = vmatpush2.msra.mxu0 0.0
    %443 = vmatprep.subr.mxu0 0.0
    %444 = vmatpush2.msra.mxu0 0.0
    %445 = vmatprep.subr.mxu0 0.0
    %446 = vmatpush2.msra.mxu0 0.0
    %447 = vmatprep.subr.mxu0 0.0
    %448 = vmatpush2.msra.mxu0 0.0
    %449 = vmatprep.subr.mxu0 0.0
    %450 = vmatpush2.msra.mxu0 0.0
    %451 = vmatprep.subr.mxu0 0.0
    %452 = vmatpush2.msra.mxu0 0.0
    %453 = vmatprep.subr.mxu0 0.0
    %454 = vmatpush2.msra.mxu0 0.0
    %455 = vmatprep.subr.mxu0 0.0
    %456 = vmatpush2.msra.mxu0 0.0
    %457 = vmatprep.subr.mxu0 0.0
    %458 = vmatpush2.msra.mxu0 0.0
    %459 = vmatprep.subr.mxu0 0.0
    %460 = vmatpush2.msra.mxu0 0.0
    %461 = vmatprep.mubr.f32.mxu0 0.0
    %462 = vmatmul.mubr.f32.gmra.mxu0 %v256
    %v463 = vpop.f32.mrf.mxu0
    %v464 = vadd.f32 %v322, %v463
    %v465 = vpop.f32.mrf.mxu0
    %466 = vdwg.mxu0
    %v468 = vrot.slane %v393, 6
    %v470 = vadd.f32 %v258, %v468
    %v471 = vxor.u32 %v470, 2147483648
    %v472 = vmul.f32 %v471, 1.442695
    %v473 = vpow.pop %v472
    %v474 = vadd.f32 %v473, 1.0
    %v475 = vrcp.pop %v474
    %v476 = vmul.f32 1.0, %v475
    %v478 = vrot.slane %v395, 6
    %v480 = vadd.f32 %v259, %v478
    %v481 = vxor.u32 %v480, 2147483648
    %v482 = vmul.f32 %v481, 1.442695
    %v483 = vpow.pop %v482
    %v484 = vadd.f32 %v483, 1.0
    %v485 = vrcp.pop %v484
    %v486 = vmul.f32 1.0, %v485
    %v488 = vrot.slane %v464, 6
    %v490 = vmul.f32 %v476, %v488
    %v491 = vadd.f32 %v260, %v490
    %v492 = vtanh.pop %v491
    %v493 = vsub.f32 1.0, %v486
    %v494 = vmul.f32 %v493, %v492
    %v496 = vrot.slane %v256, 6
    %v498 = vmul.f32 %v486, %v496
    %v499 = vadd.f32 %v494, %v498
    %500 = vst [vmem:[#allocation2] sm:$0xc] %v499
    %v501 = vld [vmem:[%s0] sm:$0x30]
    %v502 = vld [vmem:[%s0 + $0x8] sm:$0x30]
    %v503 = vld [vmem:[%s0 + $0x10] sm:$0x30]
    %v504 = vld [vmem:[%s2] sm:$0xff]
    %v505 = vld [vmem:[%s2 + $0x8] sm:$0xff]
    %v506 = vld [vmem:[%s2 + $0x10] sm:$0xff]
    %v507 = vld [vmem:[%s2 + $0x18] sm:$0xff]
    %v508 = vld [vmem:[%s2 + $0x20] sm:$0xff]
    %v509 = vld [vmem:[%s2 + $0x28] sm:$0xff]
    %v510 = vld [vmem:[%s2 + $0x30] sm:$0xff]
    %v511 = vld [vmem:[%s2 + $0x38] sm:$0xff]
    %v512 = vld [vmem:[%s2 + $0x40] sm:$0xff]
    %v513 = vld [vmem:[%s2 + $0x48] sm:$0xff]
    %v514 = vld [vmem:[%s2 + $0x50] sm:$0xff]
    %v515 = vld [vmem:[%s2 + $0x58] sm:$0xff]
    %v516 = vld [vmem:[%s2 + $0x60] sm:$0xff]
    %v517 = vld [vmem:[%s2 + $0x68] sm:$0xff]
    %v518 = vld [vmem:[%s2 + $0x70] sm:$0xff]
    %v519 = vld [vmem:[%s2 + $0x78] sm:$0xff]
    %v520 = vld [vmem:[%s2 + $0x80] sm:$0xff]
    %v521 = vld [vmem:[%s2 + $0x88] sm:$0xff]
    %v522 = vld [vmem:[%s2 + $0x90] sm:$0xff]
    %v523 = vld [vmem:[%s2 + $0x98] sm:$0xff]
    %v524 = vld [vmem:[%s2 + $0xa0] sm:$0xff]
    %v525 = vld [vmem:[%s2 + $0xa8] sm:$0xff]
    %v526 = vld [vmem:[%s2 + $0xb0] sm:$0xff]
    %v527 = vld [vmem:[%s2 + $0xb8] sm:$0xff]
    %v528 = vld [vmem:[%s2 + $0xc0] sm:$0xff]
    %v529 = vld [vmem:[%s2 + $0xc8] sm:$0xff]
    %v530 = vld [vmem:[%s2 + $0xd0] sm:$0xff]
    %v531 = vld [vmem:[%s2 + $0xd8] sm:$0xff]
    %v532 = vld [vmem:[%s2 + $0xe0] sm:$0xff]
    %v533 = vld [vmem:[%s2 + $0xe8] sm:$0xff]
    %v534 = vld [vmem:[%s2 + $0xf0] sm:$0xff]
    %v535 = vld [vmem:[%s2 + $0xf8] sm:$0xff]
    %v536 = vld [vmem:[%s2 + $0x100] sm:$0xff]
    %v537 = vld [vmem:[%s2 + $0x108] sm:$0xff]
    %v538 = vld [vmem:[%s2 + $0x110] sm:$0xff]
    %v539 = vld [vmem:[%s2 + $0x118] sm:$0xff]
    %v540 = vld [vmem:[%s2 + $0x120] sm:$0xff]
    %v541 = vld [vmem:[%s2 + $0x128] sm:$0xff]
    %v542 = vld [vmem:[%s2 + $0x130] sm:$0xff]
    %v543 = vld [vmem:[%s2 + $0x138] sm:$0xff]
    %v544 = vld [vmem:[%s2 + $0x140] sm:$0xff]
    %v545 = vld [vmem:[%s2 + $0x148] sm:$0xff]
    %v546 = vld [vmem:[%s2 + $0x150] sm:$0xff]
    %v547 = vld [vmem:[%s2 + $0x158] sm:$0xff]
    %v548 = vld [vmem:[%s2 + $0x160] sm:$0xff]
    %v549 = vld [vmem:[%s2 + $0x168] sm:$0xff]
    %v550 = vld [vmem:[%s2 + $0x170] sm:$0xff]
    %v551 = vld [vmem:[%s2 + $0x178] sm:$0xff]
    %v552 = vld [vmem:[%s3] sm:$0x7]
    %v554 = vlaneseq
    %v555 = vshrl.u32 %v554, 7
    %v556 = vsub.s32 0, %v555
    %v557 = vrot.slane %v552, %v556
    %v558 = vlaneseq
    %v559 = vshrl.u32 %v558, 7
    %v560 = vsub.s32 1, %v559
    %v561 = vrot.slane %v552, %v560
    %v562 = vlaneseq
    %v563 = vshrl.u32 %v562, 7
    %v564 = vsub.s32 2, %v563
    %v565 = vrot.slane %v552, %v564
    %v570 = vrot.slane %v499, 2
    %572 = vmatprep.subr.mxu0 %v550
    %573 = vmatpush1.msra.mxu0 %v549
    %574 = vmatprep.subr.mxu0 %v547
    %575 = vmatpush1.msra.mxu0 %v546
    %576 = vmatprep.subr.mxu0 %v544
    %577 = vmatpush1.msra.mxu0 %v543
    %578 = vmatprep.subr.mxu0 %v541
    %579 = vmatpush1.msra.mxu0 %v540
    %580 = vmatprep.subr.mxu0 %v538
    %581 = vmatpush1.msra.mxu0 %v537
    %582 = vmatprep.subr.mxu0 %v535
    %583 = vmatpush1.msra.mxu0 %v534
    %584 = vmatprep.subr.mxu0 %v532
    %585 = vmatpush1.msra.mxu0 %v531
    %586 = vmatprep.subr.mxu0 %v529
    %587 = vmatpush1.msra.mxu0 %v528
    %588 = vmatprep.subr.mxu0 %v526
    %589 = vmatpush1.msra.mxu0 %v525
    %590 = vmatprep.subr.mxu0 %v523
    %591 = vmatpush1.msra.mxu0 %v522
    %592 = vmatprep.subr.mxu0 %v520
    %593 = vmatpush1.msra.mxu0 %v519
    %594 = vmatprep.subr.mxu0 %v517
    %595 = vmatpush1.msra.mxu0 %v516
    %596 = vmatprep.subr.mxu0 %v514
    %597 = vmatpush1.msra.mxu0 %v513
    %598 = vmatprep.subr.mxu0 %v511
    %599 = vmatpush1.msra.mxu0 %v510
    %600 = vmatprep.subr.mxu0 %v508
    %601 = vmatpush1.msra.mxu0 %v507
    %602 = vmatprep.subr.mxu0 %v505
    %603 = vmatpush1.msra.mxu0 %v504
    %604 = vmatprep.subr.mxu0 0.0
    %605 = vmatpush2.msra.mxu0 0.0
    %606 = vmatprep.subr.mxu0 0.0
    %607 = vmatpush2.msra.mxu0 0.0
    %608 = vmatprep.subr.mxu0 0.0
    %609 = vmatpush2.msra.mxu0 0.0
    %610 = vmatprep.subr.mxu0 0.0
    %611 = vmatpush2.msra.mxu0 0.0
    %612 = vmatprep.subr.mxu0 0.0
    %613 = vmatpush2.msra.mxu0 0.0
    %614 = vmatprep.subr.mxu0 0.0
    %615 = vmatpush2.msra.mxu0 0.0
    %616 = vmatprep.subr.mxu0 0.0
    %617 = vmatpush2.msra.mxu0 0.0
    %618 = vmatprep.subr.mxu0 0.0
    %619 = vmatpush2.msra.mxu0 0.0
    %620 = vmatprep.subr.mxu0 0.0
    %621 = vmatpush2.msra.mxu0 0.0
    %622 = vmatprep.subr.mxu0 0.0
    %623 = vmatpush2.msra.mxu0 0.0
    %624 = vmatprep.subr.mxu0 0.0
    %625 = vmatpush2.msra.mxu0 0.0
    %626 = vmatprep.subr.mxu0 0.0
    %627 = vmatpush2.msra.mxu0 0.0
    %628 = vmatprep.subr.mxu0 0.0
    %629 = vmatpush2.msra.mxu0 0.0
    %630 = vmatprep.subr.mxu0 0.0
    %631 = vmatpush2.msra.mxu0 0.0
    %632 = vmatprep.subr.mxu0 0.0
    %633 = vmatpush2.msra.mxu0 0.0
    %634 = vmatprep.subr.mxu0 0.0
    %635 = vmatpush2.msra.mxu0 0.0
    %636 = vmatprep.mubr.f32.mxu0 0.0
    %637 = vmatmul.mubr.f32.gmra.mxu0 %v570
    %v638 = vpop.f32.mrf.mxu0
    %v639 = vadd.f32 %v557, %v638
    %v640 = vpop.f32.mrf.mxu0
    %v641 = vadd.f32 %v561, %v640
    %642 = vdwg.mxu0
    %643 = vmatprep.subr.mxu0 0.0
    %644 = vmatpush1.msra.mxu0 %v551
    %645 = vmatprep.subr.mxu0 0.0
    %646 = vmatpush1.msra.mxu0 %v548
    %647 = vmatprep.subr.mxu0 0.0
    %648 = vmatpush1.msra.mxu0 %v545
    %649 = vmatprep.subr.mxu0 0.0
    %650 = vmatpush1.msra.mxu0 %v542
    %651 = vmatprep.subr.mxu0 0.0
    %652 = vmatpush1.msra.mxu0 %v539
    %653 = vmatprep.subr.mxu0 0.0
    %654 = vmatpush1.msra.mxu0 %v536
    %655 = vmatprep.subr.mxu0 0.0
    %656 = vmatpush1.msra.mxu0 %v533
    %657 = vmatprep.subr.mxu0 0.0
    %658 = vmatpush1.msra.mxu0 %v530
    %659 = vmatprep.subr.mxu0 0.0
    %660 = vmatpush1.msra.mxu0 %v527
    %661 = vmatprep.subr.mxu0 0.0
    %662 = vmatpush1.msra.mxu0 %v524
    %663 = vmatprep.subr.mxu0 0.0
    %664 = vmatpush1.msra.mxu0 %v521
    %665 = vmatprep.subr.mxu0 0.0
    %666 = vmatpush1.msra.mxu0 %v518
    %667 = vmatprep.subr.mxu0 0.0
    %668 = vmatpush1.msra.mxu0 %v515
    %669 = vmatprep.subr.mxu0 0.0
    %670 = vmatpush1.msra.mxu0 %v512
    %671 = vmatprep.subr.mxu0 0.0
    %672 = vmatpush1.msra.mxu0 %v509
    %673 = vmatprep.subr.mxu0 0.0
    %674 = vmatpush1.msra.mxu0 %v506
    %675 = vmatprep.subr.mxu0 0.0
    %676 = vmatpush2.msra.mxu0 0.0
    %677 = vmatprep.subr.mxu0 0.0
    %678 = vmatpush2.msra.mxu0 0.0
    %679 = vmatprep.subr.mxu0 0.0
    %680 = vmatpush2.msra.mxu0 0.0
    %681 = vmatprep.subr.mxu0 0.0
    %682 = vmatpush2.msra.mxu0 0.0
    %683 = vmatprep.subr.mxu0 0.0
    %684 = vmatpush2.msra.mxu0 0.0
    %685 = vmatprep.subr.mxu0 0.0
    %686 = vmatpush2.msra.mxu0 0.0
    %687 = vmatprep.subr.mxu0 0.0
    %688 = vmatpush2.msra.mxu0 0.0
    %689 = vmatprep.subr.mxu0 0.0
    %690 = vmatpush2.msra.mxu0 0.0
    %691 = vmatprep.subr.mxu0 0.0
    %692 = vmatpush2.msra.mxu0 0.0
    %693 = vmatprep.subr.mxu0 0.0
    %694 = vmatpush2.msra.mxu0 0.0
    %695 = vmatprep.subr.mxu0 0.0
    %696 = vmatpush2.msra.mxu0 0.0
    %697 = vmatprep.subr.mxu0 0.0
    %698 = vmatpush2.msra.mxu0 0.0
    %699 = vmatprep.subr.mxu0 0.0
    %700 = vmatpush2.msra.mxu0 0.0
    %701 = vmatprep.subr.mxu0 0.0
    %702 = vmatpush2.msra.mxu0 0.0
    %703 = vmatprep.subr.mxu0 0.0
    %704 = vmatpush2.msra.mxu0 0.0
    %705 = vmatprep.subr.mxu0 0.0
    %706 = vmatpush2.msra.mxu0 0.0
    %707 = vmatprep.mubr.f32.mxu0 0.0
    %708 = vmatmul.mubr.f32.gmra.mxu0 %v570
    %v709 = vpop.f32.mrf.mxu0
    %v710 = vadd.f32 %v565, %v709
    %v711 = vpop.f32.mrf.mxu0
    %712 = vdwg.mxu0
    %v714 = vrot.slane %v639, 4
    %v716 = vadd.f32 %v501, %v714
    %v717 = vxor.u32 %v716, 2147483648
    %v718 = vmul.f32 %v717, 1.442695
    %v719 = vpow.pop %v718
    %v720 = vadd.f32 %v719, 1.0
    %v721 = vrcp.pop %v720
    %v722 = vmul.f32 1.0, %v721
    %v724 = vrot.slane %v641, 4
    %v726 = vadd.f32 %v502, %v724
    %v727 = vxor.u32 %v726, 2147483648
    %v728 = vmul.f32 %v727, 1.442695
    %v729 = vpow.pop %v728
    %v730 = vadd.f32 %v729, 1.0
    %v731 = vrcp.pop %v730
    %v732 = vmul.f32 1.0, %v731
    %v734 = vrot.slane %v710, 4
    %v736 = vmul.f32 %v722, %v734
    %v737 = vadd.f32 %v503, %v736
    %v738 = vtanh.pop %v737
    %v739 = vsub.f32 1.0, %v732
    %v740 = vmul.f32 %v739, %v738
    %v741 = vrot.slane %v499, 6
    %v743 = vmul.f32 %v732, %v741
    %v744 = vadd.f32 %v740, %v743
    %745 = vst [vmem:[#allocation2] sm:$0x30] %v744
    %v746 = vld [vmem:[%s0] sm:$0xc0]
    %v747 = vld [vmem:[%s0 + $0x8] sm:$0xc0]
    %v748 = vld [vmem:[%s0 + $0x10] sm:$0xc0]
    %v749 = vld [vmem:[%s2] sm:$0xff]
    %v750 = vld [vmem:[%s2 + $0x8] sm:$0xff]
    %v751 = vld [vmem:[%s2 + $0x10] sm:$0xff]
    %v752 = vld [vmem:[%s2 + $0x18] sm:$0xff]
    %v753 = vld [vmem:[%s2 + $0x20] sm:$0xff]
    %v754 = vld [vmem:[%s2 + $0x28] sm:$0xff]
    %v755 = vld [vmem:[%s2 + $0x30] sm:$0xff]
    %v756 = vld [vmem:[%s2 + $0x38] sm:$0xff]
    %v757 = vld [vmem:[%s2 + $0x40] sm:$0xff]
    %v758 = vld [vmem:[%s2 + $0x48] sm:$0xff]
    %v759 = vld [vmem:[%s2 + $0x50] sm:$0xff]
    %v760 = vld [vmem:[%s2 + $0x58] sm:$0xff]
    %v761 = vld [vmem:[%s2 + $0x60] sm:$0xff]
    %v762 = vld [vmem:[%s2 + $0x68] sm:$0xff]
    %v763 = vld [vmem:[%s2 + $0x70] sm:$0xff]
    %v764 = vld [vmem:[%s2 + $0x78] sm:$0xff]
    %v765 = vld [vmem:[%s2 + $0x80] sm:$0xff]
    %v766 = vld [vmem:[%s2 + $0x88] sm:$0xff]
    %v767 = vld [vmem:[%s2 + $0x90] sm:$0xff]
    %v768 = vld [vmem:[%s2 + $0x98] sm:$0xff]
    %v769 = vld [vmem:[%s2 + $0xa0] sm:$0xff]
    %v770 = vld [vmem:[%s2 + $0xa8] sm:$0xff]
    %v771 = vld [vmem:[%s2 + $0xb0] sm:$0xff]
    %v772 = vld [vmem:[%s2 + $0xb8] sm:$0xff]
    %v773 = vld [vmem:[%s2 + $0xc0] sm:$0xff]
    %v774 = vld [vmem:[%s2 + $0xc8] sm:$0xff]
    %v775 = vld [vmem:[%s2 + $0xd0] sm:$0xff]
    %v776 = vld [vmem:[%s2 + $0xd8] sm:$0xff]
    %v777 = vld [vmem:[%s2 + $0xe0] sm:$0xff]
    %v778 = vld [vmem:[%s2 + $0xe8] sm:$0xff]
    %v779 = vld [vmem:[%s2 + $0xf0] sm:$0xff]
    %v780 = vld [vmem:[%s2 + $0xf8] sm:$0xff]
    %v781 = vld [vmem:[%s2 + $0x100] sm:$0xff]
    %v782 = vld [vmem:[%s2 + $0x108] sm:$0xff]
    %v783 = vld [vmem:[%s2 + $0x110] sm:$0xff]
    %v784 = vld [vmem:[%s2 + $0x118] sm:$0xff]
    %v785 = vld [vmem:[%s2 + $0x120] sm:$0xff]
    %v786 = vld [vmem:[%s2 + $0x128] sm:$0xff]
    %v787 = vld [vmem:[%s2 + $0x130] sm:$0xff]
    %v788 = vld [vmem:[%s2 + $0x138] sm:$0xff]
    %v789 = vld [vmem:[%s2 + $0x140] sm:$0xff]
    %v790 = vld [vmem:[%s2 + $0x148] sm:$0xff]
    %v791 = vld [vmem:[%s2 + $0x150] sm:$0xff]
    %v792 = vld [vmem:[%s2 + $0x158] sm:$0xff]
    %v793 = vld [vmem:[%s2 + $0x160] sm:$0xff]
    %v794 = vld [vmem:[%s2 + $0x168] sm:$0xff]
    %v795 = vld [vmem:[%s2 + $0x170] sm:$0xff]
    %v796 = vld [vmem:[%s2 + $0x178] sm:$0xff]
    %v797 = vld [vmem:[%s3] sm:$0x7]
    %v799 = vlaneseq
    %v800 = vshrl.u32 %v799, 7
    %v801 = vsub.s32 0, %v800
    %v802 = vrot.slane %v797, %v801
    %v803 = vlaneseq
    %v804 = vshrl.u32 %v803, 7
    %v805 = vsub.s32 1, %v804
    %v806 = vrot.slane %v797, %v805
    %v807 = vlaneseq
    %v808 = vshrl.u32 %v807, 7
    %v809 = vsub.s32 2, %v808
    %v810 = vrot.slane %v797, %v809
    %v815 = vrot.slane %v744, 4
    %817 = vmatprep.subr.mxu0 %v795
    %818 = vmatpush1.msra.mxu0 %v794
    %819 = vmatprep.subr.mxu0 %v792
    %820 = vmatpush1.msra.mxu0 %v791
    %821 = vmatprep.subr.mxu0 %v789
    %822 = vmatpush1.msra.mxu0 %v788
    %823 = vmatprep.subr.mxu0 %v786
    %824 = vmatpush1.msra.mxu0 %v785
    %825 = vmatprep.subr.mxu0 %v783
    %826 = vmatpush1.msra.mxu0 %v782
    %827 = vmatprep.subr.mxu0 %v780
    %828 = vmatpush1.msra.mxu0 %v779
    %829 = vmatprep.subr.mxu0 %v777
    %830 = vmatpush1.msra.mxu0 %v776
    %831 = vmatprep.subr.mxu0 %v774
    %832 = vmatpush1.msra.mxu0 %v773
    %833 = vmatprep.subr.mxu0 %v771
    %834 = vmatpush1.msra.mxu0 %v770
    %835 = vmatprep.subr.mxu0 %v768
    %836 = vmatpush1.msra.mxu0 %v767
    %837 = vmatprep.subr.mxu0 %v765
    %838 = vmatpush1.msra.mxu0 %v764
    %839 = vmatprep.subr.mxu0 %v762
    %840 = vmatpush1.msra.mxu0 %v761
    %841 = vmatprep.subr.mxu0 %v759
    %842 = vmatpush1.msra.mxu0 %v758
    %843 = vmatprep.subr.mxu0 %v756
    %844 = vmatpush1.msra.mxu0 %v755
    %845 = vmatprep.subr.mxu0 %v753
    %846 = vmatpush1.msra.mxu0 %v752
    %847 = vmatprep.subr.mxu0 %v750
    %848 = vmatpush1.msra.mxu0 %v749
    %849 = vmatprep.subr.mxu0 0.0
    %850 = vmatpush2.msra.mxu0 0.0
    %851 = vmatprep.subr.mxu0 0.0
    %852 = vmatpush2.msra.mxu0 0.0
    %853 = vmatprep.subr.mxu0 0.0
    %854 = vmatpush2.msra.mxu0 0.0
    %855 = vmatprep.subr.mxu0 0.0
    %856 = vmatpush2.msra.mxu0 0.0
    %857 = vmatprep.subr.mxu0 0.0
    %858 = vmatpush2.msra.mxu0 0.0
    %859 = vmatprep.subr.mxu0 0.0
    %860 = vmatpush2.msra.mxu0 0.0
    %861 = vmatprep.subr.mxu0 0.0
    %862 = vmatpush2.msra.mxu0 0.0
    %863 = vmatprep.subr.mxu0 0.0
    %864 = vmatpush2.msra.mxu0 0.0
    %865 = vmatprep.subr.mxu0 0.0
    %866 = vmatpush2.msra.mxu0 0.0
    %867 = vmatprep.subr.mxu0 0.0
    %868 = vmatpush2.msra.mxu0 0.0
    %869 = vmatprep.subr.mxu0 0.0
    %870 = vmatpush2.msra.mxu0 0.0
    %871 = vmatprep.subr.mxu0 0.0
    %872 = vmatpush2.msra.mxu0 0.0
    %873 = vmatprep.subr.mxu0 0.0
    %874 = vmatpush2.msra.mxu0 0.0
    %875 = vmatprep.subr.mxu0 0.0
    %876 = vmatpush2.msra.mxu0 0.0
    %877 = vmatprep.subr.mxu0 0.0
    %878 = vmatpush2.msra.mxu0 0.0
    %879 = vmatprep.subr.mxu0 0.0
    %880 = vmatpush2.msra.mxu0 0.0
    %881 = vmatprep.mubr.f32.mxu0 0.0
    %882 = vmatmul.mubr.f32.gmra.mxu0 %v815
    %v883 = vpop.f32.mrf.mxu0
    %v884 = vadd.f32 %v802, %v883
    %v885 = vpop.f32.mrf.mxu0
    %v886 = vadd.f32 %v806, %v885
    %887 = vdwg.mxu0
    %888 = vmatprep.subr.mxu0 0.0
    %889 = vmatpush1.msra.mxu0 %v796
    %890 = vmatprep.subr.mxu0 0.0
    %891 = vmatpush1.msra.mxu0 %v793
    %892 = vmatprep.subr.mxu0 0.0
    %893 = vmatpush1.msra.mxu0 %v790
    %894 = vmatprep.subr.mxu0 0.0
    %895 = vmatpush1.msra.mxu0 %v787
    %896 = vmatprep.subr.mxu0 0.0
    %897 = vmatpush1.msra.mxu0 %v784
    %898 = vmatprep.subr.mxu0 0.0
    %899 = vmatpush1.msra.mxu0 %v781
    %900 = vmatprep.subr.mxu0 0.0
    %901 = vmatpush1.msra.mxu0 %v778
    %902 = vmatprep.subr.mxu0 0.0
    %903 = vmatpush1.msra.mxu0 %v775
    %904 = vmatprep.subr.mxu0 0.0
    %905 = vmatpush1.msra.mxu0 %v772
    %906 = vmatprep.subr.mxu0 0.0
    %907 = vmatpush1.msra.mxu0 %v769
    %908 = vmatprep.subr.mxu0 0.0
    %909 = vmatpush1.msra.mxu0 %v766
    %910 = vmatprep.subr.mxu0 0.0
    %911 = vmatpush1.msra.mxu0 %v763
    %912 = vmatprep.subr.mxu0 0.0
    %913 = vmatpush1.msra.mxu0 %v760
    %914 = vmatprep.subr.mxu0 0.0
    %915 = vmatpush1.msra.mxu0 %v757
    %916 = vmatprep.subr.mxu0 0.0
    %917 = vmatpush1.msra.mxu0 %v754
    %918 = vmatprep.subr.mxu0 0.0
    %919 = vmatpush1.msra.mxu0 %v751
    %920 = vmatprep.subr.mxu0 0.0
    %921 = vmatpush2.msra.mxu0 0.0
    %922 = vmatprep.subr.mxu0 0.0
    %923 = vmatpush2.msra.mxu0 0.0
    %924 = vmatprep.subr.mxu0 0.0
    %925 = vmatpush2.msra.mxu0 0.0
    %926 = vmatprep.subr.mxu0 0.0
    %927 = vmatpush2.msra.mxu0 0.0
    %928 = vmatprep.subr.mxu0 0.0
    %929 = vmatpush2.msra.mxu0 0.0
    %930 = vmatprep.subr.mxu0 0.0
    %931 = vmatpush2.msra.mxu0 0.0
    %932 = vmatprep.subr.mxu0 0.0
    %933 = vmatpush2.msra.mxu0 0.0
    %934 = vmatprep.subr.mxu0 0.0
    %935 = vmatpush2.msra.mxu0 0.0
    %936 = vmatprep.subr.mxu0 0.0
    %937 = vmatpush2.msra.mxu0 0.0
    %938 = vmatprep.subr.mxu0 0.0
    %939 = vmatpush2.msra.mxu0 0.0
    %940 = vmatprep.subr.mxu0 0.0
    %941 = vmatpush2.msra.mxu0 0.0
    %942 = vmatprep.subr.mxu0 0.0
    %943 = vmatpush2.msra.mxu0 0.0
    %944 = vmatprep.subr.mxu0 0.0
    %945 = vmatpush2.msra.mxu0 0.0
    %946 = vmatprep.subr.mxu0 0.0
    %947 = vmatpush2.msra.mxu0 0.0
    %948 = vmatprep.subr.mxu0 0.0
    %949 = vmatpush2.msra.mxu0 0.0
    %950 = vmatprep.subr.mxu0 0.0
    %951 = vmatpush2.msra.mxu0 0.0
    %952 = vmatprep.mubr.f32.mxu0 0.0
    %953 = vmatmul.mubr.f32.gmra.mxu0 %v815
    %v954 = vpop.f32.mrf.mxu0
    %v955 = vadd.f32 %v810, %v954
    %v956 = vpop.f32.mrf.mxu0
    %957 = vdwg.mxu0
    %v959 = vrot.slane %v884, 2
    %v961 = vadd.f32 %v746, %v959
    %v962 = vxor.u32 %v961, 2147483648
    %v963 = vmul.f32 %v962, 1.442695
    %v964 = vpow.pop %v963
    %v965 = vadd.f32 %v964, 1.0
    %v966 = vrcp.pop %v965
    %v967 = vmul.f32 1.0, %v966
    %v969 = vrot.slane %v886, 2
    %v971 = vadd.f32 %v747, %v969
    %v972 = vxor.u32 %v971, 2147483648
    %v973 = vmul.f32 %v972, 1.442695
    %v974 = vpow.pop %v973
    %v975 = vadd.f32 %v974, 1.0
    %v976 = vrcp.pop %v975
    %v977 = vmul.f32 1.0, %v976
    %v979 = vrot.slane %v955, 2
    %v981 = vmul.f32 %v967, %v979
    %v982 = vadd.f32 %v748, %v981
    %v983 = vtanh.pop %v982
    %v984 = vsub.f32 1.0, %v977
    %v985 = vmul.f32 %v984, %v983
    %v986 = vrot.slane %v744, 6
    %v988 = vmul.f32 %v977, %v986
    %v989 = vadd.f32 %v985, %v988
    %990 = vst [vmem:[#allocation2] sm:$0xc0] %v989
    %v991 = vld [vmem:[%s0 + $0x18] sm:$0x3]
    %v992 = vld [vmem:[%s0 + $0x20] sm:$0x3]
    %v993 = vld [vmem:[%s0 + $0x28] sm:$0x3]
    %v994 = vld [vmem:[%s2] sm:$0xff]
    %v995 = vld [vmem:[%s2 + $0x8] sm:$0xff]
    %v996 = vld [vmem:[%s2 + $0x10] sm:$0xff]
    %v997 = vld [vmem:[%s2 + $0x18] sm:$0xff]
    %v998 = vld [vmem:[%s2 + $0x20] sm:$0xff]
    %v999 = vld [vmem:[%s2 + $0x28] sm:$0xff]
    %v1000 = vld [vmem:[%s2 + $0x30] sm:$0xff]
    %v1001 = vld [vmem:[%s2 + $0x38] sm:$0xff]
    %v1002 = vld [vmem:[%s2 + $0x40] sm:$0xff]
    %v1003 = vld [vmem:[%s2 + $0x48] sm:$0xff]
    %v1004 = vld [vmem:[%s2 + $0x50] sm:$0xff]
    %v1005 = vld [vmem:[%s2 + $0x58] sm:$0xff]
    %v1006 = vld [vmem:[%s2 + $0x60] sm:$0xff]
    %v1007 = vld [vmem:[%s2 + $0x68] sm:$0xff]
    %v1008 = vld [vmem:[%s2 + $0x70] sm:$0xff]
    %v1009 = vld [vmem:[%s2 + $0x78] sm:$0xff]
    %v1010 = vld [vmem:[%s2 + $0x80] sm:$0xff]
    %v1011 = vld [vmem:[%s2 + $0x88] sm:$0xff]
    %v1012 = vld [vmem:[%s2 + $0x90] sm:$0xff]
    %v1013 = vld [vmem:[%s2 + $0x98] sm:$0xff]
    %v1014 = vld [vmem:[%s2 + $0xa0] sm:$0xff]
    %v1015 = vld [vmem:[%s2 + $0xa8] sm:$0xff]
    %v1016 = vld [vmem:[%s2 + $0xb0] sm:$0xff]
    %v1017 = vld [vmem:[%s2 + $0xb8] sm:$0xff]
    %v1018 = vld [vmem:[%s2 + $0xc0] sm:$0xff]
    %v1019 = vld [vmem:[%s2 + $0xc8] sm:$0xff]
    %v1020 = vld [vmem:[%s2 + $0xd0] sm:$0xff]
    %v1021 = vld [vmem:[%s2 + $0xd8] sm:$0xff]
    %v1022 = vld [vmem:[%s2 + $0xe0] sm:$0xff]
    %v1023 = vld [vmem:[%s2 + $0xe8] sm:$0xff]
    %v1024 = vld [vmem:[%s2 + $0xf0] sm:$0xff]
    %v1025 = vld [vmem:[%s2 + $0xf8] sm:$0xff]
    %v1026 = vld [vmem:[%s2 + $0x100] sm:$0xff]
    %v1027 = vld [vmem:[%s2 + $0x108] sm:$0xff]
    %v1028 = vld [vmem:[%s2 + $0x110] sm:$0xff]
    %v1029 = vld [vmem:[%s2 + $0x118] sm:$0xff]
    %v1030 = vld [vmem:[%s2 + $0x120] sm:$0xff]
    %v1031 = vld [vmem:[%s2 + $0x128] sm:$0xff]
    %v1032 = vld [vmem:[%s2 + $0x130] sm:$0xff]
    %v1033 = vld [vmem:[%s2 + $0x138] sm:$0xff]
    %v1034 = vld [vmem:[%s2 + $0x140] sm:$0xff]
    %v1035 = vld [vmem:[%s2 + $0x148] sm:$0xff]
    %v1036 = vld [vmem:[%s2 + $0x150] sm:$0xff]
    %v1037 = vld [vmem:[%s2 + $0x158] sm:$0xff]
    %v1038 = vld [vmem:[%s2 + $0x160] sm:$0xff]
    %v1039 = vld [vmem:[%s2 + $0x168] sm:$0xff]
    %v1040 = vld [vmem:[%s2 + $0x170] sm:$0xff]
    %v1041 = vld [vmem:[%s2 + $0x178] sm:$0xff]
    %v1042 = vld [vmem:[%s3] sm:$0x7]
    %v1044 = vlaneseq
    %v1045 = vshrl.u32 %v1044, 7
    %v1046 = vsub.s32 0, %v1045
    %v1047 = vrot.slane %v1042, %v1046
    %v1048 = vlaneseq
    %v1049 = vshrl.u32 %v1048, 7
    %v1050 = vsub.s32 1, %v1049
    %v1051 = vrot.slane %v1042, %v1050
    %v1052 = vlaneseq
    %v1053 = vshrl.u32 %v1052, 7
    %v1054 = vsub.s32 2, %v1053
    %v1055 = vrot.slane %v1042, %v1054
    %v1060 = vrot.slane %v989, 6
    %1062 = vmatprep.subr.mxu0 %v1040
    %1063 = vmatpush1.msra.mxu0 %v1039
    %1064 = vmatprep.subr.mxu0 %v1037
    %1065 = vmatpush1.msra.mxu0 %v1036
    %1066 = vmatprep.subr.mxu0 %v1034
    %1067 = vmatpush1.msra.mxu0 %v1033
    %1068 = vmatprep.subr.mxu0 %v1031
    %1069 = vmatpush1.msra.mxu0 %v1030
    %1070 = vmatprep.subr.mxu0 %v1028
    %1071 = vmatpush1.msra.mxu0 %v1027
    %1072 = vmatprep.subr.mxu0 %v1025
    %1073 = vmatpush1.msra.mxu0 %v1024
    %1074 = vmatprep.subr.mxu0 %v1022
    %1075 = vmatpush1.msra.mxu0 %v1021
    %1076 = vmatprep.subr.mxu0 %v1019
    %1077 = vmatpush1.msra.mxu0 %v1018
    %1078 = vmatprep.subr.mxu0 %v1016
    %1079 = vmatpush1.msra.mxu0 %v1015
    %1080 = vmatprep.subr.mxu0 %v1013
    %1081 = vmatpush1.msra.mxu0 %v1012
    %1082 = vmatprep.subr.mxu0 %v1010
    %1083 = vmatpush1.msra.mxu0 %v1009
    %1084 = vmatprep.subr.mxu0 %v1007
    %1085 = vmatpush1.msra.mxu0 %v1006
    %1086 = vmatprep.subr.mxu0 %v1004
    %1087 = vmatpush1.msra.mxu0 %v1003
    %1088 = vmatprep.subr.mxu0 %v1001
    %1089 = vmatpush1.msra.mxu0 %v1000
    %1090 = vmatprep.subr.mxu0 %v998
    %1091 = vmatpush1.msra.mxu0 %v997
    %1092 = vmatprep.subr.mxu0 %v995
    %1093 = vmatpush1.msra.mxu0 %v994
    %1094 = vmatprep.subr.mxu0 0.0
    %1095 = vmatpush2.msra.mxu0 0.0
    %1096 = vmatprep.subr.mxu0 0.0
    %1097 = vmatpush2.msra.mxu0 0.0
    %1098 = vmatprep.subr.mxu0 0.0
    %1099 = vmatpush2.msra.mxu0 0.0
    %1100 = vmatprep.subr.mxu0 0.0
    %1101 = vmatpush2.msra.mxu0 0.0
    %1102 = vmatprep.subr.mxu0 0.0
    %1103 = vmatpush2.msra.mxu0 0.0
    %1104 = vmatprep.subr.mxu0 0.0
    %1105 = vmatpush2.msra.mxu0 0.0
    %1106 = vmatprep.subr.mxu0 0.0
    %1107 = vmatpush2.msra.mxu0 0.0
    %1108 = vmatprep.subr.mxu0 0.0
    %1109 = vmatpush2.msra.mxu0 0.0
    %1110 = vmatprep.subr.mxu0 0.0
    %1111 = vmatpush2.msra.mxu0 0.0
    %1112 = vmatprep.subr.mxu0 0.0
    %1113 = vmatpush2.msra.mxu0 0.0
    %1114 = vmatprep.subr.mxu0 0.0
    %1115 = vmatpush2.msra.mxu0 0.0
    %1116 = vmatprep.subr.mxu0 0.0
    %1117 = vmatpush2.msra.mxu0 0.0
    %1118 = vmatprep.subr.mxu0 0.0
    %1119 = vmatpush2.msra.mxu0 0.0
    %1120 = vmatprep.subr.mxu0 0.0
    %1121 = vmatpush2.msra.mxu0 0.0
    %1122 = vmatprep.subr.mxu0 0.0
    %1123 = vmatpush2.msra.mxu0 0.0
    %1124 = vmatprep.subr.mxu0 0.0
    %1125 = vmatpush2.msra.mxu0 0.0
    %1126 = vmatprep.mubr.f32.mxu0 0.0
    %1127 = vmatmul.mubr.f32.gmra.mxu0 %v1060
    %v1128 = vpop.f32.mrf.mxu0
    %v1129 = vadd.f32 %v1047, %v1128
    %v1130 = vpop.f32.mrf.mxu0
    %v1131 = vadd.f32 %v1051, %v1130
    %1132 = vdwg.mxu0
    %1133 = vmatprep.subr.mxu0 0.0
    %1134 = vmatpush1.msra.mxu0 %v1041
    %1135 = vmatprep.subr.mxu0 0.0
    %1136 = vmatpush1.msra.mxu0 %v1038
    %1137 = vmatprep.subr.mxu0 0.0
    %1138 = vmatpush1.msra.mxu0 %v1035
    %1139 = vmatprep.subr.mxu0 0.0
    %1140 = vmatpush1.msra.mxu0 %v1032
    %1141 = vmatprep.subr.mxu0 0.0
    %1142 = vmatpush1.msra.mxu0 %v1029
    %1143 = vmatprep.subr.mxu0 0.0
    %1144 = vmatpush1.msra.mxu0 %v1026
    %1145 = vmatprep.subr.mxu0 0.0
    %1146 = vmatpush1.msra.mxu0 %v1023
    %1147 = vmatprep.subr.mxu0 0.0
    %1148 = vmatpush1.msra.mxu0 %v1020
    %1149 = vmatprep.subr.mxu0 0.0
    %1150 = vmatpush1.msra.mxu0 %v1017
    %1151 = vmatprep.subr.mxu0 0.0
    %1152 = vmatpush1.msra.mxu0 %v1014
    %1153 = vmatprep.subr.mxu0 0.0
    %1154 = vmatpush1.msra.mxu0 %v1011
    %1155 = vmatprep.subr.mxu0 0.0
    %1156 = vmatpush1.msra.mxu0 %v1008
    %1157 = vmatprep.subr.mxu0 0.0
    %1158 = vmatpush1.msra.mxu0 %v1005
    %1159 = vmatprep.subr.mxu0 0.0
    %1160 = vmatpush1.msra.mxu0 %v1002
    %1161 = vmatprep.subr.mxu0 0.0
    %1162 = vmatpush1.msra.mxu0 %v999
    %1163 = vmatprep.subr.mxu0 0.0
    %1164 = vmatpush1.msra.mxu0 %v996
    %1165 = vmatprep.subr.mxu0 0.0
    %1166 = vmatpush2.msra.mxu0 0.0
    %1167 = vmatprep.subr.mxu0 0.0
    %1168 = vmatpush2.msra.mxu0 0.0
    %1169 = vmatprep.subr.mxu0 0.0
    %1170 = vmatpush2.msra.mxu0 0.0
    %1171 = vmatprep.subr.mxu0 0.0
    %1172 = vmatpush2.msra.mxu0 0.0
    %1173 = vmatprep.subr.mxu0 0.0
    %1174 = vmatpush2.msra.mxu0 0.0
    %1175 = vmatprep.subr.mxu0 0.0
    %1176 = vmatpush2.msra.mxu0 0.0
    %1177 = vmatprep.subr.mxu0 0.0
    %1178 = vmatpush2.msra.mxu0 0.0
    %1179 = vmatprep.subr.mxu0 0.0
    %1180 = vmatpush2.msra.mxu0 0.0
    %1181 = vmatprep.subr.mxu0 0.0
    %1182 = vmatpush2.msra.mxu0 0.0
    %1183 = vmatprep.subr.mxu0 0.0
    %1184 = vmatpush2.msra.mxu0 0.0
    %1185 = vmatprep.subr.mxu0 0.0
    %1186 = vmatpush2.msra.mxu0 0.0
    %1187 = vmatprep.subr.mxu0 0.0
    %1188 = vmatpush2.msra.mxu0 0.0
    %1189 = vmatprep.subr.mxu0 0.0
    %1190 = vmatpush2.msra.mxu0 0.0
    %1191 = vmatprep.subr.mxu0 0.0
    %1192 = vmatpush2.msra.mxu0 0.0
    %1193 = vmatprep.subr.mxu0 0.0
    %1194 = vmatpush2.msra.mxu0 0.0
    %1195 = vmatprep.subr.mxu0 0.0
    %1196 = vmatpush2.msra.mxu0 0.0
    %1197 = vmatprep.mubr.f32.mxu0 0.0
    %1198 = vmatmul.mubr.f32.gmra.mxu0 %v1060
    %v1199 = vpop.f32.mrf.mxu0
    %v1200 = vadd.f32 %v1055, %v1199
    %v1201 = vpop.f32.mrf.mxu0
    %1202 = vdwg.mxu0
    %v1203 = vadd.f32 %v991, %v1129
    %v1204 = vxor.u32 %v1203, 2147483648
    %v1205 = vmul.f32 %v1204, 1.442695
    %v1206 = vpow.pop %v1205
    %v1207 = vadd.f32 %v1206, 1.0
    %v1208 = vrcp.pop %v1207
    %v1209 = vmul.f32 1.0, %v1208
    %v1210 = vadd.f32 %v992, %v1131
    %v1211 = vxor.u32 %v1210, 2147483648
    %v1212 = vmul.f32 %v1211, 1.442695
    %v1213 = vpow.pop %v1212
    %v1214 = vadd.f32 %v1213, 1.0
    %v1215 = vrcp.pop %v1214
    %v1216 = vmul.f32 1.0, %v1215
    %v1217 = vmul.f32 %v1209, %v1200
    %v1218 = vadd.f32 %v993, %v1217
    %v1219 = vtanh.pop %v1218
    %v1220 = vsub.f32 1.0, %v1216
    %v1221 = vmul.f32 %v1220, %v1219
    %v1222 = vmul.f32 %v1216, %v1060
    %v1223 = vadd.f32 %v1221, %v1222
    %1224 = vst [vmem:[#allocation2 + $0x8] sm:$0x3] %v1223
    %v1225 = vld [vmem:[%s0 + $0x18] sm:$0xc]
    %v1226 = vld [vmem:[%s0 + $0x20] sm:$0xc]
    %v1227 = vld [vmem:[%s0 + $0x28] sm:$0xc]
    %v1228 = vld [vmem:[%s2] sm:$0xff]
    %v1229 = vld [vmem:[%s2 + $0x8] sm:$0xff]
    %v1230 = vld [vmem:[%s2 + $0x10] sm:$0xff]
    %v1231 = vld [vmem:[%s2 + $0x18] sm:$0xff]
    %v1232 = vld [vmem:[%s2 + $0x20] sm:$0xff]
    %v1233 = vld [vmem:[%s2 + $0x28] sm:$0xff]
    %v1234 = vld [vmem:[%s2 + $0x30] sm:$0xff]
    %v1235 = vld [vmem:[%s2 + $0x38] sm:$0xff]
    %v1236 = vld [vmem:[%s2 + $0x40] sm:$0xff]
    %v1237 = vld [vmem:[%s2 + $0x48] sm:$0xff]
    %v1238 = vld [vmem:[%s2 + $0x50] sm:$0xff]
    %v1239 = vld [vmem:[%s2 + $0x58] sm:$0xff]
    %v1240 = vld [vmem:[%s2 + $0x60] sm:$0xff]
    %v1241 = vld [vmem:[%s2 + $0x68] sm:$0xff]
    %v1242 = vld [vmem:[%s2 + $0x70] sm:$0xff]
    %v1243 = vld [vmem:[%s2 + $0x78] sm:$0xff]
    %v1244 = vld [vmem:[%s2 + $0x80] sm:$0xff]
    %v1245 = vld [vmem:[%s2 + $0x88] sm:$0xff]
    %v1246 = vld [vmem:[%s2 + $0x90] sm:$0xff]
    %v1247 = vld [vmem:[%s2 + $0x98] sm:$0xff]
    %v1248 = vld [vmem:[%s2 + $0xa0] sm:$0xff]
    %v1249 = vld [vmem:[%s2 + $0xa8] sm:$0xff]
    %v1250 = vld [vmem:[%s2 + $0xb0] sm:$0xff]
    %v1251 = vld [vmem:[%s2 + $0xb8] sm:$0xff]
    %v1252 = vld [vmem:[%s2 + $0xc0] sm:$0xff]
    %v1253 = vld [vmem:[%s2 + $0xc8] sm:$0xff]
    %v1254 = vld [vmem:[%s2 + $0xd0] sm:$0xff]
    %v1255 = vld [vmem:[%s2 + $0xd8] sm:$0xff]
    %v1256 = vld [vmem:[%s2 + $0xe0] sm:$0xff]
    %v1257 = vld [vmem:[%s2 + $0xe8] sm:$0xff]
    %v1258 = vld [vmem:[%s2 + $0xf0] sm:$0xff]
    %v1259 = vld [vmem:[%s2 + $0xf8] sm:$0xff]
    %v1260 = vld [vmem:[%s2 + $0x100] sm:$0xff]
    %v1261 = vld [vmem:[%s2 + $0x108] sm:$0xff]
    %v1262 = vld [vmem:[%s2 + $0x110] sm:$0xff]
    %v1263 = vld [vmem:[%s2 + $0x118] sm:$0xff]
    %v1264 = vld [vmem:[%s2 + $0x120] sm:$0xff]
    %v1265 = vld [vmem:[%s2 + $0x128] sm:$0xff]
    %v1266 = vld [vmem:[%s2 + $0x130] sm:$0xff]
    %v1267 = vld [vmem:[%s2 + $0x138] sm:$0xff]
    %v1268 = vld [vmem:[%s2 + $0x140] sm:$0xff]
    %v1269 = vld [vmem:[%s2 + $0x148] sm:$0xff]
    %v1270 = vld [vmem:[%s2 + $0x150] sm:$0xff]
    %v1271 = vld [vmem:[%s2 + $0x158] sm:$0xff]
    %v1272 = vld [vmem:[%s2 + $0x160] sm:$0xff]
    %v1273 = vld [vmem:[%s2 + $0x168] sm:$0xff]
    %v1274 = vld [vmem:[%s2 + $0x170] sm:$0xff]
    %v1275 = vld [vmem:[%s2 + $0x178] sm:$0xff]
    %v1276 = vld [vmem:[%s3] sm:$0x7]
    %v1278 = vlaneseq
    %v1279 = vshrl.u32 %v1278, 7
    %v1280 = vsub.s32 0, %v1279
    %v1281 = vrot.slane %v1276, %v1280
    %v1282 = vlaneseq
    %v1283 = vshrl.u32 %v1282, 7
    %v1284 = vsub.s32 1, %v1283
    %v1285 = vrot.slane %v1276, %v1284
    %v1286 = vlaneseq
    %v1287 = vshrl.u32 %v1286, 7
    %v1288 = vsub.s32 2, %v1287
    %v1289 = vrot.slane %v1276, %v1288
    %1293 = vmatprep.subr.mxu0 %v1274
    %1294 = vmatpush1.msra.mxu0 %v1273
    %1295 = vmatprep.subr.mxu0 %v1271
    %1296 = vmatpush1.msra.mxu0 %v1270
    %1297 = vmatprep.subr.mxu0 %v1268
    %1298 = vmatpush1.msra.mxu0 %v1267
    %1299 = vmatprep.subr.mxu0 %v1265
    %1300 = vmatpush1.msra.mxu0 %v1264
    %1301 = vmatprep.subr.mxu0 %v1262
    %1302 = vmatpush1.msra.mxu0 %v1261
    %1303 = vmatprep.subr.mxu0 %v1259
    %1304 = vmatpush1.msra.mxu0 %v1258
    %1305 = vmatprep.subr.mxu0 %v1256
    %1306 = vmatpush1.msra.mxu0 %v1255
    %1307 = vmatprep.subr.mxu0 %v1253
    %1308 = vmatpush1.msra.mxu0 %v1252
    %1309 = vmatprep.subr.mxu0 %v1250
    %1310 = vmatpush1.msra.mxu0 %v1249
    %1311 = vmatprep.subr.mxu0 %v1247
    %1312 = vmatpush1.msra.mxu0 %v1246
    %1313 = vmatprep.subr.mxu0 %v1244
    %1314 = vmatpush1.msra.mxu0 %v1243
    %1315 = vmatprep.subr.mxu0 %v1241
    %1316 = vmatpush1.msra.mxu0 %v1240
    %1317 = vmatprep.subr.mxu0 %v1238
    %1318 = vmatpush1.msra.mxu0 %v1237
    %1319 = vmatprep.subr.mxu0 %v1235
    %1320 = vmatpush1.msra.mxu0 %v1234
    %1321 = vmatprep.subr.mxu0 %v1232
    %1322 = vmatpush1.msra.mxu0 %v1231
    %1323 = vmatprep.subr.mxu0 %v1229
    %1324 = vmatpush1.msra.mxu0 %v1228
    %1325 = vmatprep.subr.mxu0 0.0
    %1326 = vmatpush2.msra.mxu0 0.0
    %1327 = vmatprep.subr.mxu0 0.0
    %1328 = vmatpush2.msra.mxu0 0.0
    %1329 = vmatprep.subr.mxu0 0.0
    %1330 = vmatpush2.msra.mxu0 0.0
    %1331 = vmatprep.subr.mxu0 0.0
    %1332 = vmatpush2.msra.mxu0 0.0
    %1333 = vmatprep.subr.mxu0 0.0
    %1334 = vmatpush2.msra.mxu0 0.0
    %1335 = vmatprep.subr.mxu0 0.0
    %1336 = vmatpush2.msra.mxu0 0.0
    %1337 = vmatprep.subr.mxu0 0.0
    %1338 = vmatpush2.msra.mxu0 0.0
    %1339 = vmatprep.subr.mxu0 0.0
    %1340 = vmatpush2.msra.mxu0 0.0
    %1341 = vmatprep.subr.mxu0 0.0
    %1342 = vmatpush2.msra.mxu0 0.0
    %1343 = vmatprep.subr.mxu0 0.0
    %1344 = vmatpush2.msra.mxu0 0.0
    %1345 = vmatprep.subr.mxu0 0.0
    %1346 = vmatpush2.msra.mxu0 0.0
    %1347 = vmatprep.subr.mxu0 0.0
    %1348 = vmatpush2.msra.mxu0 0.0
    %1349 = vmatprep.subr.mxu0 0.0
    %1350 = vmatpush2.msra.mxu0 0.0
    %1351 = vmatprep.subr.mxu0 0.0
    %1352 = vmatpush2.msra.mxu0 0.0
    %1353 = vmatprep.subr.mxu0 0.0
    %1354 = vmatpush2.msra.mxu0 0.0
    %1355 = vmatprep.subr.mxu0 0.0
    %1356 = vmatpush2.msra.mxu0 0.0
    %1357 = vmatprep.mubr.f32.mxu0 0.0
    %1358 = vmatmul.mubr.f32.gmra.mxu0 %v1223
    %v1359 = vpop.f32.mrf.mxu0
    %v1360 = vadd.f32 %v1281, %v1359
    %v1361 = vpop.f32.mrf.mxu0
    %v1362 = vadd.f32 %v1285, %v1361
    %1363 = vdwg.mxu0
    %1364 = vmatprep.subr.mxu0 0.0
    %1365 = vmatpush1.msra.mxu0 %v1275
    %1366 = vmatprep.subr.mxu0 0.0
    %1367 = vmatpush1.msra.mxu0 %v1272
    %1368 = vmatprep.subr.mxu0 0.0
    %1369 = vmatpush1.msra.mxu0 %v1269
    %1370 = vmatprep.subr.mxu0 0.0
    %1371 = vmatpush1.msra.mxu0 %v1266
    %1372 = vmatprep.subr.mxu0 0.0
    %1373 = vmatpush1.msra.mxu0 %v1263
    %1374 = vmatprep.subr.mxu0 0.0
    %1375 = vmatpush1.msra.mxu0 %v1260
    %1376 = vmatprep.subr.mxu0 0.0
    %1377 = vmatpush1.msra.mxu0 %v1257
    %1378 = vmatprep.subr.mxu0 0.0
    %1379 = vmatpush1.msra.mxu0 %v1254
    %1380 = vmatprep.subr.mxu0 0.0
    %1381 = vmatpush1.msra.mxu0 %v1251
    %1382 = vmatprep.subr.mxu0 0.0
    %1383 = vmatpush1.msra.mxu0 %v1248
    %1384 = vmatprep.subr.mxu0 0.0
    %1385 = vmatpush1.msra.mxu0 %v1245
    %1386 = vmatprep.subr.mxu0 0.0
    %1387 = vmatpush1.msra.mxu0 %v1242
    %1388 = vmatprep.subr.mxu0 0.0
    %1389 = vmatpush1.msra.mxu0 %v1239
    %1390 = vmatprep.subr.mxu0 0.0
    %1391 = vmatpush1.msra.mxu0 %v1236
    %1392 = vmatprep.subr.mxu0 0.0
    %1393 = vmatpush1.msra.mxu0 %v1233
    %1394 = vmatprep.subr.mxu0 0.0
    %1395 = vmatpush1.msra.mxu0 %v1230
    %1396 = vmatprep.subr.mxu0 0.0
    %1397 = vmatpush2.msra.mxu0 0.0
    %1398 = vmatprep.subr.mxu0 0.0
    %1399 = vmatpush2.msra.mxu0 0.0
    %1400 = vmatprep.subr.mxu0 0.0
    %1401 = vmatpush2.msra.mxu0 0.0
    %1402 = vmatprep.subr.mxu0 0.0
    %1403 = vmatpush2.msra.mxu0 0.0
    %1404 = vmatprep.subr.mxu0 0.0
    %1405 = vmatpush2.msra.mxu0 0.0
    %1406 = vmatprep.subr.mxu0 0.0
    %1407 = vmatpush2.msra.mxu0 0.0
    %1408 = vmatprep.subr.mxu0 0.0
    %1409 = vmatpush2.msra.mxu0 0.0
    %1410 = vmatprep.subr.mxu0 0.0
    %1411 = vmatpush2.msra.mxu0 0.0
    %1412 = vmatprep.subr.mxu0 0.0
    %1413 = vmatpush2.msra.mxu0 0.0
    %1414 = vmatprep.subr.mxu0 0.0
    %1415 = vmatpush2.msra.mxu0 0.0
    %1416 = vmatprep.subr.mxu0 0.0
    %1417 = vmatpush2.msra.mxu0 0.0
    %1418 = vmatprep.subr.mxu0 0.0
    %1419 = vmatpush2.msra.mxu0 0.0
    %1420 = vmatprep.subr.mxu0 0.0
    %1421 = vmatpush2.msra.mxu0 0.0
    %1422 = vmatprep.subr.mxu0 0.0
    %1423 = vmatpush2.msra.mxu0 0.0
    %1424 = vmatprep.subr.mxu0 0.0
    %1425 = vmatpush2.msra.mxu0 0.0
    %1426 = vmatprep.subr.mxu0 0.0
    %1427 = vmatpush2.msra.mxu0 0.0
    %1428 = vmatprep.mubr.f32.mxu0 0.0
    %1429 = vmatmul.mubr.f32.gmra.mxu0 %v1223
    %v1430 = vpop.f32.mrf.mxu0
    %v1431 = vadd.f32 %v1289, %v1430
    %v1432 = vpop.f32.mrf.mxu0
    %1433 = vdwg.mxu0
    %v1435 = vrot.slane %v1360, 6
    %v1437 = vadd.f32 %v1225, %v1435
    %v1438 = vxor.u32 %v1437, 2147483648
    %v1439 = vmul.f32 %v1438, 1.442695
    %v1440 = vpow.pop %v1439
    %v1441 = vadd.f32 %v1440, 1.0
    %v1442 = vrcp.pop %v1441
    %v1443 = vmul.f32 1.0, %v1442
    %v1445 = vrot.slane %v1362, 6
    %v1447 = vadd.f32 %v1226, %v1445
    %v1448 = vxor.u32 %v1447, 2147483648
    %v1449 = vmul.f32 %v1448, 1.442695
    %v1450 = vpow.pop %v1449
    %v1451 = vadd.f32 %v1450, 1.0
    %v1452 = vrcp.pop %v1451
    %v1453 = vmul.f32 1.0, %v1452
    %v1455 = vrot.slane %v1431, 6
    %v1457 = vmul.f32 %v1443, %v1455
    %v1458 = vadd.f32 %v1227, %v1457
    %v1459 = vtanh.pop %v1458
    %v1460 = vsub.f32 1.0, %v1453
    %v1461 = vmul.f32 %v1460, %v1459
    %v1463 = vrot.slane %v1223, 6
    %v1465 = vmul.f32 %v1453, %v1463
    %v1466 = vadd.f32 %v1461, %v1465
    %1467 = vst [vmem:[#allocation2 + $0x8] sm:$0xc] %v1466
    %v1468 = vld [vmem:[%s0 + $0x18] sm:$0x30]
    %v1469 = vld [vmem:[%s0 + $0x20] sm:$0x30]
    %v1470 = vld [vmem:[%s0 + $0x28] sm:$0x30]
    %v1471 = vld [vmem:[%s2] sm:$0xff]
    %v1472 = vld [vmem:[%s2 + $0x8] sm:$0xff]
    %v1473 = vld [vmem:[%s2 + $0x10] sm:$0xff]
    %v1474 = vld [vmem:[%s2 + $0x18] sm:$0xff]
    %v1475 = vld [vmem:[%s2 + $0x20] sm:$0xff]
    %v1476 = vld [vmem:[%s2 + $0x28] sm:$0xff]
    %v1477 = vld [vmem:[%s2 + $0x30] sm:$0xff]
    %v1478 = vld [vmem:[%s2 + $0x38] sm:$0xff]
    %v1479 = vld [vmem:[%s2 + $0x40] sm:$0xff]
    %v1480 = vld [vmem:[%s2 + $0x48] sm:$0xff]
    %v1481 = vld [vmem:[%s2 + $0x50] sm:$0xff]
    %v1482 = vld [vmem:[%s2 + $0x58] sm:$0xff]
    %v1483 = vld [vmem:[%s2 + $0x60] sm:$0xff]
    %v1484 = vld [vmem:[%s2 + $0x68] sm:$0xff]
    %v1485 = vld [vmem:[%s2 + $0x70] sm:$0xff]
    %v1486 = vld [vmem:[%s2 + $0x78] sm:$0xff]
    %v1487 = vld [vmem:[%s2 + $0x80] sm:$0xff]
    %v1488 = vld [vmem:[%s2 + $0x88] sm:$0xff]
    %v1489 = vld [vmem:[%s2 + $0x90] sm:$0xff]
    %v1490 = vld [vmem:[%s2 + $0x98] sm:$0xff]
    %v1491 = vld [vmem:[%s2 + $0xa0] sm:$0xff]
    %v1492 = vld [vmem:[%s2 + $0xa8] sm:$0xff]
    %v1493 = vld [vmem:[%s2 + $0xb0] sm:$0xff]
    %v1494 = vld [vmem:[%s2 + $0xb8] sm:$0xff]
    %v1495 = vld [vmem:[%s2 + $0xc0] sm:$0xff]
    %v1496 = vld [vmem:[%s2 + $0xc8] sm:$0xff]
    %v1497 = vld [vmem:[%s2 + $0xd0] sm:$0xff]
    %v1498 = vld [vmem:[%s2 + $0xd8] sm:$0xff]
    %v1499 = vld [vmem:[%s2 + $0xe0] sm:$0xff]
    %v1500 = vld [vmem:[%s2 + $0xe8] sm:$0xff]
    %v1501 = vld [vmem:[%s2 + $0xf0] sm:$0xff]
    %v1502 = vld [vmem:[%s2 + $0xf8] sm:$0xff]
    %v1503 = vld [vmem:[%s2 + $0x100] sm:$0xff]
    %v1504 = vld [vmem:[%s2 + $0x108] sm:$0xff]
    %v1505 = vld [vmem:[%s2 + $0x110] sm:$0xff]
    %v1506 = vld [vmem:[%s2 + $0x118] sm:$0xff]
    %v1507 = vld [vmem:[%s2 + $0x120] sm:$0xff]
    %v1508 = vld [vmem:[%s2 + $0x128] sm:$0xff]
    %v1509 = vld [vmem:[%s2 + $0x130] sm:$0xff]
    %v1510 = vld [vmem:[%s2 + $0x138] sm:$0xff]
    %v1511 = vld [vmem:[%s2 + $0x140] sm:$0xff]
    %v1512 = vld [vmem:[%s2 + $0x148] sm:$0xff]
    %v1513 = vld [vmem:[%s2 + $0x150] sm:$0xff]
    %v1514 = vld [vmem:[%s2 + $0x158] sm:$0xff]
    %v1515 = vld [vmem:[%s2 + $0x160] sm:$0xff]
    %v1516 = vld [vmem:[%s2 + $0x168] sm:$0xff]
    %v1517 = vld [vmem:[%s2 + $0x170] sm:$0xff]
    %v1518 = vld [vmem:[%s2 + $0x178] sm:$0xff]
    %v1519 = vld [vmem:[%s3] sm:$0x7]
    %v1521 = vlaneseq
    %v1522 = vshrl.u32 %v1521, 7
    %v1523 = vsub.s32 0, %v1522
    %v1524 = vrot.slane %v1519, %v1523
    %v1525 = vlaneseq
    %v1526 = vshrl.u32 %v1525, 7
    %v1527 = vsub.s32 1, %v1526
    %v1528 = vrot.slane %v1519, %v1527
    %v1529 = vlaneseq
    %v1530 = vshrl.u32 %v1529, 7
    %v1531 = vsub.s32 2, %v1530
    %v1532 = vrot.slane %v1519, %v1531
    %v1537 = vrot.slane %v1466, 2
    %1539 = vmatprep.subr.mxu0 %v1517
    %1540 = vmatpush1.msra.mxu0 %v1516
    %1541 = vmatprep.subr.mxu0 %v1514
    %1542 = vmatpush1.msra.mxu0 %v1513
    %1543 = vmatprep.subr.mxu0 %v1511
    %1544 = vmatpush1.msra.mxu0 %v1510
    %1545 = vmatprep.subr.mxu0 %v1508
    %1546 = vmatpush1.msra.mxu0 %v1507
    %1547 = vmatprep.subr.mxu0 %v1505
    %1548 = vmatpush1.msra.mxu0 %v1504
    %1549 = vmatprep.subr.mxu0 %v1502
    %1550 = vmatpush1.msra.mxu0 %v1501
    %1551 = vmatprep.subr.mxu0 %v1499
    %1552 = vmatpush1.msra.mxu0 %v1498
    %1553 = vmatprep.subr.mxu0 %v1496
    %1554 = vmatpush1.msra.mxu0 %v1495
    %1555 = vmatprep.subr.mxu0 %v1493
    %1556 = vmatpush1.msra.mxu0 %v1492
    %1557 = vmatprep.subr.mxu0 %v1490
    %1558 = vmatpush1.msra.mxu0 %v1489
    %1559 = vmatprep.subr.mxu0 %v1487
    %1560 = vmatpush1.msra.mxu0 %v1486
    %1561 = vmatprep.subr.mxu0 %v1484
    %1562 = vmatpush1.msra.mxu0 %v1483
    %1563 = vmatprep.subr.mxu0 %v1481
    %1564 = vmatpush1.msra.mxu0 %v1480
    %1565 = vmatprep.subr.mxu0 %v1478
    %1566 = vmatpush1.msra.mxu0 %v1477
    %1567 = vmatprep.subr.mxu0 %v1475
    %1568 = vmatpush1.msra.mxu0 %v1474
    %1569 = vmatprep.subr.mxu0 %v1472
    %1570 = vmatpush1.msra.mxu0 %v1471
    %1571 = vmatprep.subr.mxu0 0.0
    %1572 = vmatpush2.msra.mxu0 0.0
    %1573 = vmatprep.subr.mxu0 0.0
    %1574 = vmatpush2.msra.mxu0 0.0
    %1575 = vmatprep.subr.mxu0 0.0
    %1576 = vmatpush2.msra.mxu0 0.0
    %1577 = vmatprep.subr.mxu0 0.0
    %1578 = vmatpush2.msra.mxu0 0.0
    %1579 = vmatprep.subr.mxu0 0.0
    %1580 = vmatpush2.msra.mxu0 0.0
    %1581 = vmatprep.subr.mxu0 0.0
    %1582 = vmatpush2.msra.mxu0 0.0
    %1583 = vmatprep.subr.mxu0 0.0
    %1584 = vmatpush2.msra.mxu0 0.0
    %1585 = vmatprep.subr.mxu0 0.0
    %1586 = vmatpush2.msra.mxu0 0.0
    %1587 = vmatprep.subr.mxu0 0.0
    %1588 = vmatpush2.msra.mxu0 0.0
    %1589 = vmatprep.subr.mxu0 0.0
    %1590 = vmatpush2.msra.mxu0 0.0
    %1591 = vmatprep.subr.mxu0 0.0
    %1592 = vmatpush2.msra.mxu0 0.0
    %1593 = vmatprep.subr.mxu0 0.0
    %1594 = vmatpush2.msra.mxu0 0.0
    %1595 = vmatprep.subr.mxu0 0.0
    %1596 = vmatpush2.msra.mxu0 0.0
    %1597 = vmatprep.subr.mxu0 0.0
    %1598 = vmatpush2.msra.mxu0 0.0
    %1599 = vmatprep.subr.mxu0 0.0
    %1600 = vmatpush2.msra.mxu0 0.0
    %1601 = vmatprep.subr.mxu0 0.0
    %1602 = vmatpush2.msra.mxu0 0.0
    %1603 = vmatprep.mubr.f32.mxu0 0.0
    %1604 = vmatmul.mubr.f32.gmra.mxu0 %v1537
    %v1605 = vpop.f32.mrf.mxu0
    %v1606 = vadd.f32 %v1524, %v1605
    %v1607 = vpop.f32.mrf.mxu0
    %v1608 = vadd.f32 %v1528, %v1607
    %1609 = vdwg.mxu0
    %1610 = vmatprep.subr.mxu0 0.0
    %1611 = vmatpush1.msra.mxu0 %v1518
    %1612 = vmatprep.subr.mxu0 0.0
    %1613 = vmatpush1.msra.mxu0 %v1515
    %1614 = vmatprep.subr.mxu0 0.0
    %1615 = vmatpush1.msra.mxu0 %v1512
    %1616 = vmatprep.subr.mxu0 0.0
    %1617 = vmatpush1.msra.mxu0 %v1509
    %1618 = vmatprep.subr.mxu0 0.0
    %1619 = vmatpush1.msra.mxu0 %v1506
    %1620 = vmatprep.subr.mxu0 0.0
    %1621 = vmatpush1.msra.mxu0 %v1503
    %1622 = vmatprep.subr.mxu0 0.0
    %1623 = vmatpush1.msra.mxu0 %v1500
    %1624 = vmatprep.subr.mxu0 0.0
    %1625 = vmatpush1.msra.mxu0 %v1497
    %1626 = vmatprep.subr.mxu0 0.0
    %1627 = vmatpush1.msra.mxu0 %v1494
    %1628 = vmatprep.subr.mxu0 0.0
    %1629 = vmatpush1.msra.mxu0 %v1491
    %1630 = vmatprep.subr.mxu0 0.0
    %1631 = vmatpush1.msra.mxu0 %v1488
    %1632 = vmatprep.subr.mxu0 0.0
    %1633 = vmatpush1.msra.mxu0 %v1485
    %1634 = vmatprep.subr.mxu0 0.0
    %1635 = vmatpush1.msra.mxu0 %v1482
    %1636 = vmatprep.subr.mxu0 0.0
    %1637 = vmatpush1.msra.mxu0 %v1479
    %1638 = vmatprep.subr.mxu0 0.0
    %1639 = vmatpush1.msra.mxu0 %v1476
    %1640 = vmatprep.subr.mxu0 0.0
    %1641 = vmatpush1.msra.mxu0 %v1473
    %1642 = vmatprep.subr.mxu0 0.0
    %1643 = vmatpush2.msra.mxu0 0.0
    %1644 = vmatprep.subr.mxu0 0.0
    %1645 = vmatpush2.msra.mxu0 0.0
    %1646 = vmatprep.subr.mxu0 0.0
    %1647 = vmatpush2.msra.mxu0 0.0
    %1648 = vmatprep.subr.mxu0 0.0
    %1649 = vmatpush2.msra.mxu0 0.0
    %1650 = vmatprep.subr.mxu0 0.0
    %1651 = vmatpush2.msra.mxu0 0.0
    %1652 = vmatprep.subr.mxu0 0.0
    %1653 = vmatpush2.msra.mxu0 0.0
    %1654 = vmatprep.subr.mxu0 0.0
    %1655 = vmatpush2.msra.mxu0 0.0
    %1656 = vmatprep.subr.mxu0 0.0
    %1657 = vmatpush2.msra.mxu0 0.0
    %1658 = vmatprep.subr.mxu0 0.0
    %1659 = vmatpush2.msra.mxu0 0.0
    %1660 = vmatprep.subr.mxu0 0.0
    %1661 = vmatpush2.msra.mxu0 0.0
    %1662 = vmatprep.subr.mxu0 0.0
    %1663 = vmatpush2.msra.mxu0 0.0
    %1664 = vmatprep.subr.mxu0 0.0
    %1665 = vmatpush2.msra.mxu0 0.0
    %1666 = vmatprep.subr.mxu0 0.0
    %1667 = vmatpush2.msra.mxu0 0.0
    %1668 = vmatprep.subr.mxu0 0.0
    %1669 = vmatpush2.msra.mxu0 0.0
    %1670 = vmatprep.subr.mxu0 0.0
    %1671 = vmatpush2.msra.mxu0 0.0
    %1672 = vmatprep.subr.mxu0 0.0
    %1673 = vmatpush2.msra.mxu0 0.0
    %1674 = vmatprep.mubr.f32.mxu0 0.0
    %1675 = vmatmul.mubr.f32.gmra.mxu0 %v1537
    %v1676 = vpop.f32.mrf.mxu0
    %v1677 = vadd.f32 %v1532, %v1676
    %v1678 = vpop.f32.mrf.mxu0
    %1679 = vdwg.mxu0
    %v1681 = vrot.slane %v1606, 4
    %v1683 = vadd.f32 %v1468, %v1681
    %v1684 = vxor.u32 %v1683, 2147483648
    %v1685 = vmul.f32 %v1684, 1.442695
    %v1686 = vpow.pop %v1685
    %v1687 = vadd.f32 %v1686, 1.0
    %v1688 = vrcp.pop %v1687
    %v1689 = vmul.f32 1.0, %v1688
    %v1691 = vrot.slane %v1608, 4
    %v1693 = vadd.f32 %v1469, %v1691
    %v1694 = vxor.u32 %v1693, 2147483648
    %v1695 = vmul.f32 %v1694, 1.442695
    %v1696 = vpow.pop %v1695
    %v1697 = vadd.f32 %v1696, 1.0
    %v1698 = vrcp.pop %v1697
    %v1699 = vmul.f32 1.0, %v1698
    %v1701 = vrot.slane %v1677, 4
    %v1703 = vmul.f32 %v1689, %v1701
    %v1704 = vadd.f32 %v1470, %v1703
    %v1705 = vtanh.pop %v1704
    %v1706 = vsub.f32 1.0, %v1699
    %v1707 = vmul.f32 %v1706, %v1705
    %v1708 = vrot.slane %v1466, 6
    %v1710 = vmul.f32 %v1699, %v1708
    %v1711 = vadd.f32 %v1707, %v1710
    %1712 = vst [vmem:[#allocation2 + $0x8] sm:$0x30] %v1711
    %v1713 = vld [vmem:[%s0 + $0x18] sm:$0xc0]
    %v1714 = vld [vmem:[%s0 + $0x20] sm:$0xc0]
    %v1715 = vld [vmem:[%s0 + $0x28] sm:$0xc0]
    %v1716 = vld [vmem:[%s2] sm:$0xff]
    %v1717 = vld [vmem:[%s2 + $0x8] sm:$0xff]
    %v1718 = vld [vmem:[%s2 + $0x10] sm:$0xff]
    %v1719 = vld [vmem:[%s2 + $0x18] sm:$0xff]
    %v1720 = vld [vmem:[%s2 + $0x20] sm:$0xff]
    %v1721 = vld [vmem:[%s2 + $0x28] sm:$0xff]
    %v1722 = vld [vmem:[%s2 + $0x30] sm:$0xff]
    %v1723 = vld [vmem:[%s2 + $0x38] sm:$0xff]
    %v1724 = vld [vmem:[%s2 + $0x40] sm:$0xff]
    %v1725 = vld [vmem:[%s2 + $0x48] sm:$0xff]
    %v1726 = vld [vmem:[%s2 + $0x50] sm:$0xff]
    %v1727 = vld [vmem:[%s2 + $0x58] sm:$0xff]
    %v1728 = vld [vmem:[%s2 + $0x60] sm:$0xff]
    %v1729 = vld [vmem:[%s2 + $0x68] sm:$0xff]
    %v1730 = vld [vmem:[%s2 + $0x70] sm:$0xff]
    %v1731 = vld [vmem:[%s2 + $0x78] sm:$0xff]
    %v1732 = vld [vmem:[%s2 + $0x80] sm:$0xff]
    %v1733 = vld [vmem:[%s2 + $0x88] sm:$0xff]
    %v1734 = vld [vmem:[%s2 + $0x90] sm:$0xff]
    %v1735 = vld [vmem:[%s2 + $0x98] sm:$0xff]
    %v1736 = vld [vmem:[%s2 + $0xa0] sm:$0xff]
    %v1737 = vld [vmem:[%s2 + $0xa8] sm:$0xff]
    %v1738 = vld [vmem:[%s2 + $0xb0] sm:$0xff]
    %v1739 = vld [vmem:[%s2 + $0xb8] sm:$0xff]
    %v1740 = vld [vmem:[%s2 + $0xc0] sm:$0xff]
    %v1741 = vld [vmem:[%s2 + $0xc8] sm:$0xff]
    %v1742 = vld [vmem:[%s2 + $0xd0] sm:$0xff]
    %v1743 = vld [vmem:[%s2 + $0xd8] sm:$0xff]
    %v1744 = vld [vmem:[%s2 + $0xe0] sm:$0xff]
    %v1745 = vld [vmem:[%s2 + $0xe8] sm:$0xff]
    %v1746 = vld [vmem:[%s2 + $0xf0] sm:$0xff]
    %v1747 = vld [vmem:[%s2 + $0xf8] sm:$0xff]
    %v1748 = vld [vmem:[%s2 + $0x100] sm:$0xff]
    %v1749 = vld [vmem:[%s2 + $0x108] sm:$0xff]
    %v1750 = vld [vmem:[%s2 + $0x110] sm:$0xff]
    %v1751 = vld [vmem:[%s2 + $0x118] sm:$0xff]
    %v1752 = vld [vmem:[%s2 + $0x120] sm:$0xff]
    %v1753 = vld [vmem:[%s2 + $0x128] sm:$0xff]
    %v1754 = vld [vmem:[%s2 + $0x130] sm:$0xff]
    %v1755 = vld [vmem:[%s2 + $0x138] sm:$0xff]
    %v1756 = vld [vmem:[%s2 + $0x140] sm:$0xff]
    %v1757 = vld [vmem:[%s2 + $0x148] sm:$0xff]
    %v1758 = vld [vmem:[%s2 + $0x150] sm:$0xff]
    %v1759 = vld [vmem:[%s2 + $0x158] sm:$0xff]
    %v1760 = vld [vmem:[%s2 + $0x160] sm:$0xff]
    %v1761 = vld [vmem:[%s2 + $0x168] sm:$0xff]
    %v1762 = vld [vmem:[%s2 + $0x170] sm:$0xff]
    %v1763 = vld [vmem:[%s2 + $0x178] sm:$0xff]
    %v1764 = vld [vmem:[%s3] sm:$0x7]
    %v1766 = vlaneseq
    %v1767 = vshrl.u32 %v1766, 7
    %v1768 = vsub.s32 0, %v1767
    %v1769 = vrot.slane %v1764, %v1768
    %v1770 = vlaneseq
    %v1771 = vshrl.u32 %v1770, 7
    %v1772 = vsub.s32 1, %v1771
    %v1773 = vrot.slane %v1764, %v1772
    %v1774 = vlaneseq
    %v1775 = vshrl.u32 %v1774, 7
    %v1776 = vsub.s32 2, %v1775
    %v1777 = vrot.slane %v1764, %v1776
    %v1782 = vrot.slane %v1711, 4
    %1784 = vmatprep.subr.mxu0 %v1762
    %1785 = vmatpush1.msra.mxu0 %v1761
    %1786 = vmatprep.subr.mxu0 %v1759
    %1787 = vmatpush1.msra.mxu0 %v1758
    %1788 = vmatprep.subr.mxu0 %v1756
    %1789 = vmatpush1.msra.mxu0 %v1755
    %1790 = vmatprep.subr.mxu0 %v1753
    %1791 = vmatpush1.msra.mxu0 %v1752
    %1792 = vmatprep.subr.mxu0 %v1750
    %1793 = vmatpush1.msra.mxu0 %v1749
    %1794 = vmatprep.subr.mxu0 %v1747
    %1795 = vmatpush1.msra.mxu0 %v1746
    %1796 = vmatprep.subr.mxu0 %v1744
    %1797 = vmatpush1.msra.mxu0 %v1743
    %1798 = vmatprep.subr.mxu0 %v1741
    %1799 = vmatpush1.msra.mxu0 %v1740
    %1800 = vmatprep.subr.mxu0 %v1738
    %1801 = vmatpush1.msra.mxu0 %v1737
    %1802 = vmatprep.subr.mxu0 %v1735
    %1803 = vmatpush1.msra.mxu0 %v1734
    %1804 = vmatprep.subr.mxu0 %v1732
    %1805 = vmatpush1.msra.mxu0 %v1731
    %1806 = vmatprep.subr.mxu0 %v1729
    %1807 = vmatpush1.msra.mxu0 %v1728
    %1808 = vmatprep.subr.mxu0 %v1726
    %1809 = vmatpush1.msra.mxu0 %v1725
    %1810 = vmatprep.subr.mxu0 %v1723
    %1811 = vmatpush1.msra.mxu0 %v1722
    %1812 = vmatprep.subr.mxu0 %v1720
    %1813 = vmatpush1.msra.mxu0 %v1719
    %1814 = vmatprep.subr.mxu0 %v1717
    %1815 = vmatpush1.msra.mxu0 %v1716
    %1816 = vmatprep.subr.mxu0 0.0
    %1817 = vmatpush2.msra.mxu0 0.0
    %1818 = vmatprep.subr.mxu0 0.0
    %1819 = vmatpush2.msra.mxu0 0.0
    %1820 = vmatprep.subr.mxu0 0.0
    %1821 = vmatpush2.msra.mxu0 0.0
    %1822 = vmatprep.subr.mxu0 0.0
    %1823 = vmatpush2.msra.mxu0 0.0
    %1824 = vmatprep.subr.mxu0 0.0
    %1825 = vmatpush2.msra.mxu0 0.0
    %1826 = vmatprep.subr.mxu0 0.0
    %1827 = vmatpush2.msra.mxu0 0.0
    %1828 = vmatprep.subr.mxu0 0.0
    %1829 = vmatpush2.msra.mxu0 0.0
    %1830 = vmatprep.subr.mxu0 0.0
    %1831 = vmatpush2.msra.mxu0 0.0
    %1832 = vmatprep.subr.mxu0 0.0
    %1833 = vmatpush2.msra.mxu0 0.0
    %1834 = vmatprep.subr.mxu0 0.0
    %1835 = vmatpush2.msra.mxu0 0.0
    %1836 = vmatprep.subr.mxu0 0.0
    %1837 = vmatpush2.msra.mxu0 0.0
    %1838 = vmatprep.subr.mxu0 0.0
    %1839 = vmatpush2.msra.mxu0 0.0
    %1840 = vmatprep.subr.mxu0 0.0
    %1841 = vmatpush2.msra.mxu0 0.0
    %1842 = vmatprep.subr.mxu0 0.0
    %1843 = vmatpush2.msra.mxu0 0.0
    %1844 = vmatprep.subr.mxu0 0.0
    %1845 = vmatpush2.msra.mxu0 0.0
    %1846 = vmatprep.subr.mxu0 0.0
    %1847 = vmatpush2.msra.mxu0 0.0
    %1848 = vmatprep.mubr.f32.mxu0 0.0
    %1849 = vmatmul.mubr.f32.gmra.mxu0 %v1782
    %v1850 = vpop.f32.mrf.mxu0
    %v1851 = vadd.f32 %v1769, %v1850
    %v1852 = vpop.f32.mrf.mxu0
    %v1853 = vadd.f32 %v1773, %v1852
    %1854 = vdwg.mxu0
    %1855 = vmatprep.subr.mxu0 0.0
    %1856 = vmatpush1.msra.mxu0 %v1763
    %1857 = vmatprep.subr.mxu0 0.0
    %1858 = vmatpush1.msra.mxu0 %v1760
    %1859 = vmatprep.subr.mxu0 0.0
    %1860 = vmatpush1.msra.mxu0 %v1757
    %1861 = vmatprep.subr.mxu0 0.0
    %1862 = vmatpush1.msra.mxu0 %v1754
    %1863 = vmatprep.subr.mxu0 0.0
    %1864 = vmatpush1.msra.mxu0 %v1751
    %1865 = vmatprep.subr.mxu0 0.0
    %1866 = vmatpush1.msra.mxu0 %v1748
    %1867 = vmatprep.subr.mxu0 0.0
    %1868 = vmatpush1.msra.mxu0 %v1745
    %1869 = vmatprep.subr.mxu0 0.0
    %1870 = vmatpush1.msra.mxu0 %v1742
    %1871 = vmatprep.subr.mxu0 0.0
    %1872 = vmatpush1.msra.mxu0 %v1739
    %1873 = vmatprep.subr.mxu0 0.0
    %1874 = vmatpush1.msra.mxu0 %v1736
    %1875 = vmatprep.subr.mxu0 0.0
    %1876 = vmatpush1.msra.mxu0 %v1733
    %1877 = vmatprep.subr.mxu0 0.0
    %1878 = vmatpush1.msra.mxu0 %v1730
    %1879 = vmatprep.subr.mxu0 0.0
    %1880 = vmatpush1.msra.mxu0 %v1727
    %1881 = vmatprep.subr.mxu0 0.0
    %1882 = vmatpush1.msra.mxu0 %v1724
    %1883 = vmatprep.subr.mxu0 0.0
    %1884 = vmatpush1.msra.mxu0 %v1721
    %1885 = vmatprep.subr.mxu0 0.0
    %1886 = vmatpush1.msra.mxu0 %v1718
    %1887 = vmatprep.subr.mxu0 0.0
    %1888 = vmatpush2.msra.mxu0 0.0
    %1889 = vmatprep.subr.mxu0 0.0
    %1890 = vmatpush2.msra.mxu0 0.0
    %1891 = vmatprep.subr.mxu0 0.0
    %1892 = vmatpush2.msra.mxu0 0.0
    %1893 = vmatprep.subr.mxu0 0.0
    %1894 = vmatpush2.msra.mxu0 0.0
    %1895 = vmatprep.subr.mxu0 0.0
    %1896 = vmatpush2.msra.mxu0 0.0
    %1897 = vmatprep.subr.mxu0 0.0
    %1898 = vmatpush2.msra.mxu0 0.0
    %1899 = vmatprep.subr.mxu0 0.0
    %1900 = vmatpush2.msra.mxu0 0.0
    %1901 = vmatprep.subr.mxu0 0.0
    %1902 = vmatpush2.msra.mxu0 0.0
    %1903 = vmatprep.subr.mxu0 0.0
    %1904 = vmatpush2.msra.mxu0 0.0
    %1905 = vmatprep.subr.mxu0 0.0
    %1906 = vmatpush2.msra.mxu0 0.0
    %1907 = vmatprep.subr.mxu0 0.0
    %1908 = vmatpush2.msra.mxu0 0.0
    %1909 = vmatprep.subr.mxu0 0.0
    %1910 = vmatpush2.msra.mxu0 0.0
    %1911 = vmatprep.subr.mxu0 0.0
    %1912 = vmatpush2.msra.mxu0 0.0
    %1913 = vmatprep.subr.mxu0 0.0
    %1914 = vmatpush2.msra.mxu0 0.0
    %1915 = vmatprep.subr.mxu0 0.0
    %1916 = vmatpush2.msra.mxu0 0.0
    %1917 = vmatprep.subr.mxu0 0.0
    %1918 = vmatpush2.msra.mxu0 0.0
    %1919 = vmatprep.mubr.f32.mxu0 0.0
    %1920 = vmatmul.mubr.f32.gmra.mxu0 %v1782
    %v1921 = vpop.f32.mrf.mxu0
    %v1922 = vadd.f32 %v1777, %v1921
    %v1923 = vpop.f32.mrf.mxu0
    %1924 = vdwg.mxu0
    %v1926 = vrot.slane %v1851, 2
    %v1928 = vadd.f32 %v1713, %v1926
    %v1929 = vxor.u32 %v1928, 2147483648
    %v1930 = vmul.f32 %v1929, 1.442695
    %v1931 = vpow.pop %v1930
    %v1932 = vadd.f32 %v1931, 1.0
    %v1933 = vrcp.pop %v1932
    %v1934 = vmul.f32 1.0, %v1933
    %v1936 = vrot.slane %v1853, 2
    %v1938 = vadd.f32 %v1714, %v1936
    %v1939 = vxor.u32 %v1938, 2147483648
    %v1940 = vmul.f32 %v1939, 1.442695
    %v1941 = vpow.pop %v1940
    %v1942 = vadd.f32 %v1941, 1.0
    %v1943 = vrcp.pop %v1942
    %v1944 = vmul.f32 1.0, %v1943
    %v1946 = vrot.slane %v1922, 2
    %v1948 = vmul.f32 %v1934, %v1946
    %v1949 = vadd.f32 %v1715, %v1948
    %v1950 = vtanh.pop %v1949
    %v1951 = vsub.f32 1.0, %v1944
    %v1952 = vmul.f32 %v1951, %v1950
    %v1953 = vrot.slane %v1711, 6
    %v1955 = vmul.f32 %v1944, %v1953
    %v1956 = vadd.f32 %v1952, %v1955
    %1957 = vst [vmem:[#allocation2 + $0x8] sm:$0xc0] %v1956
    %1958 = vst [vmem:[#allocation4 - $0x6] sm:$0xc0] %v1956
    %v1959 = vld [vmem:[%s4] sm:$0xff]
    %v1960 = vld [vmem:[%s4 + $0x8] sm:$0xff]
    %v1961 = vld [vmem:[%s4 + $0x10] sm:$0xff]
    %v1962 = vld [vmem:[%s4 + $0x18] sm:$0xff]
    %v1963 = vld [vmem:[%s4 + $0x20] sm:$0xff]
    %v1964 = vld [vmem:[%s4 + $0x28] sm:$0xff]
    %v1965 = vld [vmem:[%s4 + $0x30] sm:$0xff]
    %v1966 = vld [vmem:[%s4 + $0x38] sm:$0xff]
    %v1967 = vld [vmem:[%s4 + $0x40] sm:$0xff]
    %v1968 = vld [vmem:[%s4 + $0x48] sm:$0xff]
    %v1969 = vld [vmem:[%s4 + $0x50] sm:$0xff]
    %v1970 = vld [vmem:[%s4 + $0x58] sm:$0xff]
    %v1971 = vld [vmem:[%s4 + $0x60] sm:$0xff]
    %v1972 = vld [vmem:[%s4 + $0x68] sm:$0xff]
    %v1973 = vld [vmem:[%s4 + $0x70] sm:$0xff]
    %v1974 = vld [vmem:[%s4 + $0x78] sm:$0xff]
    %v1975 = vld [vmem:[%s4 + $0x80] sm:$0xff]
    %v1976 = vld [vmem:[%s4 + $0x88] sm:$0xff]
    %v1977 = vld [vmem:[%s4 + $0x90] sm:$0xff]
    %v1978 = vld [vmem:[%s4 + $0x98] sm:$0xff]
    %v1979 = vld [vmem:[%s4 + $0xa0] sm:$0xff]
    %v1980 = vld [vmem:[%s4 + $0xa8] sm:$0xff]
    %v1981 = vld [vmem:[%s4 + $0xb0] sm:$0xff]
    %v1982 = vld [vmem:[%s4 + $0xb8] sm:$0xff]
    %v1983 = vld [vmem:[%s4 + $0xc0] sm:$0xff]
    %v1984 = vld [vmem:[%s4 + $0xc8] sm:$0xff]
    %v1985 = vld [vmem:[%s4 + $0xd0] sm:$0xff]
    %v1986 = vld [vmem:[%s4 + $0xd8] sm:$0xff]
    %v1987 = vld [vmem:[%s4 + $0xe0] sm:$0xff]
    %v1988 = vld [vmem:[%s4 + $0xe8] sm:$0xff]
    %v1989 = vld [vmem:[%s4 + $0xf0] sm:$0xff]
    %v1990 = vld [vmem:[%s4 + $0xf8] sm:$0xff]
    %v1991 = vld [vmem:[%s4 + $0x100] sm:$0xff]
    %v1992 = vld [vmem:[%s4 + $0x108] sm:$0xff]
    %v1993 = vld [vmem:[%s4 + $0x110] sm:$0xff]
    %v1994 = vld [vmem:[%s4 + $0x118] sm:$0xff]
    %v1995 = vld [vmem:[%s4 + $0x120] sm:$0xff]
    %v1996 = vld [vmem:[%s4 + $0x128] sm:$0xff]
    %v1997 = vld [vmem:[%s4 + $0x130] sm:$0xff]
    %v1998 = vld [vmem:[%s4 + $0x138] sm:$0xff]
    %v1999 = vld [vmem:[%s4 + $0x140] sm:$0xff]
    %v2000 = vld [vmem:[%s4 + $0x148] sm:$0xff]
    %v2001 = vld [vmem:[%s4 + $0x150] sm:$0xff]
    %v2002 = vld [vmem:[%s4 + $0x158] sm:$0xff]
    %v2003 = vld [vmem:[%s4 + $0x160] sm:$0xff]
    %v2004 = vld [vmem:[%s4 + $0x168] sm:$0xff]
    %v2005 = vld [vmem:[%s4 + $0x170] sm:$0xff]
    %v2006 = vld [vmem:[%s4 + $0x178] sm:$0xff]
    %v2007 = vld [vmem:[#allocation2] sm:$0xff]
    %v2008 = vld [vmem:[#allocation2 + $0x8] sm:$0xff]
    %v2009 = vld [vmem:[%s5] sm:$0x7]
    %v2011 = vlaneseq
    %v2012 = vshrl.u32 %v2011, 7
    %v2013 = vsub.s32 0, %v2012
    %v2014 = vrot.slane %v2009, %v2013
    %v2015 = vlaneseq
    %v2016 = vshrl.u32 %v2015, 7
    %v2017 = vsub.s32 1, %v2016
    %v2018 = vrot.slane %v2009, %v2017
    %v2019 = vlaneseq
    %v2020 = vshrl.u32 %v2019, 7
    %v2021 = vsub.s32 2, %v2020
    %v2022 = vrot.slane %v2009, %v2021
    %2026 = vmatprep.subr.mxu0 %v2005
    %2027 = vmatpush1.msra.mxu0 %v2004
    %2028 = vmatprep.subr.mxu0 %v2002
    %2029 = vmatpush1.msra.mxu0 %v2001
    %2030 = vmatprep.subr.mxu0 %v1999
    %2031 = vmatpush1.msra.mxu0 %v1998
    %2032 = vmatprep.subr.mxu0 %v1996
    %2033 = vmatpush1.msra.mxu0 %v1995
    %2034 = vmatprep.subr.mxu0 %v1993
    %2035 = vmatpush1.msra.mxu0 %v1992
    %2036 = vmatprep.subr.mxu0 %v1990
    %2037 = vmatpush1.msra.mxu0 %v1989
    %2038 = vmatprep.subr.mxu0 %v1987
    %2039 = vmatpush1.msra.mxu0 %v1986
    %2040 = vmatprep.subr.mxu0 %v1984
    %2041 = vmatpush1.msra.mxu0 %v1983
    %2042 = vmatprep.subr.mxu0 %v1981
    %2043 = vmatpush1.msra.mxu0 %v1980
    %2044 = vmatprep.subr.mxu0 %v1978
    %2045 = vmatpush1.msra.mxu0 %v1977
    %2046 = vmatprep.subr.mxu0 %v1975
    %2047 = vmatpush1.msra.mxu0 %v1974
    %2048 = vmatprep.subr.mxu0 %v1972
    %2049 = vmatpush1.msra.mxu0 %v1971
    %2050 = vmatprep.subr.mxu0 %v1969
    %2051 = vmatpush1.msra.mxu0 %v1968
    %2052 = vmatprep.subr.mxu0 %v1966
    %2053 = vmatpush1.msra.mxu0 %v1965
    %2054 = vmatprep.subr.mxu0 %v1963
    %2055 = vmatpush1.msra.mxu0 %v1962
    %2056 = vmatprep.subr.mxu0 %v1960
    %2057 = vmatpush1.msra.mxu0 %v1959
    %2058 = vmatprep.subr.mxu0 0.0
    %2059 = vmatpush2.msra.mxu0 0.0
    %2060 = vmatprep.subr.mxu0 0.0
    %2061 = vmatpush2.msra.mxu0 0.0
    %2062 = vmatprep.subr.mxu0 0.0
    %2063 = vmatpush2.msra.mxu0 0.0
    %2064 = vmatprep.subr.mxu0 0.0
    %2065 = vmatpush2.msra.mxu0 0.0
    %2066 = vmatprep.subr.mxu0 0.0
    %2067 = vmatpush2.msra.mxu0 0.0
    %2068 = vmatprep.subr.mxu0 0.0
    %2069 = vmatpush2.msra.mxu0 0.0
    %2070 = vmatprep.subr.mxu0 0.0
    %2071 = vmatpush2.msra.mxu0 0.0
    %2072 = vmatprep.subr.mxu0 0.0
    %2073 = vmatpush2.msra.mxu0 0.0
    %2074 = vmatprep.subr.mxu0 0.0
    %2075 = vmatpush2.msra.mxu0 0.0
    %2076 = vmatprep.subr.mxu0 0.0
    %2077 = vmatpush2.msra.mxu0 0.0
    %2078 = vmatprep.subr.mxu0 0.0
    %2079 = vmatpush2.msra.mxu0 0.0
    %2080 = vmatprep.subr.mxu0 0.0
    %2081 = vmatpush2.msra.mxu0 0.0
    %2082 = vmatprep.subr.mxu0 0.0
    %2083 = vmatpush2.msra.mxu0 0.0
    %2084 = vmatprep.subr.mxu0 0.0
    %2085 = vmatpush2.msra.mxu0 0.0
    %2086 = vmatprep.subr.mxu0 0.0
    %2087 = vmatpush2.msra.mxu0 0.0
    %2088 = vmatprep.subr.mxu0 0.0
    %2089 = vmatpush2.msra.mxu0 0.0
    %2090 = vmatprep.mubr.f32.mxu0 0.0
    %2091 = vmatmul.mubr.f32.gmra.mxu0 %v2007
    %v2092 = vpop.f32.mrf.mxu0
    %v2093 = vadd.f32 %v2014, %v2092
    %v2094 = vpop.f32.mrf.mxu0
    %v2095 = vadd.f32 %v2018, %v2094
    %2096 = vmatprep.mubr.f32.mxu0 0.0
    %2097 = vmatmul.mubr.f32.gmra.mxu0 %v2008
    %v2098 = vpop.f32.mrf.mxu0
    %v2099 = vadd.f32 %v2014, %v2098
    %v2100 = vpop.f32.mrf.mxu0
    %v2101 = vadd.f32 %v2018, %v2100
    %2102 = vdwg.mxu0
    %2103 = vmatprep.subr.mxu0 0.0
    %2104 = vmatpush1.msra.mxu0 %v2006
    %2105 = vmatprep.subr.mxu0 0.0
    %2106 = vmatpush1.msra.mxu0 %v2003
    %2107 = vmatprep.subr.mxu0 0.0
    %2108 = vmatpush1.msra.mxu0 %v2000
    %2109 = vmatprep.subr.mxu0 0.0
    %2110 = vmatpush1.msra.mxu0 %v1997
    %2111 = vmatprep.subr.mxu0 0.0
    %2112 = vmatpush1.msra.mxu0 %v1994
    %2113 = vmatprep.subr.mxu0 0.0
    %2114 = vmatpush1.msra.mxu0 %v1991
    %2115 = vmatprep.subr.mxu0 0.0
    %2116 = vmatpush1.msra.mxu0 %v1988
    %2117 = vmatprep.subr.mxu0 0.0
    %2118 = vmatpush1.msra.mxu0 %v1985
    %2119 = vmatprep.subr.mxu0 0.0
    %2120 = vmatpush1.msra.mxu0 %v1982
    %2121 = vmatprep.subr.mxu0 0.0
    %2122 = vmatpush1.msra.mxu0 %v1979
    %2123 = vmatprep.subr.mxu0 0.0
    %2124 = vmatpush1.msra.mxu0 %v1976
    %2125 = vmatprep.subr.mxu0 0.0
    %2126 = vmatpush1.msra.mxu0 %v1973
    %2127 = vmatprep.subr.mxu0 0.0
    %2128 = vmatpush1.msra.mxu0 %v1970
    %2129 = vmatprep.subr.mxu0 0.0
    %2130 = vmatpush1.msra.mxu0 %v1967
    %2131 = vmatprep.subr.mxu0 0.0
    %2132 = vmatpush1.msra.mxu0 %v1964
    %2133 = vmatprep.subr.mxu0 0.0
    %2134 = vmatpush1.msra.mxu0 %v1961
    %2135 = vmatprep.subr.mxu0 0.0
    %2136 = vmatpush2.msra.mxu0 0.0
    %2137 = vmatprep.subr.mxu0 0.0
    %2138 = vmatpush2.msra.mxu0 0.0
    %2139 = vmatprep.subr.mxu0 0.0
    %2140 = vmatpush2.msra.mxu0 0.0
    %2141 = vmatprep.subr.mxu0 0.0
    %2142 = vmatpush2.msra.mxu0 0.0
    %2143 = vmatprep.subr.mxu0 0.0
    %2144 = vmatpush2.msra.mxu0 0.0
    %2145 = vmatprep.subr.mxu0 0.0
    %2146 = vmatpush2.msra.mxu0 0.0
    %2147 = vmatprep.subr.mxu0 0.0
    %2148 = vmatpush2.msra.mxu0 0.0
    %2149 = vmatprep.subr.mxu0 0.0
    %2150 = vmatpush2.msra.mxu0 0.0
    %2151 = vmatprep.subr.mxu0 0.0
    %2152 = vmatpush2.msra.mxu0 0.0
    %2153 = vmatprep.subr.mxu0 0.0
    %2154 = vmatpush2.msra.mxu0 0.0
    %2155 = vmatprep.subr.mxu0 0.0
    %2156 = vmatpush2.msra.mxu0 0.0
    %2157 = vmatprep.subr.mxu0 0.0
    %2158 = vmatpush2.msra.mxu0 0.0
    %2159 = vmatprep.subr.mxu0 0.0
    %2160 = vmatpush2.msra.mxu0 0.0
    %2161 = vmatprep.subr.mxu0 0.0
    %2162 = vmatpush2.msra.mxu0 0.0
    %2163 = vmatprep.subr.mxu0 0.0
    %2164 = vmatpush2.msra.mxu0 0.0
    %2165 = vmatprep.subr.mxu0 0.0
    %2166 = vmatpush2.msra.mxu0 0.0
    %2167 = vmatprep.mubr.f32.mxu0 0.0
    %2168 = vmatmul.mubr.f32.gmra.mxu0 %v2007
    %v2169 = vpop.f32.mrf.mxu0
    %v2170 = vadd.f32 %v2022, %v2169
    %v2171 = vpop.f32.mrf.mxu0
    %2172 = vmatprep.mubr.f32.mxu0 0.0
    %2173 = vmatmul.mubr.f32.gmra.mxu0 %v2008
    %v2174 = vpop.f32.mrf.mxu0
    %v2175 = vadd.f32 %v2022, %v2174
    %v2176 = vpop.f32.mrf.mxu0
    %2177 = vdwg.mxu0
    %2178 = vst [vmem:[#allocation3] sm:$0xff] %v2093
    %2179 = vst [vmem:[#allocation3 + $0x8] sm:$0xff] %v2095
    %2180 = vst [vmem:[#allocation3 + $0x10] sm:$0xff] %v2170
    %2181 = vst [vmem:[#allocation3 + $0x18] sm:$0xff] %v2099
    %2182 = vst [vmem:[#allocation3 + $0x20] sm:$0xff] %v2101
    %2183 = vst [vmem:[#allocation3 + $0x28] sm:$0xff] %v2175
    %s2184 = scalar_lea.vmem %s1, 2
    %v2185 = vld [vmem:[%s2184] sm:$0x3]
    %v2186 = vld [vmem:[#allocation3] sm:$0x3]
    %v2187 = vld [vmem:[#allocation3 + $0x8] sm:$0x3]
    %v2188 = vld [vmem:[#allocation3 + $0x10] sm:$0x3]
    %s2189 = scalar_lea.vmem %s2, 384
    %v2190 = vld [vmem:[%s2189] sm:$0xff]
    %v2191 = vld [vmem:[%s2189 + $0x8] sm:$0xff]
    %v2192 = vld [vmem:[%s2189 + $0x10] sm:$0xff]
    %v2193 = vld [vmem:[%s2189 + $0x18] sm:$0xff]
    %v2194 = vld [vmem:[%s2189 + $0x20] sm:$0xff]
    %v2195 = vld [vmem:[%s2189 + $0x28] sm:$0xff]
    %v2196 = vld [vmem:[%s2189 + $0x30] sm:$0xff]
    %v2197 = vld [vmem:[%s2189 + $0x38] sm:$0xff]
    %v2198 = vld [vmem:[%s2189 + $0x40] sm:$0xff]
    %v2199 = vld [vmem:[%s2189 + $0x48] sm:$0xff]
    %v2200 = vld [vmem:[%s2189 + $0x50] sm:$0xff]
    %v2201 = vld [vmem:[%s2189 + $0x58] sm:$0xff]
    %v2202 = vld [vmem:[%s2189 + $0x60] sm:$0xff]
    %v2203 = vld [vmem:[%s2189 + $0x68] sm:$0xff]
    %v2204 = vld [vmem:[%s2189 + $0x70] sm:$0xff]
    %v2205 = vld [vmem:[%s2189 + $0x78] sm:$0xff]
    %v2206 = vld [vmem:[%s2189 + $0x80] sm:$0xff]
    %v2207 = vld [vmem:[%s2189 + $0x88] sm:$0xff]
    %v2208 = vld [vmem:[%s2189 + $0x90] sm:$0xff]
    %v2209 = vld [vmem:[%s2189 + $0x98] sm:$0xff]
    %v2210 = vld [vmem:[%s2189 + $0xa0] sm:$0xff]
    %v2211 = vld [vmem:[%s2189 + $0xa8] sm:$0xff]
    %v2212 = vld [vmem:[%s2189 + $0xb0] sm:$0xff]
    %v2213 = vld [vmem:[%s2189 + $0xb8] sm:$0xff]
    %v2214 = vld [vmem:[%s2189 + $0xc0] sm:$0xff]
    %v2215 = vld [vmem:[%s2189 + $0xc8] sm:$0xff]
    %v2216 = vld [vmem:[%s2189 + $0xd0] sm:$0xff]
    %v2217 = vld [vmem:[%s2189 + $0xd8] sm:$0xff]
    %v2218 = vld [vmem:[%s2189 + $0xe0] sm:$0xff]
    %v2219 = vld [vmem:[%s2189 + $0xe8] sm:$0xff]
    %v2220 = vld [vmem:[%s2189 + $0xf0] sm:$0xff]
    %v2221 = vld [vmem:[%s2189 + $0xf8] sm:$0xff]
    %v2222 = vld [vmem:[%s2189 + $0x100] sm:$0xff]
    %v2223 = vld [vmem:[%s2189 + $0x108] sm:$0xff]
    %v2224 = vld [vmem:[%s2189 + $0x110] sm:$0xff]
    %v2225 = vld [vmem:[%s2189 + $0x118] sm:$0xff]
    %v2226 = vld [vmem:[%s2189 + $0x120] sm:$0xff]
    %v2227 = vld [vmem:[%s2189 + $0x128] sm:$0xff]
    %v2228 = vld [vmem:[%s2189 + $0x130] sm:$0xff]
    %v2229 = vld [vmem:[%s2189 + $0x138] sm:$0xff]
    %v2230 = vld [vmem:[%s2189 + $0x140] sm:$0xff]
    %v2231 = vld [vmem:[%s2189 + $0x148] sm:$0xff]
    %v2232 = vld [vmem:[%s2189 + $0x150] sm:$0xff]
    %v2233 = vld [vmem:[%s2189 + $0x158] sm:$0xff]
    %v2234 = vld [vmem:[%s2189 + $0x160] sm:$0xff]
    %v2235 = vld [vmem:[%s2189 + $0x168] sm:$0xff]
    %v2236 = vld [vmem:[%s2189 + $0x170] sm:$0xff]
    %v2237 = vld [vmem:[%s2189 + $0x178] sm:$0xff]
    %s2238 = scalar_lea.vmem %s3, 3
    %v2239 = vld [vmem:[%s2238] sm:$0x7]
    %v2241 = vlaneseq
    %v2242 = vshrl.u32 %v2241, 7
    %v2243 = vsub.s32 0, %v2242
    %v2244 = vrot.slane %v2239, %v2243
    %v2245 = vlaneseq
    %v2246 = vshrl.u32 %v2245, 7
    %v2247 = vsub.s32 1, %v2246
    %v2248 = vrot.slane %v2239, %v2247
    %v2249 = vlaneseq
    %v2250 = vshrl.u32 %v2249, 7
    %v2251 = vsub.s32 2, %v2250
    %v2252 = vrot.slane %v2239, %v2251
    %2256 = vmatprep.subr.mxu0 %v2236
    %2257 = vmatpush1.msra.mxu0 %v2235
    %2258 = vmatprep.subr.mxu0 %v2233
    %2259 = vmatpush1.msra.mxu0 %v2232
    %2260 = vmatprep.subr.mxu0 %v2230
    %2261 = vmatpush1.msra.mxu0 %v2229
    %2262 = vmatprep.subr.mxu0 %v2227
    %2263 = vmatpush1.msra.mxu0 %v2226
    %2264 = vmatprep.subr.mxu0 %v2224
    %2265 = vmatpush1.msra.mxu0 %v2223
    %2266 = vmatprep.subr.mxu0 %v2221
    %2267 = vmatpush1.msra.mxu0 %v2220
    %2268 = vmatprep.subr.mxu0 %v2218
    %2269 = vmatpush1.msra.mxu0 %v2217
    %2270 = vmatprep.subr.mxu0 %v2215
    %2271 = vmatpush1.msra.mxu0 %v2214
    %2272 = vmatprep.subr.mxu0 %v2212
    %2273 = vmatpush1.msra.mxu0 %v2211
    %2274 = vmatprep.subr.mxu0 %v2209
    %2275 = vmatpush1.msra.mxu0 %v2208
    %2276 = vmatprep.subr.mxu0 %v2206
    %2277 = vmatpush1.msra.mxu0 %v2205
    %2278 = vmatprep.subr.mxu0 %v2203
    %2279 = vmatpush1.msra.mxu0 %v2202
    %2280 = vmatprep.subr.mxu0 %v2200
    %2281 = vmatpush1.msra.mxu0 %v2199
    %2282 = vmatprep.subr.mxu0 %v2197
    %2283 = vmatpush1.msra.mxu0 %v2196
    %2284 = vmatprep.subr.mxu0 %v2194
    %2285 = vmatpush1.msra.mxu0 %v2193
    %2286 = vmatprep.subr.mxu0 %v2191
    %2287 = vmatpush1.msra.mxu0 %v2190
    %2288 = vmatprep.subr.mxu0 0.0
    %2289 = vmatpush2.msra.mxu0 0.0
    %2290 = vmatprep.subr.mxu0 0.0
    %2291 = vmatpush2.msra.mxu0 0.0
    %2292 = vmatprep.subr.mxu0 0.0
    %2293 = vmatpush2.msra.mxu0 0.0
    %2294 = vmatprep.subr.mxu0 0.0
    %2295 = vmatpush2.msra.mxu0 0.0
    %2296 = vmatprep.subr.mxu0 0.0
    %2297 = vmatpush2.msra.mxu0 0.0
    %2298 = vmatprep.subr.mxu0 0.0
    %2299 = vmatpush2.msra.mxu0 0.0
    %2300 = vmatprep.subr.mxu0 0.0
    %2301 = vmatpush2.msra.mxu0 0.0
    %2302 = vmatprep.subr.mxu0 0.0
    %2303 = vmatpush2.msra.mxu0 0.0
    %2304 = vmatprep.subr.mxu0 0.0
    %2305 = vmatpush2.msra.mxu0 0.0
    %2306 = vmatprep.subr.mxu0 0.0
    %2307 = vmatpush2.msra.mxu0 0.0
    %2308 = vmatprep.subr.mxu0 0.0
    %2309 = vmatpush2.msra.mxu0 0.0
    %2310 = vmatprep.subr.mxu0 0.0
    %2311 = vmatpush2.msra.mxu0 0.0
    %2312 = vmatprep.subr.mxu0 0.0
    %2313 = vmatpush2.msra.mxu0 0.0
    %2314 = vmatprep.subr.mxu0 0.0
    %2315 = vmatpush2.msra.mxu0 0.0
    %2316 = vmatprep.subr.mxu0 0.0
    %2317 = vmatpush2.msra.mxu0 0.0
    %2318 = vmatprep.subr.mxu0 0.0
    %2319 = vmatpush2.msra.mxu0 0.0
    %2320 = vmatprep.mubr.f32.mxu0 0.0
    %2321 = vmatmul.mubr.f32.gmra.mxu0 %v2185
    %v2322 = vpop.f32.mrf.mxu0
    %v2323 = vadd.f32 %v2244, %v2322
    %v2324 = vpop.f32.mrf.mxu0
    %v2325 = vadd.f32 %v2248, %v2324
    %2326 = vdwg.mxu0
    %2327 = vmatprep.subr.mxu0 0.0
    %2328 = vmatpush1.msra.mxu0 %v2237
    %2329 = vmatprep.subr.mxu0 0.0
    %2330 = vmatpush1.msra.mxu0 %v2234
    %2331 = vmatprep.subr.mxu0 0.0
    %2332 = vmatpush1.msra.mxu0 %v2231
    %2333 = vmatprep.subr.mxu0 0.0
    %2334 = vmatpush1.msra.mxu0 %v2228
    %2335 = vmatprep.subr.mxu0 0.0
    %2336 = vmatpush1.msra.mxu0 %v2225
    %2337 = vmatprep.subr.mxu0 0.0
    %2338 = vmatpush1.msra.mxu0 %v2222
    %2339 = vmatprep.subr.mxu0 0.0
    %2340 = vmatpush1.msra.mxu0 %v2219
    %2341 = vmatprep.subr.mxu0 0.0
    %2342 = vmatpush1.msra.mxu0 %v2216
    %2343 = vmatprep.subr.mxu0 0.0
    %2344 = vmatpush1.msra.mxu0 %v2213
    %2345 = vmatprep.subr.mxu0 0.0
    %2346 = vmatpush1.msra.mxu0 %v2210
    %2347 = vmatprep.subr.mxu0 0.0
    %2348 = vmatpush1.msra.mxu0 %v2207
    %2349 = vmatprep.subr.mxu0 0.0
    %2350 = vmatpush1.msra.mxu0 %v2204
    %2351 = vmatprep.subr.mxu0 0.0
    %2352 = vmatpush1.msra.mxu0 %v2201
    %2353 = vmatprep.subr.mxu0 0.0
    %2354 = vmatpush1.msra.mxu0 %v2198
    %2355 = vmatprep.subr.mxu0 0.0
    %2356 = vmatpush1.msra.mxu0 %v2195
    %2357 = vmatprep.subr.mxu0 0.0
    %2358 = vmatpush1.msra.mxu0 %v2192
    %2359 = vmatprep.subr.mxu0 0.0
    %2360 = vmatpush2.msra.mxu0 0.0
    %2361 = vmatprep.subr.mxu0 0.0
    %2362 = vmatpush2.msra.mxu0 0.0
    %2363 = vmatprep.subr.mxu0 0.0
    %2364 = vmatpush2.msra.mxu0 0.0
    %2365 = vmatprep.subr.mxu0 0.0
    %2366 = vmatpush2.msra.mxu0 0.0
    %2367 = vmatprep.subr.mxu0 0.0
    %2368 = vmatpush2.msra.mxu0 0.0
    %2369 = vmatprep.subr.mxu0 0.0
    %2370 = vmatpush2.msra.mxu0 0.0
    %2371 = vmatprep.subr.mxu0 0.0
    %2372 = vmatpush2.msra.mxu0 0.0
    %2373 = vmatprep.subr.mxu0 0.0
    %2374 = vmatpush2.msra.mxu0 0.0
    %2375 = vmatprep.subr.mxu0 0.0
    %2376 = vmatpush2.msra.mxu0 0.0
    %2377 = vmatprep.subr.mxu0 0.0
    %2378 = vmatpush2.msra.mxu0 0.0
    %2379 = vmatprep.subr.mxu0 0.0
    %2380 = vmatpush2.msra.mxu0 0.0
    %2381 = vmatprep.subr.mxu0 0.0
    %2382 = vmatpush2.msra.mxu0 0.0
    %2383 = vmatprep.subr.mxu0 0.0
    %2384 = vmatpush2.msra.mxu0 0.0
    %2385 = vmatprep.subr.mxu0 0.0
    %2386 = vmatpush2.msra.mxu0 0.0
    %2387 = vmatprep.subr.mxu0 0.0
    %2388 = vmatpush2.msra.mxu0 0.0
    %2389 = vmatprep.subr.mxu0 0.0
    %2390 = vmatpush2.msra.mxu0 0.0
    %2391 = vmatprep.mubr.f32.mxu0 0.0
    %2392 = vmatmul.mubr.f32.gmra.mxu0 %v2185
    %v2393 = vpop.f32.mrf.mxu0
    %v2394 = vadd.f32 %v2252, %v2393
    %v2395 = vpop.f32.mrf.mxu0
    %2396 = vdwg.mxu0
    %v2397 = vadd.f32 %v2186, %v2323
    %v2398 = vxor.u32 %v2397, 2147483648
    %v2399 = vmul.f32 %v2398, 1.442695
    %v2400 = vpow.pop %v2399
    %v2401 = vadd.f32 %v2400, 1.0
    %v2402 = vrcp.pop %v2401
    %v2403 = vmul.f32 1.0, %v2402
    %v2404 = vadd.f32 %v2187, %v2325
    %v2405 = vxor.u32 %v2404, 2147483648
    %v2406 = vmul.f32 %v2405, 1.442695
    %v2407 = vpow.pop %v2406
    %v2408 = vadd.f32 %v2407, 1.0
    %v2409 = vrcp.pop %v2408
    %v2410 = vmul.f32 1.0, %v2409
    %v2411 = vmul.f32 %v2403, %v2394
    %v2412 = vadd.f32 %v2188, %v2411
    %v2413 = vtanh.pop %v2412
    %v2414 = vsub.f32 1.0, %v2410
    %v2415 = vmul.f32 %v2414, %v2413
    %v2416 = vmul.f32 %v2410, %v2185
    %v2417 = vadd.f32 %v2415, %v2416
    %2418 = vst [vmem:[%s6] sm:$0x3] %v2417
    %v2419 = vld [vmem:[#allocation3] sm:$0xc]
    %v2420 = vld [vmem:[#allocation3 + $0x8] sm:$0xc]
    %v2421 = vld [vmem:[#allocation3 + $0x10] sm:$0xc]
    %v2422 = vld [vmem:[%s2189] sm:$0xff]
    %v2423 = vld [vmem:[%s2189 + $0x8] sm:$0xff]
    %v2424 = vld [vmem:[%s2189 + $0x10] sm:$0xff]
    %v2425 = vld [vmem:[%s2189 + $0x18] sm:$0xff]
    %v2426 = vld [vmem:[%s2189 + $0x20] sm:$0xff]
    %v2427 = vld [vmem:[%s2189 + $0x28] sm:$0xff]
    %v2428 = vld [vmem:[%s2189 + $0x30] sm:$0xff]
    %v2429 = vld [vmem:[%s2189 + $0x38] sm:$0xff]
    %v2430 = vld [vmem:[%s2189 + $0x40] sm:$0xff]
    %v2431 = vld [vmem:[%s2189 + $0x48] sm:$0xff]
    %v2432 = vld [vmem:[%s2189 + $0x50] sm:$0xff]
    %v2433 = vld [vmem:[%s2189 + $0x58] sm:$0xff]
    %v2434 = vld [vmem:[%s2189 + $0x60] sm:$0xff]
    %v2435 = vld [vmem:[%s2189 + $0x68] sm:$0xff]
    %v2436 = vld [vmem:[%s2189 + $0x70] sm:$0xff]
    %v2437 = vld [vmem:[%s2189 + $0x78] sm:$0xff]
    %v2438 = vld [vmem:[%s2189 + $0x80] sm:$0xff]
    %v2439 = vld [vmem:[%s2189 + $0x88] sm:$0xff]
    %v2440 = vld [vmem:[%s2189 + $0x90] sm:$0xff]
    %v2441 = vld [vmem:[%s2189 + $0x98] sm:$0xff]
    %v2442 = vld [vmem:[%s2189 + $0xa0] sm:$0xff]
    %v2443 = vld [vmem:[%s2189 + $0xa8] sm:$0xff]
    %v2444 = vld [vmem:[%s2189 + $0xb0] sm:$0xff]
    %v2445 = vld [vmem:[%s2189 + $0xb8] sm:$0xff]
    %v2446 = vld [vmem:[%s2189 + $0xc0] sm:$0xff]
    %v2447 = vld [vmem:[%s2189 + $0xc8] sm:$0xff]
    %v2448 = vld [vmem:[%s2189 + $0xd0] sm:$0xff]
    %v2449 = vld [vmem:[%s2189 + $0xd8] sm:$0xff]
    %v2450 = vld [vmem:[%s2189 + $0xe0] sm:$0xff]
    %v2451 = vld [vmem:[%s2189 + $0xe8] sm:$0xff]
    %v2452 = vld [vmem:[%s2189 + $0xf0] sm:$0xff]
    %v2453 = vld [vmem:[%s2189 + $0xf8] sm:$0xff]
    %v2454 = vld [vmem:[%s2189 + $0x100] sm:$0xff]
    %v2455 = vld [vmem:[%s2189 + $0x108] sm:$0xff]
    %v2456 = vld [vmem:[%s2189 + $0x110] sm:$0xff]
    %v2457 = vld [vmem:[%s2189 + $0x118] sm:$0xff]
    %v2458 = vld [vmem:[%s2189 + $0x120] sm:$0xff]
    %v2459 = vld [vmem:[%s2189 + $0x128] sm:$0xff]
    %v2460 = vld [vmem:[%s2189 + $0x130] sm:$0xff]
    %v2461 = vld [vmem:[%s2189 + $0x138] sm:$0xff]
    %v2462 = vld [vmem:[%s2189 + $0x140] sm:$0xff]
    %v2463 = vld [vmem:[%s2189 + $0x148] sm:$0xff]
    %v2464 = vld [vmem:[%s2189 + $0x150] sm:$0xff]
    %v2465 = vld [vmem:[%s2189 + $0x158] sm:$0xff]
    %v2466 = vld [vmem:[%s2189 + $0x160] sm:$0xff]
    %v2467 = vld [vmem:[%s2189 + $0x168] sm:$0xff]
    %v2468 = vld [vmem:[%s2189 + $0x170] sm:$0xff]
    %v2469 = vld [vmem:[%s2189 + $0x178] sm:$0xff]
    %v2470 = vld [vmem:[%s2238] sm:$0x7]
    %v2472 = vlaneseq
    %v2473 = vshrl.u32 %v2472, 7
    %v2474 = vsub.s32 0, %v2473
    %v2475 = vrot.slane %v2470, %v2474
    %v2476 = vlaneseq
    %v2477 = vshrl.u32 %v2476, 7
    %v2478 = vsub.s32 1, %v2477
    %v2479 = vrot.slane %v2470, %v2478
    %v2480 = vlaneseq
    %v2481 = vshrl.u32 %v2480, 7
    %v2482 = vsub.s32 2, %v2481
    %v2483 = vrot.slane %v2470, %v2482
    %2487 = vmatprep.subr.mxu0 %v2468
    %2488 = vmatpush1.msra.mxu0 %v2467
    %2489 = vmatprep.subr.mxu0 %v2465
    %2490 = vmatpush1.msra.mxu0 %v2464
    %2491 = vmatprep.subr.mxu0 %v2462
    %2492 = vmatpush1.msra.mxu0 %v2461
    %2493 = vmatprep.subr.mxu0 %v2459
    %2494 = vmatpush1.msra.mxu0 %v2458
    %2495 = vmatprep.subr.mxu0 %v2456
    %2496 = vmatpush1.msra.mxu0 %v2455
    %2497 = vmatprep.subr.mxu0 %v2453
    %2498 = vmatpush1.msra.mxu0 %v2452
    %2499 = vmatprep.subr.mxu0 %v2450
    %2500 = vmatpush1.msra.mxu0 %v2449
    %2501 = vmatprep.subr.mxu0 %v2447
    %2502 = vmatpush1.msra.mxu0 %v2446
    %2503 = vmatprep.subr.mxu0 %v2444
    %2504 = vmatpush1.msra.mxu0 %v2443
    %2505 = vmatprep.subr.mxu0 %v2441
    %2506 = vmatpush1.msra.mxu0 %v2440
    %2507 = vmatprep.subr.mxu0 %v2438
    %2508 = vmatpush1.msra.mxu0 %v2437
    %2509 = vmatprep.subr.mxu0 %v2435
    %2510 = vmatpush1.msra.mxu0 %v2434
    %2511 = vmatprep.subr.mxu0 %v2432
    %2512 = vmatpush1.msra.mxu0 %v2431
    %2513 = vmatprep.subr.mxu0 %v2429
    %2514 = vmatpush1.msra.mxu0 %v2428
    %2515 = vmatprep.subr.mxu0 %v2426
    %2516 = vmatpush1.msra.mxu0 %v2425
    %2517 = vmatprep.subr.mxu0 %v2423
    %2518 = vmatpush1.msra.mxu0 %v2422
    %2519 = vmatprep.subr.mxu0 0.0
    %2520 = vmatpush2.msra.mxu0 0.0
    %2521 = vmatprep.subr.mxu0 0.0
    %2522 = vmatpush2.msra.mxu0 0.0
    %2523 = vmatprep.subr.mxu0 0.0
    %2524 = vmatpush2.msra.mxu0 0.0
    %2525 = vmatprep.subr.mxu0 0.0
    %2526 = vmatpush2.msra.mxu0 0.0
    %2527 = vmatprep.subr.mxu0 0.0
    %2528 = vmatpush2.msra.mxu0 0.0
    %2529 = vmatprep.subr.mxu0 0.0
    %2530 = vmatpush2.msra.mxu0 0.0
    %2531 = vmatprep.subr.mxu0 0.0
    %2532 = vmatpush2.msra.mxu0 0.0
    %2533 = vmatprep.subr.mxu0 0.0
    %2534 = vmatpush2.msra.mxu0 0.0
    %2535 = vmatprep.subr.mxu0 0.0
    %2536 = vmatpush2.msra.mxu0 0.0
    %2537 = vmatprep.subr.mxu0 0.0
    %2538 = vmatpush2.msra.mxu0 0.0
    %2539 = vmatprep.subr.mxu0 0.0
    %2540 = vmatpush2.msra.mxu0 0.0
    %2541 = vmatprep.subr.mxu0 0.0
    %2542 = vmatpush2.msra.mxu0 0.0
    %2543 = vmatprep.subr.mxu0 0.0
    %2544 = vmatpush2.msra.mxu0 0.0
    %2545 = vmatprep.subr.mxu0 0.0
    %2546 = vmatpush2.msra.mxu0 0.0
    %2547 = vmatprep.subr.mxu0 0.0
    %2548 = vmatpush2.msra.mxu0 0.0
    %2549 = vmatprep.subr.mxu0 0.0
    %2550 = vmatpush2.msra.mxu0 0.0
    %2551 = vmatprep.mubr.f32.mxu0 0.0
    %2552 = vmatmul.mubr.f32.gmra.mxu0 %v2417
    %v2553 = vpop.f32.mrf.mxu0
    %v2554 = vadd.f32 %v2475, %v2553
    %v2555 = vpop.f32.mrf.mxu0
    %v2556 = vadd.f32 %v2479, %v2555
    %2557 = vdwg.mxu0
    %2558 = vmatprep.subr.mxu0 0.0
    %2559 = vmatpush1.msra.mxu0 %v2469
    %2560 = vmatprep.subr.mxu0 0.0
    %2561 = vmatpush1.msra.mxu0 %v2466
    %2562 = vmatprep.subr.mxu0 0.0
    %2563 = vmatpush1.msra.mxu0 %v2463
    %2564 = vmatprep.subr.mxu0 0.0
    %2565 = vmatpush1.msra.mxu0 %v2460
    %2566 = vmatprep.subr.mxu0 0.0
    %2567 = vmatpush1.msra.mxu0 %v2457
    %2568 = vmatprep.subr.mxu0 0.0
    %2569 = vmatpush1.msra.mxu0 %v2454
    %2570 = vmatprep.subr.mxu0 0.0
    %2571 = vmatpush1.msra.mxu0 %v2451
    %2572 = vmatprep.subr.mxu0 0.0
    %2573 = vmatpush1.msra.mxu0 %v2448
    %2574 = vmatprep.subr.mxu0 0.0
    %2575 = vmatpush1.msra.mxu0 %v2445
    %2576 = vmatprep.subr.mxu0 0.0
    %2577 = vmatpush1.msra.mxu0 %v2442
    %2578 = vmatprep.subr.mxu0 0.0
    %2579 = vmatpush1.msra.mxu0 %v2439
    %2580 = vmatprep.subr.mxu0 0.0
    %2581 = vmatpush1.msra.mxu0 %v2436
    %2582 = vmatprep.subr.mxu0 0.0
    %2583 = vmatpush1.msra.mxu0 %v2433
    %2584 = vmatprep.subr.mxu0 0.0
    %2585 = vmatpush1.msra.mxu0 %v2430
    %2586 = vmatprep.subr.mxu0 0.0
    %2587 = vmatpush1.msra.mxu0 %v2427
    %2588 = vmatprep.subr.mxu0 0.0
    %2589 = vmatpush1.msra.mxu0 %v2424
    %2590 = vmatprep.subr.mxu0 0.0
    %2591 = vmatpush2.msra.mxu0 0.0
    %2592 = vmatprep.subr.mxu0 0.0
    %2593 = vmatpush2.msra.mxu0 0.0
    %2594 = vmatprep.subr.mxu0 0.0
    %2595 = vmatpush2.msra.mxu0 0.0
    %2596 = vmatprep.subr.mxu0 0.0
    %2597 = vmatpush2.msra.mxu0 0.0
    %2598 = vmatprep.subr.mxu0 0.0
    %2599 = vmatpush2.msra.mxu0 0.0
    %2600 = vmatprep.subr.mxu0 0.0
    %2601 = vmatpush2.msra.mxu0 0.0
    %2602 = vmatprep.subr.mxu0 0.0
    %2603 = vmatpush2.msra.mxu0 0.0
    %2604 = vmatprep.subr.mxu0 0.0
    %2605 = vmatpush2.msra.mxu0 0.0
    %2606 = vmatprep.subr.mxu0 0.0
    %2607 = vmatpush2.msra.mxu0 0.0
    %2608 = vmatprep.subr.mxu0 0.0
    %2609 = vmatpush2.msra.mxu0 0.0
    %2610 = vmatprep.subr.mxu0 0.0
    %2611 = vmatpush2.msra.mxu0 0.0
    %2612 = vmatprep.subr.mxu0 0.0
    %2613 = vmatpush2.msra.mxu0 0.0
    %2614 = vmatprep.subr.mxu0 0.0
    %2615 = vmatpush2.msra.mxu0 0.0
    %2616 = vmatprep.subr.mxu0 0.0
    %2617 = vmatpush2.msra.mxu0 0.0
    %2618 = vmatprep.subr.mxu0 0.0
    %2619 = vmatpush2.msra.mxu0 0.0
    %2620 = vmatprep.subr.mxu0 0.0
    %2621 = vmatpush2.msra.mxu0 0.0
    %2622 = vmatprep.mubr.f32.mxu0 0.0
    %2623 = vmatmul.mubr.f32.gmra.mxu0 %v2417
    %v2624 = vpop.f32.mrf.mxu0
    %v2625 = vadd.f32 %v2483, %v2624
    %v2626 = vpop.f32.mrf.mxu0
    %2627 = vdwg.mxu0
    %v2629 = vrot.slane %v2554, 6
    %v2631 = vadd.f32 %v2419, %v2629
    %v2632 = vxor.u32 %v2631, 2147483648
    %v2633 = vmul.f32 %v2632, 1.442695
    %v2634 = vpow.pop %v2633
    %v2635 = vadd.f32 %v2634, 1.0
    %v2636 = vrcp.pop %v2635
    %v2637 = vmul.f32 1.0, %v2636
    %v2639 = vrot.slane %v2556, 6
    %v2641 = vadd.f32 %v2420, %v2639
    %v2642 = vxor.u32 %v2641, 2147483648
    %v2643 = vmul.f32 %v2642, 1.442695
    %v2644 = vpow.pop %v2643
    %v2645 = vadd.f32 %v2644, 1.0
    %v2646 = vrcp.pop %v2645
    %v2647 = vmul.f32 1.0, %v2646
    %v2649 = vrot.slane %v2625, 6
    %v2651 = vmul.f32 %v2637, %v2649
    %v2652 = vadd.f32 %v2421, %v2651
    %v2653 = vtanh.pop %v2652
    %v2654 = vsub.f32 1.0, %v2647
    %v2655 = vmul.f32 %v2654, %v2653
    %v2657 = vrot.slane %v2417, 6
    %v2659 = vmul.f32 %v2647, %v2657
    %v2660 = vadd.f32 %v2655, %v2659
    %v2663 = vunpack.c.l.s4 1983009808
    %v2664 = vunpack.c.0.s8 %v2663
    %v2665 = vlaneseq
    %v2666 = vshrl.u32 %v2665, 7
    %v2667 = vsub.s32 %v2664, %v2666
    %v2668 = vrot.slane %v2660, %v2667
    %v2669 = vcombine.high %v2668, %v2668
    %2671 = vst [vmem:[%s6 + $0x2] sm:$0x3] %v2669
    %v2672 = vld [vmem:[#allocation3] sm:$0x30]
    %v2673 = vld [vmem:[#allocation3 + $0x8] sm:$0x30]
    %v2674 = vld [vmem:[#allocation3 + $0x10] sm:$0x30]
    %v2675 = vld [vmem:[%s2189] sm:$0xff]
    %v2676 = vld [vmem:[%s2189 + $0x8] sm:$0xff]
    %v2677 = vld [vmem:[%s2189 + $0x10] sm:$0xff]
    %v2678 = vld [vmem:[%s2189 + $0x18] sm:$0xff]
    %v2679 = vld [vmem:[%s2189 + $0x20] sm:$0xff]
    %v2680 = vld [vmem:[%s2189 + $0x28] sm:$0xff]
    %v2681 = vld [vmem:[%s2189 + $0x30] sm:$0xff]
    %v2682 = vld [vmem:[%s2189 + $0x38] sm:$0xff]
    %v2683 = vld [vmem:[%s2189 + $0x40] sm:$0xff]
    %v2684 = vld [vmem:[%s2189 + $0x48] sm:$0xff]
    %v2685 = vld [vmem:[%s2189 + $0x50] sm:$0xff]
    %v2686 = vld [vmem:[%s2189 + $0x58] sm:$0xff]
    %v2687 = vld [vmem:[%s2189 + $0x60] sm:$0xff]
    %v2688 = vld [vmem:[%s2189 + $0x68] sm:$0xff]
    %v2689 = vld [vmem:[%s2189 + $0x70] sm:$0xff]
    %v2690 = vld [vmem:[%s2189 + $0x78] sm:$0xff]
    %v2691 = vld [vmem:[%s2189 + $0x80] sm:$0xff]
    %v2692 = vld [vmem:[%s2189 + $0x88] sm:$0xff]
    %v2693 = vld [vmem:[%s2189 + $0x90] sm:$0xff]
    %v2694 = vld [vmem:[%s2189 + $0x98] sm:$0xff]
    %v2695 = vld [vmem:[%s2189 + $0xa0] sm:$0xff]
    %v2696 = vld [vmem:[%s2189 + $0xa8] sm:$0xff]
    %v2697 = vld [vmem:[%s2189 + $0xb0] sm:$0xff]
    %v2698 = vld [vmem:[%s2189 + $0xb8] sm:$0xff]
    %v2699 = vld [vmem:[%s2189 + $0xc0] sm:$0xff]
    %v2700 = vld [vmem:[%s2189 + $0xc8] sm:$0xff]
    %v2701 = vld [vmem:[%s2189 + $0xd0] sm:$0xff]
    %v2702 = vld [vmem:[%s2189 + $0xd8] sm:$0xff]
    %v2703 = vld [vmem:[%s2189 + $0xe0] sm:$0xff]
    %v2704 = vld [vmem:[%s2189 + $0xe8] sm:$0xff]
    %v2705 = vld [vmem:[%s2189 + $0xf0] sm:$0xff]
    %v2706 = vld [vmem:[%s2189 + $0xf8] sm:$0xff]
    %v2707 = vld [vmem:[%s2189 + $0x100] sm:$0xff]
    %v2708 = vld [vmem:[%s2189 + $0x108] sm:$0xff]
    %v2709 = vld [vmem:[%s2189 + $0x110] sm:$0xff]
    %v2710 = vld [vmem:[%s2189 + $0x118] sm:$0xff]
    %v2711 = vld [vmem:[%s2189 + $0x120] sm:$0xff]
    %v2712 = vld [vmem:[%s2189 + $0x128] sm:$0xff]
    %v2713 = vld [vmem:[%s2189 + $0x130] sm:$0xff]
    %v2714 = vld [vmem:[%s2189 + $0x138] sm:$0xff]
    %v2715 = vld [vmem:[%s2189 + $0x140] sm:$0xff]
    %v2716 = vld [vmem:[%s2189 + $0x148] sm:$0xff]
    %v2717 = vld [vmem:[%s2189 + $0x150] sm:$0xff]
    %v2718 = vld [vmem:[%s2189 + $0x158] sm:$0xff]
    %v2719 = vld [vmem:[%s2189 + $0x160] sm:$0xff]
    %v2720 = vld [vmem:[%s2189 + $0x168] sm:$0xff]
    %v2721 = vld [vmem:[%s2189 + $0x170] sm:$0xff]
    %v2722 = vld [vmem:[%s2189 + $0x178] sm:$0xff]
    %v2723 = vld [vmem:[%s2238] sm:$0x7]
    %v2725 = vlaneseq
    %v2726 = vshrl.u32 %v2725, 7
    %v2727 = vsub.s32 0, %v2726
    %v2728 = vrot.slane %v2723, %v2727
    %v2729 = vlaneseq
    %v2730 = vshrl.u32 %v2729, 7
    %v2731 = vsub.s32 1, %v2730
    %v2732 = vrot.slane %v2723, %v2731
    %v2733 = vlaneseq
    %v2734 = vshrl.u32 %v2733, 7
    %v2735 = vsub.s32 2, %v2734
    %v2736 = vrot.slane %v2723, %v2735
    %v2740 = vrot.slane %v2660, 2
    %2742 = vmatprep.subr.mxu0 %v2721
    %2743 = vmatpush1.msra.mxu0 %v2720
    %2744 = vmatprep.subr.mxu0 %v2718
    %2745 = vmatpush1.msra.mxu0 %v2717
    %2746 = vmatprep.subr.mxu0 %v2715
    %2747 = vmatpush1.msra.mxu0 %v2714
    %2748 = vmatprep.subr.mxu0 %v2712
    %2749 = vmatpush1.msra.mxu0 %v2711
    %2750 = vmatprep.subr.mxu0 %v2709
    %2751 = vmatpush1.msra.mxu0 %v2708
    %2752 = vmatprep.subr.mxu0 %v2706
    %2753 = vmatpush1.msra.mxu0 %v2705
    %2754 = vmatprep.subr.mxu0 %v2703
    %2755 = vmatpush1.msra.mxu0 %v2702
    %2756 = vmatprep.subr.mxu0 %v2700
    %2757 = vmatpush1.msra.mxu0 %v2699
    %2758 = vmatprep.subr.mxu0 %v2697
    %2759 = vmatpush1.msra.mxu0 %v2696
    %2760 = vmatprep.subr.mxu0 %v2694
    %2761 = vmatpush1.msra.mxu0 %v2693
    %2762 = vmatprep.subr.mxu0 %v2691
    %2763 = vmatpush1.msra.mxu0 %v2690
    %2764 = vmatprep.subr.mxu0 %v2688
    %2765 = vmatpush1.msra.mxu0 %v2687
    %2766 = vmatprep.subr.mxu0 %v2685
    %2767 = vmatpush1.msra.mxu0 %v2684
    %2768 = vmatprep.subr.mxu0 %v2682
    %2769 = vmatpush1.msra.mxu0 %v2681
    %2770 = vmatprep.subr.mxu0 %v2679
    %2771 = vmatpush1.msra.mxu0 %v2678
    %2772 = vmatprep.subr.mxu0 %v2676
    %2773 = vmatpush1.msra.mxu0 %v2675
    %2774 = vmatprep.subr.mxu0 0.0
    %2775 = vmatpush2.msra.mxu0 0.0
    %2776 = vmatprep.subr.mxu0 0.0
    %2777 = vmatpush2.msra.mxu0 0.0
    %2778 = vmatprep.subr.mxu0 0.0
    %2779 = vmatpush2.msra.mxu0 0.0
    %2780 = vmatprep.subr.mxu0 0.0
    %2781 = vmatpush2.msra.mxu0 0.0
    %2782 = vmatprep.subr.mxu0 0.0
    %2783 = vmatpush2.msra.mxu0 0.0
    %2784 = vmatprep.subr.mxu0 0.0
    %2785 = vmatpush2.msra.mxu0 0.0
    %2786 = vmatprep.subr.mxu0 0.0
    %2787 = vmatpush2.msra.mxu0 0.0
    %2788 = vmatprep.subr.mxu0 0.0
    %2789 = vmatpush2.msra.mxu0 0.0
    %2790 = vmatprep.subr.mxu0 0.0
    %2791 = vmatpush2.msra.mxu0 0.0
    %2792 = vmatprep.subr.mxu0 0.0
    %2793 = vmatpush2.msra.mxu0 0.0
    %2794 = vmatprep.subr.mxu0 0.0
    %2795 = vmatpush2.msra.mxu0 0.0
    %2796 = vmatprep.subr.mxu0 0.0
    %2797 = vmatpush2.msra.mxu0 0.0
    %2798 = vmatprep.subr.mxu0 0.0
    %2799 = vmatpush2.msra.mxu0 0.0
    %2800 = vmatprep.subr.mxu0 0.0
    %2801 = vmatpush2.msra.mxu0 0.0
    %2802 = vmatprep.subr.mxu0 0.0
    %2803 = vmatpush2.msra.mxu0 0.0
    %2804 = vmatprep.subr.mxu0 0.0
    %2805 = vmatpush2.msra.mxu0 0.0
    %2806 = vmatprep.mubr.f32.mxu0 0.0
    %2807 = vmatmul.mubr.f32.gmra.mxu0 %v2740
    %v2808 = vpop.f32.mrf.mxu0
    %v2809 = vadd.f32 %v2728, %v2808
    %v2810 = vpop.f32.mrf.mxu0
    %v2811 = vadd.f32 %v2732, %v2810
    %2812 = vdwg.mxu0
    %2813 = vmatprep.subr.mxu0 0.0
    %2814 = vmatpush1.msra.mxu0 %v2722
    %2815 = vmatprep.subr.mxu0 0.0
    %2816 = vmatpush1.msra.mxu0 %v2719
    %2817 = vmatprep.subr.mxu0 0.0
    %2818 = vmatpush1.msra.mxu0 %v2716
    %2819 = vmatprep.subr.mxu0 0.0
    %2820 = vmatpush1.msra.mxu0 %v2713
    %2821 = vmatprep.subr.mxu0 0.0
    %2822 = vmatpush1.msra.mxu0 %v2710
    %2823 = vmatprep.subr.mxu0 0.0
    %2824 = vmatpush1.msra.mxu0 %v2707
    %2825 = vmatprep.subr.mxu0 0.0
    %2826 = vmatpush1.msra.mxu0 %v2704
    %2827 = vmatprep.subr.mxu0 0.0
    %2828 = vmatpush1.msra.mxu0 %v2701
    %2829 = vmatprep.subr.mxu0 0.0
    %2830 = vmatpush1.msra.mxu0 %v2698
    %2831 = vmatprep.subr.mxu0 0.0
    %2832 = vmatpush1.msra.mxu0 %v2695
    %2833 = vmatprep.subr.mxu0 0.0
    %2834 = vmatpush1.msra.mxu0 %v2692
    %2835 = vmatprep.subr.mxu0 0.0
    %2836 = vmatpush1.msra.mxu0 %v2689
    %2837 = vmatprep.subr.mxu0 0.0
    %2838 = vmatpush1.msra.mxu0 %v2686
    %2839 = vmatprep.subr.mxu0 0.0
    %2840 = vmatpush1.msra.mxu0 %v2683
    %2841 = vmatprep.subr.mxu0 0.0
    %2842 = vmatpush1.msra.mxu0 %v2680
    %2843 = vmatprep.subr.mxu0 0.0
    %2844 = vmatpush1.msra.mxu0 %v2677
    %2845 = vmatprep.subr.mxu0 0.0
    %2846 = vmatpush2.msra.mxu0 0.0
    %2847 = vmatprep.subr.mxu0 0.0
    %2848 = vmatpush2.msra.mxu0 0.0
    %2849 = vmatprep.subr.mxu0 0.0
    %2850 = vmatpush2.msra.mxu0 0.0
    %2851 = vmatprep.subr.mxu0 0.0
    %2852 = vmatpush2.msra.mxu0 0.0
    %2853 = vmatprep.subr.mxu0 0.0
    %2854 = vmatpush2.msra.mxu0 0.0
    %2855 = vmatprep.subr.mxu0 0.0
    %2856 = vmatpush2.msra.mxu0 0.0
    %2857 = vmatprep.subr.mxu0 0.0
    %2858 = vmatpush2.msra.mxu0 0.0
    %2859 = vmatprep.subr.mxu0 0.0
    %2860 = vmatpush2.msra.mxu0 0.0
    %2861 = vmatprep.subr.mxu0 0.0
    %2862 = vmatpush2.msra.mxu0 0.0
    %2863 = vmatprep.subr.mxu0 0.0
    %2864 = vmatpush2.msra.mxu0 0.0
    %2865 = vmatprep.subr.mxu0 0.0
    %2866 = vmatpush2.msra.mxu0 0.0
    %2867 = vmatprep.subr.mxu0 0.0
    %2868 = vmatpush2.msra.mxu0 0.0
    %2869 = vmatprep.subr.mxu0 0.0
    %2870 = vmatpush2.msra.mxu0 0.0
    %2871 = vmatprep.subr.mxu0 0.0
    %2872 = vmatpush2.msra.mxu0 0.0
    %2873 = vmatprep.subr.mxu0 0.0
    %2874 = vmatpush2.msra.mxu0 0.0
    %2875 = vmatprep.subr.mxu0 0.0
    %2876 = vmatpush2.msra.mxu0 0.0
    %2877 = vmatprep.mubr.f32.mxu0 0.0
    %2878 = vmatmul.mubr.f32.gmra.mxu0 %v2740
    %v2879 = vpop.f32.mrf.mxu0
    %v2880 = vadd.f32 %v2736, %v2879
    %v2881 = vpop.f32.mrf.mxu0
    %2882 = vdwg.mxu0
    %v2884 = vrot.slane %v2809, 4
    %v2886 = vadd.f32 %v2672, %v2884
    %v2887 = vxor.u32 %v2886, 2147483648
    %v2888 = vmul.f32 %v2887, 1.442695
    %v2889 = vpow.pop %v2888
    %v2890 = vadd.f32 %v2889, 1.0
    %v2891 = vrcp.pop %v2890
    %v2892 = vmul.f32 1.0, %v2891
    %v2894 = vrot.slane %v2811, 4
    %v2896 = vadd.f32 %v2673, %v2894
    %v2897 = vxor.u32 %v2896, 2147483648
    %v2898 = vmul.f32 %v2897, 1.442695
    %v2899 = vpow.pop %v2898
    %v2900 = vadd.f32 %v2899, 1.0
    %v2901 = vrcp.pop %v2900
    %v2902 = vmul.f32 1.0, %v2901
    %v2904 = vrot.slane %v2880, 4
    %v2906 = vmul.f32 %v2892, %v2904
    %v2907 = vadd.f32 %v2674, %v2906
    %v2908 = vtanh.pop %v2907
    %v2909 = vsub.f32 1.0, %v2902
    %v2910 = vmul.f32 %v2909, %v2908
    %v2911 = vrot.slane %v2660, 6
    %v2913 = vmul.f32 %v2902, %v2911
    %v2914 = vadd.f32 %v2910, %v2913
    %v2916 = vcombine.high %v2914, %v2914
    %v2918 = vunpack.c.l.s4 1983009808
    %v2919 = vunpack.c.0.s8 %v2918
    %v2920 = vlaneseq
    %v2921 = vshrl.u32 %v2920, 7
    %v2922 = vsub.s32 %v2919, %v2921
    %v2923 = vrot.slane %v2916, %v2922
    %2925 = vst [vmem:[%s6 + $0x4] sm:$0x3] %v2923
    %v2926 = vld [vmem:[#allocation3] sm:$0xc0]
    %v2927 = vld [vmem:[#allocation3 + $0x8] sm:$0xc0]
    %v2928 = vld [vmem:[#allocation3 + $0x10] sm:$0xc0]
    %v2929 = vld [vmem:[%s2189] sm:$0xff]
    %v2930 = vld [vmem:[%s2189 + $0x8] sm:$0xff]
    %v2931 = vld [vmem:[%s2189 + $0x10] sm:$0xff]
    %v2932 = vld [vmem:[%s2189 + $0x18] sm:$0xff]
    %v2933 = vld [vmem:[%s2189 + $0x20] sm:$0xff]
    %v2934 = vld [vmem:[%s2189 + $0x28] sm:$0xff]
    %v2935 = vld [vmem:[%s2189 + $0x30] sm:$0xff]
    %v2936 = vld [vmem:[%s2189 + $0x38] sm:$0xff]
    %v2937 = vld [vmem:[%s2189 + $0x40] sm:$0xff]
    %v2938 = vld [vmem:[%s2189 + $0x48] sm:$0xff]
    %v2939 = vld [vmem:[%s2189 + $0x50] sm:$0xff]
    %v2940 = vld [vmem:[%s2189 + $0x58] sm:$0xff]
    %v2941 = vld [vmem:[%s2189 + $0x60] sm:$0xff]
    %v2942 = vld [vmem:[%s2189 + $0x68] sm:$0xff]
    %v2943 = vld [vmem:[%s2189 + $0x70] sm:$0xff]
    %v2944 = vld [vmem:[%s2189 + $0x78] sm:$0xff]
    %v2945 = vld [vmem:[%s2189 + $0x80] sm:$0xff]
    %v2946 = vld [vmem:[%s2189 + $0x88] sm:$0xff]
    %v2947 = vld [vmem:[%s2189 + $0x90] sm:$0xff]
    %v2948 = vld [vmem:[%s2189 + $0x98] sm:$0xff]
    %v2949 = vld [vmem:[%s2189 + $0xa0] sm:$0xff]
    %v2950 = vld [vmem:[%s2189 + $0xa8] sm:$0xff]
    %v2951 = vld [vmem:[%s2189 + $0xb0] sm:$0xff]
    %v2952 = vld [vmem:[%s2189 + $0xb8] sm:$0xff]
    %v2953 = vld [vmem:[%s2189 + $0xc0] sm:$0xff]
    %v2954 = vld [vmem:[%s2189 + $0xc8] sm:$0xff]
    %v2955 = vld [vmem:[%s2189 + $0xd0] sm:$0xff]
    %v2956 = vld [vmem:[%s2189 + $0xd8] sm:$0xff]
    %v2957 = vld [vmem:[%s2189 + $0xe0] sm:$0xff]
    %v2958 = vld [vmem:[%s2189 + $0xe8] sm:$0xff]
    %v2959 = vld [vmem:[%s2189 + $0xf0] sm:$0xff]
    %v2960 = vld [vmem:[%s2189 + $0xf8] sm:$0xff]
    %v2961 = vld [vmem:[%s2189 + $0x100] sm:$0xff]
    %v2962 = vld [vmem:[%s2189 + $0x108] sm:$0xff]
    %v2963 = vld [vmem:[%s2189 + $0x110] sm:$0xff]
    %v2964 = vld [vmem:[%s2189 + $0x118] sm:$0xff]
    %v2965 = vld [vmem:[%s2189 + $0x120] sm:$0xff]
    %v2966 = vld [vmem:[%s2189 + $0x128] sm:$0xff]
    %v2967 = vld [vmem:[%s2189 + $0x130] sm:$0xff]
    %v2968 = vld [vmem:[%s2189 + $0x138] sm:$0xff]
    %v2969 = vld [vmem:[%s2189 + $0x140] sm:$0xff]
    %v2970 = vld [vmem:[%s2189 + $0x148] sm:$0xff]
    %v2971 = vld [vmem:[%s2189 + $0x150] sm:$0xff]
    %v2972 = vld [vmem:[%s2189 + $0x158] sm:$0xff]
    %v2973 = vld [vmem:[%s2189 + $0x160] sm:$0xff]
    %v2974 = vld [vmem:[%s2189 + $0x168] sm:$0xff]
    %v2975 = vld [vmem:[%s2189 + $0x170] sm:$0xff]
    %v2976 = vld [vmem:[%s2189 + $0x178] sm:$0xff]
    %v2977 = vld [vmem:[%s2238] sm:$0x7]
    %v2979 = vlaneseq
    %v2980 = vshrl.u32 %v2979, 7
    %v2981 = vsub.s32 0, %v2980
    %v2982 = vrot.slane %v2977, %v2981
    %v2983 = vlaneseq
    %v2984 = vshrl.u32 %v2983, 7
    %v2985 = vsub.s32 1, %v2984
    %v2986 = vrot.slane %v2977, %v2985
    %v2987 = vlaneseq
    %v2988 = vshrl.u32 %v2987, 7
    %v2989 = vsub.s32 2, %v2988
    %v2990 = vrot.slane %v2977, %v2989
    %v2994 = vrot.slane %v2914, 4
    %2996 = vmatprep.subr.mxu0 %v2975
    %2997 = vmatpush1.msra.mxu0 %v2974
    %2998 = vmatprep.subr.mxu0 %v2972
    %2999 = vmatpush1.msra.mxu0 %v2971
    %3000 = vmatprep.subr.mxu0 %v2969
    %3001 = vmatpush1.msra.mxu0 %v2968
    %3002 = vmatprep.subr.mxu0 %v2966
    %3003 = vmatpush1.msra.mxu0 %v2965
    %3004 = vmatprep.subr.mxu0 %v2963
    %3005 = vmatpush1.msra.mxu0 %v2962
    %3006 = vmatprep.subr.mxu0 %v2960
    %3007 = vmatpush1.msra.mxu0 %v2959
    %3008 = vmatprep.subr.mxu0 %v2957
    %3009 = vmatpush1.msra.mxu0 %v2956
    %3010 = vmatprep.subr.mxu0 %v2954
    %3011 = vmatpush1.msra.mxu0 %v2953
    %3012 = vmatprep.subr.mxu0 %v2951
    %3013 = vmatpush1.msra.mxu0 %v2950
    %3014 = vmatprep.subr.mxu0 %v2948
    %3015 = vmatpush1.msra.mxu0 %v2947
    %3016 = vmatprep.subr.mxu0 %v2945
    %3017 = vmatpush1.msra.mxu0 %v2944
    %3018 = vmatprep.subr.mxu0 %v2942
    %3019 = vmatpush1.msra.mxu0 %v2941
    %3020 = vmatprep.subr.mxu0 %v2939
    %3021 = vmatpush1.msra.mxu0 %v2938
    %3022 = vmatprep.subr.mxu0 %v2936
    %3023 = vmatpush1.msra.mxu0 %v2935
    %3024 = vmatprep.subr.mxu0 %v2933
    %3025 = vmatpush1.msra.mxu0 %v2932
    %3026 = vmatprep.subr.mxu0 %v2930
    %3027 = vmatpush1.msra.mxu0 %v2929
    %3028 = vmatprep.subr.mxu0 0.0
    %3029 = vmatpush2.msra.mxu0 0.0
    %3030 = vmatprep.subr.mxu0 0.0
    %3031 = vmatpush2.msra.mxu0 0.0
    %3032 = vmatprep.subr.mxu0 0.0
    %3033 = vmatpush2.msra.mxu0 0.0
    %3034 = vmatprep.subr.mxu0 0.0
    %3035 = vmatpush2.msra.mxu0 0.0
    %3036 = vmatprep.subr.mxu0 0.0
    %3037 = vmatpush2.msra.mxu0 0.0
    %3038 = vmatprep.subr.mxu0 0.0
    %3039 = vmatpush2.msra.mxu0 0.0
    %3040 = vmatprep.subr.mxu0 0.0
    %3041 = vmatpush2.msra.mxu0 0.0
    %3042 = vmatprep.subr.mxu0 0.0
    %3043 = vmatpush2.msra.mxu0 0.0
    %3044 = vmatprep.subr.mxu0 0.0
    %3045 = vmatpush2.msra.mxu0 0.0
    %3046 = vmatprep.subr.mxu0 0.0
    %3047 = vmatpush2.msra.mxu0 0.0
    %3048 = vmatprep.subr.mxu0 0.0
    %3049 = vmatpush2.msra.mxu0 0.0
    %3050 = vmatprep.subr.mxu0 0.0
    %3051 = vmatpush2.msra.mxu0 0.0
    %3052 = vmatprep.subr.mxu0 0.0
    %3053 = vmatpush2.msra.mxu0 0.0
    %3054 = vmatprep.subr.mxu0 0.0
    %3055 = vmatpush2.msra.mxu0 0.0
    %3056 = vmatprep.subr.mxu0 0.0
    %3057 = vmatpush2.msra.mxu0 0.0
    %3058 = vmatprep.subr.mxu0 0.0
    %3059 = vmatpush2.msra.mxu0 0.0
    %3060 = vmatprep.mubr.f32.mxu0 0.0
    %3061 = vmatmul.mubr.f32.gmra.mxu0 %v2994
    %v3062 = vpop.f32.mrf.mxu0
    %v3063 = vadd.f32 %v2982, %v3062
    %v3064 = vpop.f32.mrf.mxu0
    %v3065 = vadd.f32 %v2986, %v3064
    %3066 = vdwg.mxu0
    %3067 = vmatprep.subr.mxu0 0.0
    %3068 = vmatpush1.msra.mxu0 %v2976
    %3069 = vmatprep.subr.mxu0 0.0
    %3070 = vmatpush1.msra.mxu0 %v2973
    %3071 = vmatprep.subr.mxu0 0.0
    %3072 = vmatpush1.msra.mxu0 %v2970
    %3073 = vmatprep.subr.mxu0 0.0
    %3074 = vmatpush1.msra.mxu0 %v2967
    %3075 = vmatprep.subr.mxu0 0.0
    %3076 = vmatpush1.msra.mxu0 %v2964
    %3077 = vmatprep.subr.mxu0 0.0
    %3078 = vmatpush1.msra.mxu0 %v2961
    %3079 = vmatprep.subr.mxu0 0.0
    %3080 = vmatpush1.msra.mxu0 %v2958
    %3081 = vmatprep.subr.mxu0 0.0
    %3082 = vmatpush1.msra.mxu0 %v2955
    %3083 = vmatprep.subr.mxu0 0.0
    %3084 = vmatpush1.msra.mxu0 %v2952
    %3085 = vmatprep.subr.mxu0 0.0
    %3086 = vmatpush1.msra.mxu0 %v2949
    %3087 = vmatprep.subr.mxu0 0.0
    %3088 = vmatpush1.msra.mxu0 %v2946
    %3089 = vmatprep.subr.mxu0 0.0
    %3090 = vmatpush1.msra.mxu0 %v2943
    %3091 = vmatprep.subr.mxu0 0.0
    %3092 = vmatpush1.msra.mxu0 %v2940
    %3093 = vmatprep.subr.mxu0 0.0
    %3094 = vmatpush1.msra.mxu0 %v2937
    %3095 = vmatprep.subr.mxu0 0.0
    %3096 = vmatpush1.msra.mxu0 %v2934
    %3097 = vmatprep.subr.mxu0 0.0
    %3098 = vmatpush1.msra.mxu0 %v2931
    %3099 = vmatprep.subr.mxu0 0.0
    %3100 = vmatpush2.msra.mxu0 0.0
    %3101 = vmatprep.subr.mxu0 0.0
    %3102 = vmatpush2.msra.mxu0 0.0
    %3103 = vmatprep.subr.mxu0 0.0
    %3104 = vmatpush2.msra.mxu0 0.0
    %3105 = vmatprep.subr.mxu0 0.0
    %3106 = vmatpush2.msra.mxu0 0.0
    %3107 = vmatprep.subr.mxu0 0.0
    %3108 = vmatpush2.msra.mxu0 0.0
    %3109 = vmatprep.subr.mxu0 0.0
    %3110 = vmatpush2.msra.mxu0 0.0
    %3111 = vmatprep.subr.mxu0 0.0
    %3112 = vmatpush2.msra.mxu0 0.0
    %3113 = vmatprep.subr.mxu0 0.0
    %3114 = vmatpush2.msra.mxu0 0.0
    %3115 = vmatprep.subr.mxu0 0.0
    %3116 = vmatpush2.msra.mxu0 0.0
    %3117 = vmatprep.subr.mxu0 0.0
    %3118 = vmatpush2.msra.mxu0 0.0
    %3119 = vmatprep.subr.mxu0 0.0
    %3120 = vmatpush2.msra.mxu0 0.0
    %3121 = vmatprep.subr.mxu0 0.0
    %3122 = vmatpush2.msra.mxu0 0.0
    %3123 = vmatprep.subr.mxu0 0.0
    %3124 = vmatpush2.msra.mxu0 0.0
    %3125 = vmatprep.subr.mxu0 0.0
    %3126 = vmatpush2.msra.mxu0 0.0
    %3127 = vmatprep.subr.mxu0 0.0
    %3128 = vmatpush2.msra.mxu0 0.0
    %3129 = vmatprep.subr.mxu0 0.0
    %3130 = vmatpush2.msra.mxu0 0.0
    %3131 = vmatprep.mubr.f32.mxu0 0.0
    %3132 = vmatmul.mubr.f32.gmra.mxu0 %v2994
    %v3133 = vpop.f32.mrf.mxu0
    %v3134 = vadd.f32 %v2990, %v3133
    %v3135 = vpop.f32.mrf.mxu0
    %3136 = vdwg.mxu0
    %v3138 = vrot.slane %v3063, 2
    %v3140 = vadd.f32 %v2926, %v3138
    %v3141 = vxor.u32 %v3140, 2147483648
    %v3142 = vmul.f32 %v3141, 1.442695
    %v3143 = vpow.pop %v3142
    %v3144 = vadd.f32 %v3143, 1.0
    %v3145 = vrcp.pop %v3144
    %v3146 = vmul.f32 1.0, %v3145
    %v3148 = vrot.slane %v3065, 2
    %v3150 = vadd.f32 %v2927, %v3148
    %v3151 = vxor.u32 %v3150, 2147483648
    %v3152 = vmul.f32 %v3151, 1.442695
    %v3153 = vpow.pop %v3152
    %v3154 = vadd.f32 %v3153, 1.0
    %v3155 = vrcp.pop %v3154
    %v3156 = vmul.f32 1.0, %v3155
    %v3158 = vrot.slane %v3134, 2
    %v3160 = vmul.f32 %v3146, %v3158
    %v3161 = vadd.f32 %v2928, %v3160
    %v3162 = vtanh.pop %v3161
    %v3163 = vsub.f32 1.0, %v3156
    %v3164 = vmul.f32 %v3163, %v3162
    %v3165 = vrot.slane %v2914, 6
    %v3167 = vmul.f32 %v3156, %v3165
    %v3168 = vadd.f32 %v3164, %v3167
    %v3170 = vcombine.high %v3168, %v3168
    %v3172 = vunpack.c.l.s4 1983009808
    %v3173 = vunpack.c.0.s8 %v3172
    %v3174 = vlaneseq
    %v3175 = vshrl.u32 %v3174, 7
    %v3176 = vsub.s32 %v3173, %v3175
    %v3177 = vrot.slane %v3170, %v3176
    %v3178 = vcombine.high %v3177, %v3177
    %3180 = vst [vmem:[%s6 + $0x6] sm:$0x3] %v3178
    %v3181 = vld [vmem:[#allocation3 + $0x18] sm:$0x3]
    %v3182 = vld [vmem:[#allocation3 + $0x20] sm:$0x3]
    %v3183 = vld [vmem:[#allocation3 + $0x28] sm:$0x3]
    %v3184 = vld [vmem:[%s2189] sm:$0xff]
    %v3185 = vld [vmem:[%s2189 + $0x8] sm:$0xff]
    %v3186 = vld [vmem:[%s2189 + $0x10] sm:$0xff]
    %v3187 = vld [vmem:[%s2189 + $0x18] sm:$0xff]
    %v3188 = vld [vmem:[%s2189 + $0x20] sm:$0xff]
    %v3189 = vld [vmem:[%s2189 + $0x28] sm:$0xff]
    %v3190 = vld [vmem:[%s2189 + $0x30] sm:$0xff]
    %v3191 = vld [vmem:[%s2189 + $0x38] sm:$0xff]
    %v3192 = vld [vmem:[%s2189 + $0x40] sm:$0xff]
    %v3193 = vld [vmem:[%s2189 + $0x48] sm:$0xff]
    %v3194 = vld [vmem:[%s2189 + $0x50] sm:$0xff]
    %v3195 = vld [vmem:[%s2189 + $0x58] sm:$0xff]
    %v3196 = vld [vmem:[%s2189 + $0x60] sm:$0xff]
    %v3197 = vld [vmem:[%s2189 + $0x68] sm:$0xff]
    %v3198 = vld [vmem:[%s2189 + $0x70] sm:$0xff]
    %v3199 = vld [vmem:[%s2189 + $0x78] sm:$0xff]
    %v3200 = vld [vmem:[%s2189 + $0x80] sm:$0xff]
    %v3201 = vld [vmem:[%s2189 + $0x88] sm:$0xff]
    %v3202 = vld [vmem:[%s2189 + $0x90] sm:$0xff]
    %v3203 = vld [vmem:[%s2189 + $0x98] sm:$0xff]
    %v3204 = vld [vmem:[%s2189 + $0xa0] sm:$0xff]
    %v3205 = vld [vmem:[%s2189 + $0xa8] sm:$0xff]
    %v3206 = vld [vmem:[%s2189 + $0xb0] sm:$0xff]
    %v3207 = vld [vmem:[%s2189 + $0xb8] sm:$0xff]
    %v3208 = vld [vmem:[%s2189 + $0xc0] sm:$0xff]
    %v3209 = vld [vmem:[%s2189 + $0xc8] sm:$0xff]
    %v3210 = vld [vmem:[%s2189 + $0xd0] sm:$0xff]
    %v3211 = vld [vmem:[%s2189 + $0xd8] sm:$0xff]
    %v3212 = vld [vmem:[%s2189 + $0xe0] sm:$0xff]
    %v3213 = vld [vmem:[%s2189 + $0xe8] sm:$0xff]
    %v3214 = vld [vmem:[%s2189 + $0xf0] sm:$0xff]
    %v3215 = vld [vmem:[%s2189 + $0xf8] sm:$0xff]
    %v3216 = vld [vmem:[%s2189 + $0x100] sm:$0xff]
    %v3217 = vld [vmem:[%s2189 + $0x108] sm:$0xff]
    %v3218 = vld [vmem:[%s2189 + $0x110] sm:$0xff]
    %v3219 = vld [vmem:[%s2189 + $0x118] sm:$0xff]
    %v3220 = vld [vmem:[%s2189 + $0x120] sm:$0xff]
    %v3221 = vld [vmem:[%s2189 + $0x128] sm:$0xff]
    %v3222 = vld [vmem:[%s2189 + $0x130] sm:$0xff]
    %v3223 = vld [vmem:[%s2189 + $0x138] sm:$0xff]
    %v3224 = vld [vmem:[%s2189 + $0x140] sm:$0xff]
    %v3225 = vld [vmem:[%s2189 + $0x148] sm:$0xff]
    %v3226 = vld [vmem:[%s2189 + $0x150] sm:$0xff]
    %v3227 = vld [vmem:[%s2189 + $0x158] sm:$0xff]
    %v3228 = vld [vmem:[%s2189 + $0x160] sm:$0xff]
    %v3229 = vld [vmem:[%s2189 + $0x168] sm:$0xff]
    %v3230 = vld [vmem:[%s2189 + $0x170] sm:$0xff]
    %v3231 = vld [vmem:[%s2189 + $0x178] sm:$0xff]
    %v3232 = vld [vmem:[%s2238] sm:$0x7]
    %v3234 = vlaneseq
    %v3235 = vshrl.u32 %v3234, 7
    %v3236 = vsub.s32 0, %v3235
    %v3237 = vrot.slane %v3232, %v3236
    %v3238 = vlaneseq
    %v3239 = vshrl.u32 %v3238, 7
    %v3240 = vsub.s32 1, %v3239
    %v3241 = vrot.slane %v3232, %v3240
    %v3242 = vlaneseq
    %v3243 = vshrl.u32 %v3242, 7
    %v3244 = vsub.s32 2, %v3243
    %v3245 = vrot.slane %v3232, %v3244
    %v3249 = vrot.slane %v3168, 6
    %3251 = vmatprep.subr.mxu0 %v3230
    %3252 = vmatpush1.msra.mxu0 %v3229
    %3253 = vmatprep.subr.mxu0 %v3227
    %3254 = vmatpush1.msra.mxu0 %v3226
    %3255 = vmatprep.subr.mxu0 %v3224
    %3256 = vmatpush1.msra.mxu0 %v3223
    %3257 = vmatprep.subr.mxu0 %v3221
    %3258 = vmatpush1.msra.mxu0 %v3220
    %3259 = vmatprep.subr.mxu0 %v3218
    %3260 = vmatpush1.msra.mxu0 %v3217
    %3261 = vmatprep.subr.mxu0 %v3215
    %3262 = vmatpush1.msra.mxu0 %v3214
    %3263 = vmatprep.subr.mxu0 %v3212
    %3264 = vmatpush1.msra.mxu0 %v3211
    %3265 = vmatprep.subr.mxu0 %v3209
    %3266 = vmatpush1.msra.mxu0 %v3208
    %3267 = vmatprep.subr.mxu0 %v3206
    %3268 = vmatpush1.msra.mxu0 %v3205
    %3269 = vmatprep.subr.mxu0 %v3203
    %3270 = vmatpush1.msra.mxu0 %v3202
    %3271 = vmatprep.subr.mxu0 %v3200
    %3272 = vmatpush1.msra.mxu0 %v3199
    %3273 = vmatprep.subr.mxu0 %v3197
    %3274 = vmatpush1.msra.mxu0 %v3196
    %3275 = vmatprep.subr.mxu0 %v3194
    %3276 = vmatpush1.msra.mxu0 %v3193
    %3277 = vmatprep.subr.mxu0 %v3191
    %3278 = vmatpush1.msra.mxu0 %v3190
    %3279 = vmatprep.subr.mxu0 %v3188
    %3280 = vmatpush1.msra.mxu0 %v3187
    %3281 = vmatprep.subr.mxu0 %v3185
    %3282 = vmatpush1.msra.mxu0 %v3184
    %3283 = vmatprep.subr.mxu0 0.0
    %3284 = vmatpush2.msra.mxu0 0.0
    %3285 = vmatprep.subr.mxu0 0.0
    %3286 = vmatpush2.msra.mxu0 0.0
    %3287 = vmatprep.subr.mxu0 0.0
    %3288 = vmatpush2.msra.mxu0 0.0
    %3289 = vmatprep.subr.mxu0 0.0
    %3290 = vmatpush2.msra.mxu0 0.0
    %3291 = vmatprep.subr.mxu0 0.0
    %3292 = vmatpush2.msra.mxu0 0.0
    %3293 = vmatprep.subr.mxu0 0.0
    %3294 = vmatpush2.msra.mxu0 0.0
    %3295 = vmatprep.subr.mxu0 0.0
    %3296 = vmatpush2.msra.mxu0 0.0
    %3297 = vmatprep.subr.mxu0 0.0
    %3298 = vmatpush2.msra.mxu0 0.0
    %3299 = vmatprep.subr.mxu0 0.0
    %3300 = vmatpush2.msra.mxu0 0.0
    %3301 = vmatprep.subr.mxu0 0.0
    %3302 = vmatpush2.msra.mxu0 0.0
    %3303 = vmatprep.subr.mxu0 0.0
    %3304 = vmatpush2.msra.mxu0 0.0
    %3305 = vmatprep.subr.mxu0 0.0
    %3306 = vmatpush2.msra.mxu0 0.0
    %3307 = vmatprep.subr.mxu0 0.0
    %3308 = vmatpush2.msra.mxu0 0.0
    %3309 = vmatprep.subr.mxu0 0.0
    %3310 = vmatpush2.msra.mxu0 0.0
    %3311 = vmatprep.subr.mxu0 0.0
    %3312 = vmatpush2.msra.mxu0 0.0
    %3313 = vmatprep.subr.mxu0 0.0
    %3314 = vmatpush2.msra.mxu0 0.0
    %3315 = vmatprep.mubr.f32.mxu0 0.0
    %3316 = vmatmul.mubr.f32.gmra.mxu0 %v3249
    %v3317 = vpop.f32.mrf.mxu0
    %v3318 = vadd.f32 %v3237, %v3317
    %v3319 = vpop.f32.mrf.mxu0
    %v3320 = vadd.f32 %v3241, %v3319
    %3321 = vdwg.mxu0
    %3322 = vmatprep.subr.mxu0 0.0
    %3323 = vmatpush1.msra.mxu0 %v3231
    %3324 = vmatprep.subr.mxu0 0.0
    %3325 = vmatpush1.msra.mxu0 %v3228
    %3326 = vmatprep.subr.mxu0 0.0
    %3327 = vmatpush1.msra.mxu0 %v3225
    %3328 = vmatprep.subr.mxu0 0.0
    %3329 = vmatpush1.msra.mxu0 %v3222
    %3330 = vmatprep.subr.mxu0 0.0
    %3331 = vmatpush1.msra.mxu0 %v3219
    %3332 = vmatprep.subr.mxu0 0.0
    %3333 = vmatpush1.msra.mxu0 %v3216
    %3334 = vmatprep.subr.mxu0 0.0
    %3335 = vmatpush1.msra.mxu0 %v3213
    %3336 = vmatprep.subr.mxu0 0.0
    %3337 = vmatpush1.msra.mxu0 %v3210
    %3338 = vmatprep.subr.mxu0 0.0
    %3339 = vmatpush1.msra.mxu0 %v3207
    %3340 = vmatprep.subr.mxu0 0.0
    %3341 = vmatpush1.msra.mxu0 %v3204
    %3342 = vmatprep.subr.mxu0 0.0
    %3343 = vmatpush1.msra.mxu0 %v3201
    %3344 = vmatprep.subr.mxu0 0.0
    %3345 = vmatpush1.msra.mxu0 %v3198
    %3346 = vmatprep.subr.mxu0 0.0
    %3347 = vmatpush1.msra.mxu0 %v3195
    %3348 = vmatprep.subr.mxu0 0.0
    %3349 = vmatpush1.msra.mxu0 %v3192
    %3350 = vmatprep.subr.mxu0 0.0
    %3351 = vmatpush1.msra.mxu0 %v3189
    %3352 = vmatprep.subr.mxu0 0.0
    %3353 = vmatpush1.msra.mxu0 %v3186
    %3354 = vmatprep.subr.mxu0 0.0
    %3355 = vmatpush2.msra.mxu0 0.0
    %3356 = vmatprep.subr.mxu0 0.0
    %3357 = vmatpush2.msra.mxu0 0.0
    %3358 = vmatprep.subr.mxu0 0.0
    %3359 = vmatpush2.msra.mxu0 0.0
    %3360 = vmatprep.subr.mxu0 0.0
    %3361 = vmatpush2.msra.mxu0 0.0
    %3362 = vmatprep.subr.mxu0 0.0
    %3363 = vmatpush2.msra.mxu0 0.0
    %3364 = vmatprep.subr.mxu0 0.0
    %3365 = vmatpush2.msra.mxu0 0.0
    %3366 = vmatprep.subr.mxu0 0.0
    %3367 = vmatpush2.msra.mxu0 0.0
    %3368 = vmatprep.subr.mxu0 0.0
    %3369 = vmatpush2.msra.mxu0 0.0
    %3370 = vmatprep.subr.mxu0 0.0
    %3371 = vmatpush2.msra.mxu0 0.0
    %3372 = vmatprep.subr.mxu0 0.0
    %3373 = vmatpush2.msra.mxu0 0.0
    %3374 = vmatprep.subr.mxu0 0.0
    %3375 = vmatpush2.msra.mxu0 0.0
    %3376 = vmatprep.subr.mxu0 0.0
    %3377 = vmatpush2.msra.mxu0 0.0
    %3378 = vmatprep.subr.mxu0 0.0
    %3379 = vmatpush2.msra.mxu0 0.0
    %3380 = vmatprep.subr.mxu0 0.0
    %3381 = vmatpush2.msra.mxu0 0.0
    %3382 = vmatprep.subr.mxu0 0.0
    %3383 = vmatpush2.msra.mxu0 0.0
    %3384 = vmatprep.subr.mxu0 0.0
    %3385 = vmatpush2.msra.mxu0 0.0
    %3386 = vmatprep.mubr.f32.mxu0 0.0
    %3387 = vmatmul.mubr.f32.gmra.mxu0 %v3249
    %v3388 = vpop.f32.mrf.mxu0
    %v3389 = vadd.f32 %v3245, %v3388
    %v3390 = vpop.f32.mrf.mxu0
    %3391 = vdwg.mxu0
    %v3392 = vadd.f32 %v3181, %v3318
    %v3393 = vxor.u32 %v3392, 2147483648
    %v3394 = vmul.f32 %v3393, 1.442695
    %v3395 = vpow.pop %v3394
    %v3396 = vadd.f32 %v3395, 1.0
    %v3397 = vrcp.pop %v3396
    %v3398 = vmul.f32 1.0, %v3397
    %v3399 = vadd.f32 %v3182, %v3320
    %v3400 = vxor.u32 %v3399, 2147483648
    %v3401 = vmul.f32 %v3400, 1.442695
    %v3402 = vpow.pop %v3401
    %v3403 = vadd.f32 %v3402, 1.0
    %v3404 = vrcp.pop %v3403
    %v3405 = vmul.f32 1.0, %v3404
    %v3406 = vmul.f32 %v3398, %v3389
    %v3407 = vadd.f32 %v3183, %v3406
    %v3408 = vtanh.pop %v3407
    %v3409 = vsub.f32 1.0, %v3405
    %v3410 = vmul.f32 %v3409, %v3408
    %v3411 = vmul.f32 %v3405, %v3249
    %v3412 = vadd.f32 %v3410, %v3411
    %3413 = vst [vmem:[%s6 + $0x8] sm:$0x3] %v3412
    %v3414 = vld [vmem:[#allocation3 + $0x18] sm:$0xc]
    %v3415 = vld [vmem:[#allocation3 + $0x20] sm:$0xc]
    %v3416 = vld [vmem:[#allocation3 + $0x28] sm:$0xc]
    %v3417 = vld [vmem:[%s2189] sm:$0xff]
    %v3418 = vld [vmem:[%s2189 + $0x8] sm:$0xff]
    %v3419 = vld [vmem:[%s2189 + $0x10] sm:$0xff]
    %v3420 = vld [vmem:[%s2189 + $0x18] sm:$0xff]
    %v3421 = vld [vmem:[%s2189 + $0x20] sm:$0xff]
    %v3422 = vld [vmem:[%s2189 + $0x28] sm:$0xff]
    %v3423 = vld [vmem:[%s2189 + $0x30] sm:$0xff]
    %v3424 = vld [vmem:[%s2189 + $0x38] sm:$0xff]
    %v3425 = vld [vmem:[%s2189 + $0x40] sm:$0xff]
    %v3426 = vld [vmem:[%s2189 + $0x48] sm:$0xff]
    %v3427 = vld [vmem:[%s2189 + $0x50] sm:$0xff]
    %v3428 = vld [vmem:[%s2189 + $0x58] sm:$0xff]
    %v3429 = vld [vmem:[%s2189 + $0x60] sm:$0xff]
    %v3430 = vld [vmem:[%s2189 + $0x68] sm:$0xff]
    %v3431 = vld [vmem:[%s2189 + $0x70] sm:$0xff]
    %v3432 = vld [vmem:[%s2189 + $0x78] sm:$0xff]
    %v3433 = vld [vmem:[%s2189 + $0x80] sm:$0xff]
    %v3434 = vld [vmem:[%s2189 + $0x88] sm:$0xff]
    %v3435 = vld [vmem:[%s2189 + $0x90] sm:$0xff]
    %v3436 = vld [vmem:[%s2189 + $0x98] sm:$0xff]
    %v3437 = vld [vmem:[%s2189 + $0xa0] sm:$0xff]
    %v3438 = vld [vmem:[%s2189 + $0xa8] sm:$0xff]
    %v3439 = vld [vmem:[%s2189 + $0xb0] sm:$0xff]
    %v3440 = vld [vmem:[%s2189 + $0xb8] sm:$0xff]
    %v3441 = vld [vmem:[%s2189 + $0xc0] sm:$0xff]
    %v3442 = vld [vmem:[%s2189 + $0xc8] sm:$0xff]
    %v3443 = vld [vmem:[%s2189 + $0xd0] sm:$0xff]
    %v3444 = vld [vmem:[%s2189 + $0xd8] sm:$0xff]
    %v3445 = vld [vmem:[%s2189 + $0xe0] sm:$0xff]
    %v3446 = vld [vmem:[%s2189 + $0xe8] sm:$0xff]
    %v3447 = vld [vmem:[%s2189 + $0xf0] sm:$0xff]
    %v3448 = vld [vmem:[%s2189 + $0xf8] sm:$0xff]
    %v3449 = vld [vmem:[%s2189 + $0x100] sm:$0xff]
    %v3450 = vld [vmem:[%s2189 + $0x108] sm:$0xff]
    %v3451 = vld [vmem:[%s2189 + $0x110] sm:$0xff]
    %v3452 = vld [vmem:[%s2189 + $0x118] sm:$0xff]
    %v3453 = vld [vmem:[%s2189 + $0x120] sm:$0xff]
    %v3454 = vld [vmem:[%s2189 + $0x128] sm:$0xff]
    %v3455 = vld [vmem:[%s2189 + $0x130] sm:$0xff]
    %v3456 = vld [vmem:[%s2189 + $0x138] sm:$0xff]
    %v3457 = vld [vmem:[%s2189 + $0x140] sm:$0xff]
    %v3458 = vld [vmem:[%s2189 + $0x148] sm:$0xff]
    %v3459 = vld [vmem:[%s2189 + $0x150] sm:$0xff]
    %v3460 = vld [vmem:[%s2189 + $0x158] sm:$0xff]
    %v3461 = vld [vmem:[%s2189 + $0x160] sm:$0xff]
    %v3462 = vld [vmem:[%s2189 + $0x168] sm:$0xff]
    %v3463 = vld [vmem:[%s2189 + $0x170] sm:$0xff]
    %v3464 = vld [vmem:[%s2189 + $0x178] sm:$0xff]
    %v3465 = vld [vmem:[%s2238] sm:$0x7]
    %v3467 = vlaneseq
    %v3468 = vshrl.u32 %v3467, 7
    %v3469 = vsub.s32 0, %v3468
    %v3470 = vrot.slane %v3465, %v3469
    %v3471 = vlaneseq
    %v3472 = vshrl.u32 %v3471, 7
    %v3473 = vsub.s32 1, %v3472
    %v3474 = vrot.slane %v3465, %v3473
    %v3475 = vlaneseq
    %v3476 = vshrl.u32 %v3475, 7
    %v3477 = vsub.s32 2, %v3476
    %v3478 = vrot.slane %v3465, %v3477
    %3482 = vmatprep.subr.mxu0 %v3463
    %3483 = vmatpush1.msra.mxu0 %v3462
    %3484 = vmatprep.subr.mxu0 %v3460
    %3485 = vmatpush1.msra.mxu0 %v3459
    %3486 = vmatprep.subr.mxu0 %v3457
    %3487 = vmatpush1.msra.mxu0 %v3456
    %3488 = vmatprep.subr.mxu0 %v3454
    %3489 = vmatpush1.msra.mxu0 %v3453
    %3490 = vmatprep.subr.mxu0 %v3451
    %3491 = vmatpush1.msra.mxu0 %v3450
    %3492 = vmatprep.subr.mxu0 %v3448
    %3493 = vmatpush1.msra.mxu0 %v3447
    %3494 = vmatprep.subr.mxu0 %v3445
    %3495 = vmatpush1.msra.mxu0 %v3444
    %3496 = vmatprep.subr.mxu0 %v3442
    %3497 = vmatpush1.msra.mxu0 %v3441
    %3498 = vmatprep.subr.mxu0 %v3439
    %3499 = vmatpush1.msra.mxu0 %v3438
    %3500 = vmatprep.subr.mxu0 %v3436
    %3501 = vmatpush1.msra.mxu0 %v3435
    %3502 = vmatprep.subr.mxu0 %v3433
    %3503 = vmatpush1.msra.mxu0 %v3432
    %3504 = vmatprep.subr.mxu0 %v3430
    %3505 = vmatpush1.msra.mxu0 %v3429
    %3506 = vmatprep.subr.mxu0 %v3427
    %3507 = vmatpush1.msra.mxu0 %v3426
    %3508 = vmatprep.subr.mxu0 %v3424
    %3509 = vmatpush1.msra.mxu0 %v3423
    %3510 = vmatprep.subr.mxu0 %v3421
    %3511 = vmatpush1.msra.mxu0 %v3420
    %3512 = vmatprep.subr.mxu0 %v3418
    %3513 = vmatpush1.msra.mxu0 %v3417
    %3514 = vmatprep.subr.mxu0 0.0
    %3515 = vmatpush2.msra.mxu0 0.0
    %3516 = vmatprep.subr.mxu0 0.0
    %3517 = vmatpush2.msra.mxu0 0.0
    %3518 = vmatprep.subr.mxu0 0.0
    %3519 = vmatpush2.msra.mxu0 0.0
    %3520 = vmatprep.subr.mxu0 0.0
    %3521 = vmatpush2.msra.mxu0 0.0
    %3522 = vmatprep.subr.mxu0 0.0
    %3523 = vmatpush2.msra.mxu0 0.0
    %3524 = vmatprep.subr.mxu0 0.0
    %3525 = vmatpush2.msra.mxu0 0.0
    %3526 = vmatprep.subr.mxu0 0.0
    %3527 = vmatpush2.msra.mxu0 0.0
    %3528 = vmatprep.subr.mxu0 0.0
    %3529 = vmatpush2.msra.mxu0 0.0
    %3530 = vmatprep.subr.mxu0 0.0
    %3531 = vmatpush2.msra.mxu0 0.0
    %3532 = vmatprep.subr.mxu0 0.0
    %3533 = vmatpush2.msra.mxu0 0.0
    %3534 = vmatprep.subr.mxu0 0.0
    %3535 = vmatpush2.msra.mxu0 0.0
    %3536 = vmatprep.subr.mxu0 0.0
    %3537 = vmatpush2.msra.mxu0 0.0
    %3538 = vmatprep.subr.mxu0 0.0
    %3539 = vmatpush2.msra.mxu0 0.0
    %3540 = vmatprep.subr.mxu0 0.0
    %3541 = vmatpush2.msra.mxu0 0.0
    %3542 = vmatprep.subr.mxu0 0.0
    %3543 = vmatpush2.msra.mxu0 0.0
    %3544 = vmatprep.subr.mxu0 0.0
    %3545 = vmatpush2.msra.mxu0 0.0
    %3546 = vmatprep.mubr.f32.mxu0 0.0
    %3547 = vmatmul.mubr.f32.gmra.mxu0 %v3412
    %v3548 = vpop.f32.mrf.mxu0
    %v3549 = vadd.f32 %v3470, %v3548
    %v3550 = vpop.f32.mrf.mxu0
    %v3551 = vadd.f32 %v3474, %v3550
    %3552 = vdwg.mxu0
    %3553 = vmatprep.subr.mxu0 0.0
    %3554 = vmatpush1.msra.mxu0 %v3464
    %3555 = vmatprep.subr.mxu0 0.0
    %3556 = vmatpush1.msra.mxu0 %v3461
    %3557 = vmatprep.subr.mxu0 0.0
    %3558 = vmatpush1.msra.mxu0 %v3458
    %3559 = vmatprep.subr.mxu0 0.0
    %3560 = vmatpush1.msra.mxu0 %v3455
    %3561 = vmatprep.subr.mxu0 0.0
    %3562 = vmatpush1.msra.mxu0 %v3452
    %3563 = vmatprep.subr.mxu0 0.0
    %3564 = vmatpush1.msra.mxu0 %v3449
    %3565 = vmatprep.subr.mxu0 0.0
    %3566 = vmatpush1.msra.mxu0 %v3446
    %3567 = vmatprep.subr.mxu0 0.0
    %3568 = vmatpush1.msra.mxu0 %v3443
    %3569 = vmatprep.subr.mxu0 0.0
    %3570 = vmatpush1.msra.mxu0 %v3440
    %3571 = vmatprep.subr.mxu0 0.0
    %3572 = vmatpush1.msra.mxu0 %v3437
    %3573 = vmatprep.subr.mxu0 0.0
    %3574 = vmatpush1.msra.mxu0 %v3434
    %3575 = vmatprep.subr.mxu0 0.0
    %3576 = vmatpush1.msra.mxu0 %v3431
    %3577 = vmatprep.subr.mxu0 0.0
    %3578 = vmatpush1.msra.mxu0 %v3428
    %3579 = vmatprep.subr.mxu0 0.0
    %3580 = vmatpush1.msra.mxu0 %v3425
    %3581 = vmatprep.subr.mxu0 0.0
    %3582 = vmatpush1.msra.mxu0 %v3422
    %3583 = vmatprep.subr.mxu0 0.0
    %3584 = vmatpush1.msra.mxu0 %v3419
    %3585 = vmatprep.subr.mxu0 0.0
    %3586 = vmatpush2.msra.mxu0 0.0
    %3587 = vmatprep.subr.mxu0 0.0
    %3588 = vmatpush2.msra.mxu0 0.0
    %3589 = vmatprep.subr.mxu0 0.0
    %3590 = vmatpush2.msra.mxu0 0.0
    %3591 = vmatprep.subr.mxu0 0.0
    %3592 = vmatpush2.msra.mxu0 0.0
    %3593 = vmatprep.subr.mxu0 0.0
    %3594 = vmatpush2.msra.mxu0 0.0
    %3595 = vmatprep.subr.mxu0 0.0
    %3596 = vmatpush2.msra.mxu0 0.0
    %3597 = vmatprep.subr.mxu0 0.0
    %3598 = vmatpush2.msra.mxu0 0.0
    %3599 = vmatprep.subr.mxu0 0.0
    %3600 = vmatpush2.msra.mxu0 0.0
    %3601 = vmatprep.subr.mxu0 0.0
    %3602 = vmatpush2.msra.mxu0 0.0
    %3603 = vmatprep.subr.mxu0 0.0
    %3604 = vmatpush2.msra.mxu0 0.0
    %3605 = vmatprep.subr.mxu0 0.0
    %3606 = vmatpush2.msra.mxu0 0.0
    %3607 = vmatprep.subr.mxu0 0.0
    %3608 = vmatpush2.msra.mxu0 0.0
    %3609 = vmatprep.subr.mxu0 0.0
    %3610 = vmatpush2.msra.mxu0 0.0
    %3611 = vmatprep.subr.mxu0 0.0
    %3612 = vmatpush2.msra.mxu0 0.0
    %3613 = vmatprep.subr.mxu0 0.0
    %3614 = vmatpush2.msra.mxu0 0.0
    %3615 = vmatprep.subr.mxu0 0.0
    %3616 = vmatpush2.msra.mxu0 0.0
    %3617 = vmatprep.mubr.f32.mxu0 0.0
    %3618 = vmatmul.mubr.f32.gmra.mxu0 %v3412
    %v3619 = vpop.f32.mrf.mxu0
    %v3620 = vadd.f32 %v3478, %v3619
    %v3621 = vpop.f32.mrf.mxu0
    %3622 = vdwg.mxu0
    %v3624 = vrot.slane %v3549, 6
    %v3626 = vadd.f32 %v3414, %v3624
    %v3627 = vxor.u32 %v3626, 2147483648
    %v3628 = vmul.f32 %v3627, 1.442695
    %v3629 = vpow.pop %v3628
    %v3630 = vadd.f32 %v3629, 1.0
    %v3631 = vrcp.pop %v3630
    %v3632 = vmul.f32 1.0, %v3631
    %v3634 = vrot.slane %v3551, 6
    %v3636 = vadd.f32 %v3415, %v3634
    %v3637 = vxor.u32 %v3636, 2147483648
    %v3638 = vmul.f32 %v3637, 1.442695
    %v3639 = vpow.pop %v3638
    %v3640 = vadd.f32 %v3639, 1.0
    %v3641 = vrcp.pop %v3640
    %v3642 = vmul.f32 1.0, %v3641
    %v3644 = vrot.slane %v3620, 6
    %v3646 = vmul.f32 %v3632, %v3644
    %v3647 = vadd.f32 %v3416, %v3646
    %v3648 = vtanh.pop %v3647
    %v3649 = vsub.f32 1.0, %v3642
    %v3650 = vmul.f32 %v3649, %v3648
    %v3652 = vrot.slane %v3412, 6
    %v3654 = vmul.f32 %v3642, %v3652
    %v3655 = vadd.f32 %v3650, %v3654
    %v3658 = vunpack.c.l.s4 1983009808
    %v3659 = vunpack.c.0.s8 %v3658
    %v3660 = vlaneseq
    %v3661 = vshrl.u32 %v3660, 7
    %v3662 = vsub.s32 %v3659, %v3661
    %v3663 = vrot.slane %v3655, %v3662
    %v3664 = vcombine.high %v3663, %v3663
    %3666 = vst [vmem:[%s6 + $0xa] sm:$0x3] %v3664
    %v3667 = vld [vmem:[#allocation3 + $0x18] sm:$0x30]
    %v3668 = vld [vmem:[#allocation3 + $0x20] sm:$0x30]
    %v3669 = vld [vmem:[#allocation3 + $0x28] sm:$0x30]
    %v3670 = vld [vmem:[%s2189] sm:$0xff]
    %v3671 = vld [vmem:[%s2189 + $0x8] sm:$0xff]
    %v3672 = vld [vmem:[%s2189 + $0x10] sm:$0xff]
    %v3673 = vld [vmem:[%s2189 + $0x18] sm:$0xff]
    %v3674 = vld [vmem:[%s2189 + $0x20] sm:$0xff]
    %v3675 = vld [vmem:[%s2189 + $0x28] sm:$0xff]
    %v3676 = vld [vmem:[%s2189 + $0x30] sm:$0xff]
    %v3677 = vld [vmem:[%s2189 + $0x38] sm:$0xff]
    %v3678 = vld [vmem:[%s2189 + $0x40] sm:$0xff]
    %v3679 = vld [vmem:[%s2189 + $0x48] sm:$0xff]
    %v3680 = vld [vmem:[%s2189 + $0x50] sm:$0xff]
    %v3681 = vld [vmem:[%s2189 + $0x58] sm:$0xff]
    %v3682 = vld [vmem:[%s2189 + $0x60] sm:$0xff]
    %v3683 = vld [vmem:[%s2189 + $0x68] sm:$0xff]
    %v3684 = vld [vmem:[%s2189 + $0x70] sm:$0xff]
    %v3685 = vld [vmem:[%s2189 + $0x78] sm:$0xff]
    %v3686 = vld [vmem:[%s2189 + $0x80] sm:$0xff]
    %v3687 = vld [vmem:[%s2189 + $0x88] sm:$0xff]
    %v3688 = vld [vmem:[%s2189 + $0x90] sm:$0xff]
    %v3689 = vld [vmem:[%s2189 + $0x98] sm:$0xff]
    %v3690 = vld [vmem:[%s2189 + $0xa0] sm:$0xff]
    %v3691 = vld [vmem:[%s2189 + $0xa8] sm:$0xff]
    %v3692 = vld [vmem:[%s2189 + $0xb0] sm:$0xff]
    %v3693 = vld [vmem:[%s2189 + $0xb8] sm:$0xff]
    %v3694 = vld [vmem:[%s2189 + $0xc0] sm:$0xff]
    %v3695 = vld [vmem:[%s2189 + $0xc8] sm:$0xff]
    %v3696 = vld [vmem:[%s2189 + $0xd0] sm:$0xff]
    %v3697 = vld [vmem:[%s2189 + $0xd8] sm:$0xff]
    %v3698 = vld [vmem:[%s2189 + $0xe0] sm:$0xff]
    %v3699 = vld [vmem:[%s2189 + $0xe8] sm:$0xff]
    %v3700 = vld [vmem:[%s2189 + $0xf0] sm:$0xff]
    %v3701 = vld [vmem:[%s2189 + $0xf8] sm:$0xff]
    %v3702 = vld [vmem:[%s2189 + $0x100] sm:$0xff]
    %v3703 = vld [vmem:[%s2189 + $0x108] sm:$0xff]
    %v3704 = vld [vmem:[%s2189 + $0x110] sm:$0xff]
    %v3705 = vld [vmem:[%s2189 + $0x118] sm:$0xff]
    %v3706 = vld [vmem:[%s2189 + $0x120] sm:$0xff]
    %v3707 = vld [vmem:[%s2189 + $0x128] sm:$0xff]
    %v3708 = vld [vmem:[%s2189 + $0x130] sm:$0xff]
    %v3709 = vld [vmem:[%s2189 + $0x138] sm:$0xff]
    %v3710 = vld [vmem:[%s2189 + $0x140] sm:$0xff]
    %v3711 = vld [vmem:[%s2189 + $0x148] sm:$0xff]
    %v3712 = vld [vmem:[%s2189 + $0x150] sm:$0xff]
    %v3713 = vld [vmem:[%s2189 + $0x158] sm:$0xff]
    %v3714 = vld [vmem:[%s2189 + $0x160] sm:$0xff]
    %v3715 = vld [vmem:[%s2189 + $0x168] sm:$0xff]
    %v3716 = vld [vmem:[%s2189 + $0x170] sm:$0xff]
    %v3717 = vld [vmem:[%s2189 + $0x178] sm:$0xff]
    %v3718 = vld [vmem:[%s2238] sm:$0x7]
    %v3720 = vlaneseq
    %v3721 = vshrl.u32 %v3720, 7
    %v3722 = vsub.s32 0, %v3721
    %v3723 = vrot.slane %v3718, %v3722
    %v3724 = vlaneseq
    %v3725 = vshrl.u32 %v3724, 7
    %v3726 = vsub.s32 1, %v3725
    %v3727 = vrot.slane %v3718, %v3726
    %v3728 = vlaneseq
    %v3729 = vshrl.u32 %v3728, 7
    %v3730 = vsub.s32 2, %v3729
    %v3731 = vrot.slane %v3718, %v3730
    %v3735 = vrot.slane %v3655, 2
    %3737 = vmatprep.subr.mxu0 %v3716
    %3738 = vmatpush1.msra.mxu0 %v3715
    %3739 = vmatprep.subr.mxu0 %v3713
    %3740 = vmatpush1.msra.mxu0 %v3712
    %3741 = vmatprep.subr.mxu0 %v3710
    %3742 = vmatpush1.msra.mxu0 %v3709
    %3743 = vmatprep.subr.mxu0 %v3707
    %3744 = vmatpush1.msra.mxu0 %v3706
    %3745 = vmatprep.subr.mxu0 %v3704
    %3746 = vmatpush1.msra.mxu0 %v3703
    %3747 = vmatprep.subr.mxu0 %v3701
    %3748 = vmatpush1.msra.mxu0 %v3700
    %3749 = vmatprep.subr.mxu0 %v3698
    %3750 = vmatpush1.msra.mxu0 %v3697
    %3751 = vmatprep.subr.mxu0 %v3695
    %3752 = vmatpush1.msra.mxu0 %v3694
    %3753 = vmatprep.subr.mxu0 %v3692
    %3754 = vmatpush1.msra.mxu0 %v3691
    %3755 = vmatprep.subr.mxu0 %v3689
    %3756 = vmatpush1.msra.mxu0 %v3688
    %3757 = vmatprep.subr.mxu0 %v3686
    %3758 = vmatpush1.msra.mxu0 %v3685
    %3759 = vmatprep.subr.mxu0 %v3683
    %3760 = vmatpush1.msra.mxu0 %v3682
    %3761 = vmatprep.subr.mxu0 %v3680
    %3762 = vmatpush1.msra.mxu0 %v3679
    %3763 = vmatprep.subr.mxu0 %v3677
    %3764 = vmatpush1.msra.mxu0 %v3676
    %3765 = vmatprep.subr.mxu0 %v3674
    %3766 = vmatpush1.msra.mxu0 %v3673
    %3767 = vmatprep.subr.mxu0 %v3671
    %3768 = vmatpush1.msra.mxu0 %v3670
    %3769 = vmatprep.subr.mxu0 0.0
    %3770 = vmatpush2.msra.mxu0 0.0
    %3771 = vmatprep.subr.mxu0 0.0
    %3772 = vmatpush2.msra.mxu0 0.0
    %3773 = vmatprep.subr.mxu0 0.0
    %3774 = vmatpush2.msra.mxu0 0.0
    %3775 = vmatprep.subr.mxu0 0.0
    %3776 = vmatpush2.msra.mxu0 0.0
    %3777 = vmatprep.subr.mxu0 0.0
    %3778 = vmatpush2.msra.mxu0 0.0
    %3779 = vmatprep.subr.mxu0 0.0
    %3780 = vmatpush2.msra.mxu0 0.0
    %3781 = vmatprep.subr.mxu0 0.0
    %3782 = vmatpush2.msra.mxu0 0.0
    %3783 = vmatprep.subr.mxu0 0.0
    %3784 = vmatpush2.msra.mxu0 0.0
    %3785 = vmatprep.subr.mxu0 0.0
    %3786 = vmatpush2.msra.mxu0 0.0
    %3787 = vmatprep.subr.mxu0 0.0
    %3788 = vmatpush2.msra.mxu0 0.0
    %3789 = vmatprep.subr.mxu0 0.0
    %3790 = vmatpush2.msra.mxu0 0.0
    %3791 = vmatprep.subr.mxu0 0.0
    %3792 = vmatpush2.msra.mxu0 0.0
    %3793 = vmatprep.subr.mxu0 0.0
    %3794 = vmatpush2.msra.mxu0 0.0
    %3795 = vmatprep.subr.mxu0 0.0
    %3796 = vmatpush2.msra.mxu0 0.0
    %3797 = vmatprep.subr.mxu0 0.0
    %3798 = vmatpush2.msra.mxu0 0.0
    %3799 = vmatprep.subr.mxu0 0.0
    %3800 = vmatpush2.msra.mxu0 0.0
    %3801 = vmatprep.mubr.f32.mxu0 0.0
    %3802 = vmatmul.mubr.f32.gmra.mxu0 %v3735
    %v3803 = vpop.f32.mrf.mxu0
    %v3804 = vadd.f32 %v3723, %v3803
    %v3805 = vpop.f32.mrf.mxu0
    %v3806 = vadd.f32 %v3727, %v3805
    %3807 = vdwg.mxu0
    %3808 = vmatprep.subr.mxu0 0.0
    %3809 = vmatpush1.msra.mxu0 %v3717
    %3810 = vmatprep.subr.mxu0 0.0
    %3811 = vmatpush1.msra.mxu0 %v3714
    %3812 = vmatprep.subr.mxu0 0.0
    %3813 = vmatpush1.msra.mxu0 %v3711
    %3814 = vmatprep.subr.mxu0 0.0
    %3815 = vmatpush1.msra.mxu0 %v3708
    %3816 = vmatprep.subr.mxu0 0.0
    %3817 = vmatpush1.msra.mxu0 %v3705
    %3818 = vmatprep.subr.mxu0 0.0
    %3819 = vmatpush1.msra.mxu0 %v3702
    %3820 = vmatprep.subr.mxu0 0.0
    %3821 = vmatpush1.msra.mxu0 %v3699
    %3822 = vmatprep.subr.mxu0 0.0
    %3823 = vmatpush1.msra.mxu0 %v3696
    %3824 = vmatprep.subr.mxu0 0.0
    %3825 = vmatpush1.msra.mxu0 %v3693
    %3826 = vmatprep.subr.mxu0 0.0
    %3827 = vmatpush1.msra.mxu0 %v3690
    %3828 = vmatprep.subr.mxu0 0.0
    %3829 = vmatpush1.msra.mxu0 %v3687
    %3830 = vmatprep.subr.mxu0 0.0
    %3831 = vmatpush1.msra.mxu0 %v3684
    %3832 = vmatprep.subr.mxu0 0.0
    %3833 = vmatpush1.msra.mxu0 %v3681
    %3834 = vmatprep.subr.mxu0 0.0
    %3835 = vmatpush1.msra.mxu0 %v3678
    %3836 = vmatprep.subr.mxu0 0.0
    %3837 = vmatpush1.msra.mxu0 %v3675
    %3838 = vmatprep.subr.mxu0 0.0
    %3839 = vmatpush1.msra.mxu0 %v3672
    %3840 = vmatprep.subr.mxu0 0.0
    %3841 = vmatpush2.msra.mxu0 0.0
    %3842 = vmatprep.subr.mxu0 0.0
    %3843 = vmatpush2.msra.mxu0 0.0
    %3844 = vmatprep.subr.mxu0 0.0
    %3845 = vmatpush2.msra.mxu0 0.0
    %3846 = vmatprep.subr.mxu0 0.0
    %3847 = vmatpush2.msra.mxu0 0.0
    %3848 = vmatprep.subr.mxu0 0.0
    %3849 = vmatpush2.msra.mxu0 0.0
    %3850 = vmatprep.subr.mxu0 0.0
    %3851 = vmatpush2.msra.mxu0 0.0
    %3852 = vmatprep.subr.mxu0 0.0
    %3853 = vmatpush2.msra.mxu0 0.0
    %3854 = vmatprep.subr.mxu0 0.0
    %3855 = vmatpush2.msra.mxu0 0.0
    %3856 = vmatprep.subr.mxu0 0.0
    %3857 = vmatpush2.msra.mxu0 0.0
    %3858 = vmatprep.subr.mxu0 0.0
    %3859 = vmatpush2.msra.mxu0 0.0
    %3860 = vmatprep.subr.mxu0 0.0
    %3861 = vmatpush2.msra.mxu0 0.0
    %3862 = vmatprep.subr.mxu0 0.0
    %3863 = vmatpush2.msra.mxu0 0.0
    %3864 = vmatprep.subr.mxu0 0.0
    %3865 = vmatpush2.msra.mxu0 0.0
    %3866 = vmatprep.subr.mxu0 0.0
    %3867 = vmatpush2.msra.mxu0 0.0
    %3868 = vmatprep.subr.mxu0 0.0
    %3869 = vmatpush2.msra.mxu0 0.0
    %3870 = vmatprep.subr.mxu0 0.0
    %3871 = vmatpush2.msra.mxu0 0.0
    %3872 = vmatprep.mubr.f32.mxu0 0.0
    %3873 = vmatmul.mubr.f32.gmra.mxu0 %v3735
    %v3874 = vpop.f32.mrf.mxu0
    %v3875 = vadd.f32 %v3731, %v3874
    %v3876 = vpop.f32.mrf.mxu0
    %3877 = vdwg.mxu0
    %v3879 = vrot.slane %v3804, 4
    %v3881 = vadd.f32 %v3667, %v3879
    %v3882 = vxor.u32 %v3881, 2147483648
    %v3883 = vmul.f32 %v3882, 1.442695
    %v3884 = vpow.pop %v3883
    %v3885 = vadd.f32 %v3884, 1.0
    %v3886 = vrcp.pop %v3885
    %v3887 = vmul.f32 1.0, %v3886
    %v3889 = vrot.slane %v3806, 4
    %v3891 = vadd.f32 %v3668, %v3889
    %v3892 = vxor.u32 %v3891, 2147483648
    %v3893 = vmul.f32 %v3892, 1.442695
    %v3894 = vpow.pop %v3893
    %v3895 = vadd.f32 %v3894, 1.0
    %v3896 = vrcp.pop %v3895
    %v3897 = vmul.f32 1.0, %v3896
    %v3899 = vrot.slane %v3875, 4
    %v3901 = vmul.f32 %v3887, %v3899
    %v3902 = vadd.f32 %v3669, %v3901
    %v3903 = vtanh.pop %v3902
    %v3904 = vsub.f32 1.0, %v3897
    %v3905 = vmul.f32 %v3904, %v3903
    %v3906 = vrot.slane %v3655, 6
    %v3908 = vmul.f32 %v3897, %v3906
    %v3909 = vadd.f32 %v3905, %v3908
    %v3911 = vcombine.high %v3909, %v3909
    %v3913 = vunpack.c.l.s4 1983009808
    %v3914 = vunpack.c.0.s8 %v3913
    %v3915 = vlaneseq
    %v3916 = vshrl.u32 %v3915, 7
    %v3917 = vsub.s32 %v3914, %v3916
    %v3918 = vrot.slane %v3911, %v3917
    %3920 = vst [vmem:[%s6 + $0xc] sm:$0x3] %v3918
    %v3921 = vld [vmem:[#allocation3 + $0x18] sm:$0xc0]
    %v3922 = vld [vmem:[#allocation3 + $0x20] sm:$0xc0]
    %v3923 = vld [vmem:[#allocation3 + $0x28] sm:$0xc0]
    %v3924 = vld [vmem:[%s2189] sm:$0xff]
    %v3925 = vld [vmem:[%s2189 + $0x8] sm:$0xff]
    %v3926 = vld [vmem:[%s2189 + $0x10] sm:$0xff]
    %v3927 = vld [vmem:[%s2189 + $0x18] sm:$0xff]
    %v3928 = vld [vmem:[%s2189 + $0x20] sm:$0xff]
    %v3929 = vld [vmem:[%s2189 + $0x28] sm:$0xff]
    %v3930 = vld [vmem:[%s2189 + $0x30] sm:$0xff]
    %v3931 = vld [vmem:[%s2189 + $0x38] sm:$0xff]
    %v3932 = vld [vmem:[%s2189 + $0x40] sm:$0xff]
    %v3933 = vld [vmem:[%s2189 + $0x48] sm:$0xff]
    %v3934 = vld [vmem:[%s2189 + $0x50] sm:$0xff]
    %v3935 = vld [vmem:[%s2189 + $0x58] sm:$0xff]
    %v3936 = vld [vmem:[%s2189 + $0x60] sm:$0xff]
    %v3937 = vld [vmem:[%s2189 + $0x68] sm:$0xff]
    %v3938 = vld [vmem:[%s2189 + $0x70] sm:$0xff]
    %v3939 = vld [vmem:[%s2189 + $0x78] sm:$0xff]
    %v3940 = vld [vmem:[%s2189 + $0x80] sm:$0xff]
    %v3941 = vld [vmem:[%s2189 + $0x88] sm:$0xff]
    %v3942 = vld [vmem:[%s2189 + $0x90] sm:$0xff]
    %v3943 = vld [vmem:[%s2189 + $0x98] sm:$0xff]
    %v3944 = vld [vmem:[%s2189 + $0xa0] sm:$0xff]
    %v3945 = vld [vmem:[%s2189 + $0xa8] sm:$0xff]
    %v3946 = vld [vmem:[%s2189 + $0xb0] sm:$0xff]
    %v3947 = vld [vmem:[%s2189 + $0xb8] sm:$0xff]
    %v3948 = vld [vmem:[%s2189 + $0xc0] sm:$0xff]
    %v3949 = vld [vmem:[%s2189 + $0xc8] sm:$0xff]
    %v3950 = vld [vmem:[%s2189 + $0xd0] sm:$0xff]
    %v3951 = vld [vmem:[%s2189 + $0xd8] sm:$0xff]
    %v3952 = vld [vmem:[%s2189 + $0xe0] sm:$0xff]
    %v3953 = vld [vmem:[%s2189 + $0xe8] sm:$0xff]
    %v3954 = vld [vmem:[%s2189 + $0xf0] sm:$0xff]
    %v3955 = vld [vmem:[%s2189 + $0xf8] sm:$0xff]
    %v3956 = vld [vmem:[%s2189 + $0x100] sm:$0xff]
    %v3957 = vld [vmem:[%s2189 + $0x108] sm:$0xff]
    %v3958 = vld [vmem:[%s2189 + $0x110] sm:$0xff]
    %v3959 = vld [vmem:[%s2189 + $0x118] sm:$0xff]
    %v3960 = vld [vmem:[%s2189 + $0x120] sm:$0xff]
    %v3961 = vld [vmem:[%s2189 + $0x128] sm:$0xff]
    %v3962 = vld [vmem:[%s2189 + $0x130] sm:$0xff]
    %v3963 = vld [vmem:[%s2189 + $0x138] sm:$0xff]
    %v3964 = vld [vmem:[%s2189 + $0x140] sm:$0xff]
    %v3965 = vld [vmem:[%s2189 + $0x148] sm:$0xff]
    %v3966 = vld [vmem:[%s2189 + $0x150] sm:$0xff]
    %v3967 = vld [vmem:[%s2189 + $0x158] sm:$0xff]
    %v3968 = vld [vmem:[%s2189 + $0x160] sm:$0xff]
    %v3969 = vld [vmem:[%s2189 + $0x168] sm:$0xff]
    %v3970 = vld [vmem:[%s2189 + $0x170] sm:$0xff]
    %v3971 = vld [vmem:[%s2189 + $0x178] sm:$0xff]
    %v3972 = vld [vmem:[%s2238] sm:$0x7]
    %v3974 = vlaneseq
    %v3975 = vshrl.u32 %v3974, 7
    %v3976 = vsub.s32 0, %v3975
    %v3977 = vrot.slane %v3972, %v3976
    %v3978 = vlaneseq
    %v3979 = vshrl.u32 %v3978, 7
    %v3980 = vsub.s32 1, %v3979
    %v3981 = vrot.slane %v3972, %v3980
    %v3982 = vlaneseq
    %v3983 = vshrl.u32 %v3982, 7
    %v3984 = vsub.s32 2, %v3983
    %v3985 = vrot.slane %v3972, %v3984
    %v3989 = vrot.slane %v3909, 4
    %3991 = vmatprep.subr.mxu0 %v3970
    %3992 = vmatpush1.msra.mxu0 %v3969
    %3993 = vmatprep.subr.mxu0 %v3967
    %3994 = vmatpush1.msra.mxu0 %v3966
    %3995 = vmatprep.subr.mxu0 %v3964
    %3996 = vmatpush1.msra.mxu0 %v3963
    %3997 = vmatprep.subr.mxu0 %v3961
    %3998 = vmatpush1.msra.mxu0 %v3960
    %3999 = vmatprep.subr.mxu0 %v3958
    %4000 = vmatpush1.msra.mxu0 %v3957
    %4001 = vmatprep.subr.mxu0 %v3955
    %4002 = vmatpush1.msra.mxu0 %v3954
    %4003 = vmatprep.subr.mxu0 %v3952
    %4004 = vmatpush1.msra.mxu0 %v3951
    %4005 = vmatprep.subr.mxu0 %v3949
    %4006 = vmatpush1.msra.mxu0 %v3948
    %4007 = vmatprep.subr.mxu0 %v3946
    %4008 = vmatpush1.msra.mxu0 %v3945
    %4009 = vmatprep.subr.mxu0 %v3943
    %4010 = vmatpush1.msra.mxu0 %v3942
    %4011 = vmatprep.subr.mxu0 %v3940
    %4012 = vmatpush1.msra.mxu0 %v3939
    %4013 = vmatprep.subr.mxu0 %v3937
    %4014 = vmatpush1.msra.mxu0 %v3936
    %4015 = vmatprep.subr.mxu0 %v3934
    %4016 = vmatpush1.msra.mxu0 %v3933
    %4017 = vmatprep.subr.mxu0 %v3931
    %4018 = vmatpush1.msra.mxu0 %v3930
    %4019 = vmatprep.subr.mxu0 %v3928
    %4020 = vmatpush1.msra.mxu0 %v3927
    %4021 = vmatprep.subr.mxu0 %v3925
    %4022 = vmatpush1.msra.mxu0 %v3924
    %4023 = vmatprep.subr.mxu0 0.0
    %4024 = vmatpush2.msra.mxu0 0.0
    %4025 = vmatprep.subr.mxu0 0.0
    %4026 = vmatpush2.msra.mxu0 0.0
    %4027 = vmatprep.subr.mxu0 0.0
    %4028 = vmatpush2.msra.mxu0 0.0
    %4029 = vmatprep.subr.mxu0 0.0
    %4030 = vmatpush2.msra.mxu0 0.0
    %4031 = vmatprep.subr.mxu0 0.0
    %4032 = vmatpush2.msra.mxu0 0.0
    %4033 = vmatprep.subr.mxu0 0.0
    %4034 = vmatpush2.msra.mxu0 0.0
    %4035 = vmatprep.subr.mxu0 0.0
    %4036 = vmatpush2.msra.mxu0 0.0
    %4037 = vmatprep.subr.mxu0 0.0
    %4038 = vmatpush2.msra.mxu0 0.0
    %4039 = vmatprep.subr.mxu0 0.0
    %4040 = vmatpush2.msra.mxu0 0.0
    %4041 = vmatprep.subr.mxu0 0.0
    %4042 = vmatpush2.msra.mxu0 0.0
    %4043 = vmatprep.subr.mxu0 0.0
    %4044 = vmatpush2.msra.mxu0 0.0
    %4045 = vmatprep.subr.mxu0 0.0
    %4046 = vmatpush2.msra.mxu0 0.0
    %4047 = vmatprep.subr.mxu0 0.0
    %4048 = vmatpush2.msra.mxu0 0.0
    %4049 = vmatprep.subr.mxu0 0.0
    %4050 = vmatpush2.msra.mxu0 0.0
    %4051 = vmatprep.subr.mxu0 0.0
    %4052 = vmatpush2.msra.mxu0 0.0
    %4053 = vmatprep.subr.mxu0 0.0
    %4054 = vmatpush2.msra.mxu0 0.0
    %4055 = vmatprep.mubr.f32.mxu0 0.0
    %4056 = vmatmul.mubr.f32.gmra.mxu0 %v3989
    %v4057 = vpop.f32.mrf.mxu0
    %v4058 = vadd.f32 %v3977, %v4057
    %v4059 = vpop.f32.mrf.mxu0
    %v4060 = vadd.f32 %v3981, %v4059
    %4061 = vdwg.mxu0
    %4062 = vmatprep.subr.mxu0 0.0
    %4063 = vmatpush1.msra.mxu0 %v3971
    %4064 = vmatprep.subr.mxu0 0.0
    %4065 = vmatpush1.msra.mxu0 %v3968
    %4066 = vmatprep.subr.mxu0 0.0
    %4067 = vmatpush1.msra.mxu0 %v3965
    %4068 = vmatprep.subr.mxu0 0.0
    %4069 = vmatpush1.msra.mxu0 %v3962
    %4070 = vmatprep.subr.mxu0 0.0
    %4071 = vmatpush1.msra.mxu0 %v3959
    %4072 = vmatprep.subr.mxu0 0.0
    %4073 = vmatpush1.msra.mxu0 %v3956
    %4074 = vmatprep.subr.mxu0 0.0
    %4075 = vmatpush1.msra.mxu0 %v3953
    %4076 = vmatprep.subr.mxu0 0.0
    %4077 = vmatpush1.msra.mxu0 %v3950
    %4078 = vmatprep.subr.mxu0 0.0
    %4079 = vmatpush1.msra.mxu0 %v3947
    %4080 = vmatprep.subr.mxu0 0.0
    %4081 = vmatpush1.msra.mxu0 %v3944
    %4082 = vmatprep.subr.mxu0 0.0
    %4083 = vmatpush1.msra.mxu0 %v3941
    %4084 = vmatprep.subr.mxu0 0.0
    %4085 = vmatpush1.msra.mxu0 %v3938
    %4086 = vmatprep.subr.mxu0 0.0
    %4087 = vmatpush1.msra.mxu0 %v3935
    %4088 = vmatprep.subr.mxu0 0.0
    %4089 = vmatpush1.msra.mxu0 %v3932
    %4090 = vmatprep.subr.mxu0 0.0
    %4091 = vmatpush1.msra.mxu0 %v3929
    %4092 = vmatprep.subr.mxu0 0.0
    %4093 = vmatpush1.msra.mxu0 %v3926
    %4094 = vmatprep.subr.mxu0 0.0
    %4095 = vmatpush2.msra.mxu0 0.0
    %4096 = vmatprep.subr.mxu0 0.0
    %4097 = vmatpush2.msra.mxu0 0.0
    %4098 = vmatprep.subr.mxu0 0.0
    %4099 = vmatpush2.msra.mxu0 0.0
    %4100 = vmatprep.subr.mxu0 0.0
    %4101 = vmatpush2.msra.mxu0 0.0
    %4102 = vmatprep.subr.mxu0 0.0
    %4103 = vmatpush2.msra.mxu0 0.0
    %4104 = vmatprep.subr.mxu0 0.0
    %4105 = vmatpush2.msra.mxu0 0.0
    %4106 = vmatprep.subr.mxu0 0.0
    %4107 = vmatpush2.msra.mxu0 0.0
    %4108 = vmatprep.subr.mxu0 0.0
    %4109 = vmatpush2.msra.mxu0 0.0
    %4110 = vmatprep.subr.mxu0 0.0
    %4111 = vmatpush2.msra.mxu0 0.0
    %4112 = vmatprep.subr.mxu0 0.0
    %4113 = vmatpush2.msra.mxu0 0.0
    %4114 = vmatprep.subr.mxu0 0.0
    %4115 = vmatpush2.msra.mxu0 0.0
    %4116 = vmatprep.subr.mxu0 0.0
    %4117 = vmatpush2.msra.mxu0 0.0
    %4118 = vmatprep.subr.mxu0 0.0
    %4119 = vmatpush2.msra.mxu0 0.0
    %4120 = vmatprep.subr.mxu0 0.0
    %4121 = vmatpush2.msra.mxu0 0.0
    %4122 = vmatprep.subr.mxu0 0.0
    %4123 = vmatpush2.msra.mxu0 0.0
    %4124 = vmatprep.subr.mxu0 0.0
    %4125 = vmatpush2.msra.mxu0 0.0
    %4126 = vmatprep.mubr.f32.mxu0 0.0
    %4127 = vmatmul.mubr.f32.gmra.mxu0 %v3989
    %v4128 = vpop.f32.mrf.mxu0
    %v4129 = vadd.f32 %v3985, %v4128
    %v4130 = vpop.f32.mrf.mxu0
    %4131 = vdwg.mxu0
    %v4133 = vrot.slane %v4058, 2
    %v4135 = vadd.f32 %v3921, %v4133
    %v4136 = vxor.u32 %v4135, 2147483648
    %v4137 = vmul.f32 %v4136, 1.442695
    %v4138 = vpow.pop %v4137
    %v4139 = vadd.f32 %v4138, 1.0
    %v4140 = vrcp.pop %v4139
    %v4141 = vmul.f32 1.0, %v4140
    %v4143 = vrot.slane %v4060, 2
    %v4145 = vadd.f32 %v3922, %v4143
    %v4146 = vxor.u32 %v4145, 2147483648
    %v4147 = vmul.f32 %v4146, 1.442695
    %v4148 = vpow.pop %v4147
    %v4149 = vadd.f32 %v4148, 1.0
    %v4150 = vrcp.pop %v4149
    %v4151 = vmul.f32 1.0, %v4150
    %v4153 = vrot.slane %v4129, 2
    %v4155 = vmul.f32 %v4141, %v4153
    %v4156 = vadd.f32 %v3923, %v4155
    %v4157 = vtanh.pop %v4156
    %v4158 = vsub.f32 1.0, %v4151
    %v4159 = vmul.f32 %v4158, %v4157
    %v4160 = vrot.slane %v3909, 6
    %v4162 = vmul.f32 %v4151, %v4160
    %v4163 = vadd.f32 %v4159, %v4162
    %v4165 = vcombine.high %v4163, %v4163
    %v4167 = vunpack.c.l.s4 1983009808
    %v4168 = vunpack.c.0.s8 %v4167
    %v4169 = vlaneseq
    %v4170 = vshrl.u32 %v4169, 7
    %v4171 = vsub.s32 %v4168, %v4170
    %v4172 = vrot.slane %v4165, %v4171
    %v4173 = vcombine.high %v4172, %v4172
    %4175 = vst [vmem:[%s6 + $0xe] sm:$0x3] %v4173
    %s4176 = scalar_lea.vmem [#allocation4], 2
    %4177 = vst [vmem:[%s4176 - $0x6] sm:$0xc0] %v4163
    // Predicated region
    $region26: #{toynn_forward.1} parent=1 // pred_check
      _
    $region27: #{toynn_forward.1} parent=1 // pred_check_branch
      %4179 = sbr.rel (0) target = $region29
    $region28: #{toynn_forward.1} parent=1 // pred_region
      _
    $region29: #{toynn_forward.1} parent=1 // pred_fallthru
      _
    // Predicated region
    $region30: #{toynn_forward.1} parent=1 // pred_check
      _
    $region31: #{toynn_forward.1} parent=1 // pred_check_branch
      %4181 = sbr.rel (0) target = $region33
    $region32: #{toynn_forward.1} parent=1 // pred_region
      %s4183 = ssub.s32 64, 64
      %4184 = vsyncadd [#allocation5], %s4183
      %s4185 = sshll.u32 [#allocation4], 4
      %s4186 = int_to_ptr.vmem [resolvable:$true] %s4185
      %4191 = dma.vmem_to_hbm [thread:$0]  %s4186, 64, %s7, [#allocation5], 32, 32, 2
    $region33: #{toynn_forward.1} parent=1 // pred_fallthru
      _
    // Predicated region
    $region34: #{toynn_forward.1} parent=1 // pred_check
      _
    $region35: #{toynn_forward.1} parent=1 // pred_check_branch
      %4193 = sbr.rel (0) target = $region37
    $region36: #{toynn_forward.1} parent=1 // pred_region
      _
    $region37: #{toynn_forward.1} parent=1 // pred_fallthru
      _
    // Predicated region
    $region38: #{toynn_forward.1} parent=1 // pred_check
      _
    $region39: #{toynn_forward.1} parent=1 // pred_check_branch
      %4195 = sbr.rel (0) target = $region41
    $region40: #{toynn_forward.1} parent=1 // pred_region
      %4196 = dma.done [#allocation5], 64
    $region41: #{toynn_forward.1} parent=1 // pred_fallthru
      _
    %4197 = vsyncpa [#allocation5], 1

</llo_original>
